<compile_context>
chip_gen: v7x
topology: tpu7x:2x2x1
jax: 0.10.0
libtpu: 0.0.40
codegen_flags: <defaults>
</compile_context>

<pallas_src>
import functools

import jax
import jax.numpy as jnp
from jax import lax
from jax.experimental import pallas as pl
from jax.experimental.pallas import tpu as pltpu


# ---------------------------------------------------------------------------
# Static layout tables
# ---------------------------------------------------------------------------

ADJ_NAMES = [
    "centerFace", "facePoint", "pointCenter",
    "pp0", "pp1", "pp2", "pp3", "pp4",
    "pool0", "pool1", "pool2", "pool3",
    "unpool0", "unpool1", "unpool2", "unpool3",
]

# For every weight matrix: the input-channel split of its (possibly cat'ed)
# input, in the same order the lane-concat is built inside the kernel.
CONV_SPLITS = {
    "cf_W": (2,),
    "fp_W": (28, 4),                 # cat(centerFace-out 28, xFace 4)
    "c2_Wn": (32,), "c2_Ws": (32,),
    "c3_Wn": (32,), "c3_Ws": (32,),
    "c4_Wn": (32,), "c4_Ws": (32,),
    "c5a_Wn": (64,), "c5a_Ws": (64,),
    "c5b_Wn": (64,), "c5b_Ws": (64,),
    "c6_Wn": (64, 64), "c6_Ws": (64, 64),   # cat(conv5, conv4)
    "c7_Wn": (64, 32), "c7_Ws": (64, 32),   # cat(conv6, conv3)
    "c8_Wn": (64, 32), "c8_Ws": (64, 32),   # cat(conv7, conv2)
    "c9_Wn": (32, 32), "c9_Ws": (32, 32),   # cat(conv8, conv1)
    "pc_W": (32,),
    "final_W": (32,),
}
W_MAT_NAMES = list(CONV_SPLITS.keys())

BIAS_NAMES = ["cf_b", "fp_b", "c2_b", "c3_b", "c4_b", "c5a_b", "c5b_b",
              "c6_b", "c7_b", "c8_b", "c9_b", "pc_b"]


# ---------------------------------------------------------------------------
# In-kernel building blocks
# ---------------------------------------------------------------------------

def _dot(a, b):
    # bf16 MXU operands, f32 accumulation (b is already bf16 when it comes
    # from a slab; the astype is then a no-op).
    return jnp.dot(a.astype(jnp.bfloat16), b.astype(jnp.bfloat16),
                   preferred_element_type=jnp.float32)


def _relu(x):
    return jnp.maximum(x, 0.0)


def _inorm(x, eps=1e-5):
    # InstanceNorm1d(affine=False) over the node axis.  Batch is folded into
    # lanes, so a single per-lane statistic is already per-(batch, channel).
    # sum and sum-of-squares fused into ONE cross-sublane reduction over the
    # lane-packed [x | x*x].
    n, ch = x.shape
    inv_n = 1.0 / n
    stats = jnp.sum(jnp.concatenate([x, x * x], axis=-1),
                    axis=0, keepdims=True) * inv_n            # (1, 2*ch) f32
    mean = stats[:, :ch]
    msq = stats[:, ch:]
    var = jnp.maximum(msq - mean * mean, 0.0)
    return (x - mean) * lax.rsqrt(var + eps)


# ---------------------------------------------------------------------------
# Fused forward-pass kernel (single grid step, batch packed into lanes)
# ---------------------------------------------------------------------------

def _graph_unet_kernel(widx, bidx, aidx,
                       xcc_ref, xf_ref, w_ref, b_ref, a_ref, o_ref):
    # ---- static slab views (zero-cost ref slices, no per-operand DMA) ------
    def W(name):
        off, r, c = widx[name]
        return w_ref[off:off + r, :c]

    def BIAS(name):
        off, r, c = bidx[name]
        return b_ref[off:off + r, :c]

    def A(name):
        off, r, c = aidx[name]
        return a_ref[off:off + r, :c]

    # ---- layer primitives ---------------------------------------------------
    def gconv(adj_name, x, w_name, b_name):
        # CustomGraphConv: relu( A @ (X @ W) + b )
        return _relu(_dot(A(adj_name), _dot(x, W(w_name))) + BIAS(b_name))

    def gconv_pp(adj_name, x, wn, ws, b):
        # CustomGraphConvPointPoint: relu( X @ Ws + A @ (X @ Wn) + b )
        return _relu(_dot(A(adj_name), _dot(x, W(wn)))
                     + _dot(x, W(ws)) + BIAS(b))

    # ---- forward pass -------------------------------------------------------
    xcc = _inorm(xcc_ref[...])                                   # (C0, B*2)
    xf = _inorm(xf_ref[...])                                     # (F0, B*4)

    # convN_1: centerFace 2->28, cat(+4), facePoint 32->32
    h = gconv("centerFace", xcc, "cf_W", "cf_b")                 # (F0, B*28)
    c1 = _inorm(gconv("facePoint",
                      jnp.concatenate([h, xf], axis=-1),         # (F0, B*32)
                      "fp_W", "fp_b"))                           # (P0, B*32)

    # encoder: pool then point-point conv
    c2 = _inorm(gconv_pp("pp1", _dot(A("pool0"), c1), "c2_Wn", "c2_Ws", "c2_b"))
    c3 = _inorm(gconv_pp("pp2", _dot(A("pool1"), c2), "c3_Wn", "c3_Ws", "c3_b"))
    c4 = _inorm(gconv_pp("pp3", _dot(A("pool2"), c3), "c4_Wn", "c4_Ws", "c4_b"))

    # bottleneck: pool, two convs, unpool
    h = _dot(A("pool3"), c4)
    h = gconv_pp("pp4", h, "c5a_Wn", "c5a_Ws", "c5a_b")
    h = gconv_pp("pp4", h, "c5b_Wn", "c5b_Ws", "c5b_b")
    c5 = _inorm(_dot(A("unpool3"), h))                           # (P3, B*64)

    # decoder: lane-concat skip connections (never leave VMEM/vregs)
    h = gconv_pp("pp3", jnp.concatenate([c5, c4], axis=-1), "c6_Wn", "c6_Ws", "c6_b")
    c6 = _inorm(_dot(A("unpool2"), h))                           # (P2, B*64)
    h = gconv_pp("pp2", jnp.concatenate([c6, c3], axis=-1), "c7_Wn", "c7_Ws", "c7_b")
    c7 = _inorm(_dot(A("unpool1"), h))                           # (P1, B*64)
    h = gconv_pp("pp1", jnp.concatenate([c7, c2], axis=-1), "c8_Wn", "c8_Ws", "c8_b")
    c8 = _inorm(_dot(A("unpool0"), h))                           # (P0, B*32)

    # convN_9: point-point then pointCenter
    h = gconv_pp("pp0", jnp.concatenate([c8, c1], axis=-1), "c9_Wn", "c9_Ws", "c9_b")
    c9 = _inorm(gconv("pointCenter", h, "pc_W", "pc_b"))         # (C0, B*32)

    # final SelfLoop projection (32 -> 1 per node), block-diag over batch
    o_ref[...] = _dot(c9, W("final_W"))                          # (C0, B)


# ---------------------------------------------------------------------------
# Host-side packing: batch expansion + slab packing
# ---------------------------------------------------------------------------

def _batch_blockdiag(W, B):
    # (Cin, Cout) -> (B*Cin, B*Cout) block-diagonal batch expansion.
    cin, cout = W.shape
    out = jnp.zeros((B * cin, B * cout), W.dtype)
    for b in range(B):
        out = out.at[b * cin:(b + 1) * cin, b * cout:(b + 1) * cout].set(W)
    return out


def _batch_weight(W, splits, B):
    # Rows are re-ordered to match the in-kernel lane concat
    # [part0 b0 | part0 b1 | part1 b0 | part1 b1 | ...].
    parts, r = [], 0
    for cp in splits:
        parts.append(_batch_blockdiag(W[r:r + cp], B))
        r += cp
    return jnp.concatenate(parts, axis=0)


def _batch_bias(b, B):
    return jnp.tile(jnp.reshape(b, (1, -1)), (1, B))


def _pack_slab(entries, lane_width, dtype, row_align):
    """Pack [(name, 2D array)] into one (rows, lane_width) slab.

    Returns (slab, {name: (row_offset, rows, cols)}); offsets are row_align-ed
    so every in-kernel static slice starts on a native sublane-tile boundary.
    """
    blocks, index, off = [], {}, 0
    for name, m in entries:
        m = jnp.asarray(m, dtype)
        r, c = m.shape
        rp = ((r + row_align - 1) // row_align) * row_align
        blk = jnp.zeros((rp, lane_width), dtype).at[:r, :c].set(m)
        blocks.append(blk)
        index[name] = (off, r, c)
        off += rp
    return jnp.concatenate(blocks, axis=0), index


def pack_model(params, adj, B):
    w_entries = [(n, _batch_weight(params[n], CONV_SPLITS[n], B)) for n in W_MAT_NAMES]
    b_entries = [(n, _batch_bias(params[n], B)) for n in BIAS_NAMES]
    a_entries = [(n, adj[n]) for n in ADJ_NAMES]

    w_slab, widx = _pack_slab(w_entries, 128, jnp.bfloat16, row_align=16)
    b_slab, bidx = _pack_slab(b_entries, 128, jnp.float32, row_align=8)
    a_slab, aidx = _pack_slab(a_entries, 128, jnp.bfloat16, row_align=16)
    return (w_slab, widx), (b_slab, bidx), (a_slab, aidx)


# ---------------------------------------------------------------------------
# pallas_call wrapper: one fused call, single grid step
# ---------------------------------------------------------------------------

def graph_unet_forward(packed, xCellCenters, xFace):
    (w_slab, widx), (b_slab, bidx), (a_slab, aidx) = packed
    B, C0, _ = xCellCenters.shape
    F0 = xFace.shape[1]

    # fold batch into lanes: (B, N, C) -> (N, B*C)
    xcc = jnp.transpose(xCellCenters, (1, 0, 2)).reshape(C0, -1).astype(jnp.float32)
    xf = jnp.transpose(xFace, (1, 0, 2)).reshape(F0, -1).astype(jnp.float32)

    kernel = functools.partial(_graph_unet_kernel, widx, bidx, aidx)

    out = pl.pallas_call(
        kernel,
        out_shape=jax.ShapeDtypeStruct((C0, B), jnp.float32),
        grid=(1,),
        in_specs=[
            pl.BlockSpec(xcc.shape, lambda i: (0, 0)),
            pl.BlockSpec(xf.shape, lambda i: (0, 0)),
            pl.BlockSpec(w_slab.shape, lambda i: (0, 0)),
            pl.BlockSpec(b_slab.shape, lambda i: (0, 0)),
            pl.BlockSpec(a_slab.shape, lambda i: (0, 0)),
        ],
        out_specs=pl.BlockSpec((C0, B), lambda i: (0, 0)),
        compiler_params=pltpu.CompilerParams(
            dimension_semantics=("arbitrary",)),
    )(xcc, xf, w_slab, b_slab, a_slab)

    # wrapper-side layout plumbing back to the module's (B, C0, 1) output
    return jnp.transpose(out)[..., None]


# ---------------------------------------------------------------------------
# Deterministic parameter / graph construction
# ---------------------------------------------------------------------------

def _winit(key, shape):
    fan_in = shape[0]
    return jax.random.normal(key, shape, jnp.float32) / jnp.sqrt(jnp.float32(fan_in))


def _adjm(key, ndst, nsrc):
    # dense weighted adjacency standing in for (edge_index, edge_attr)
    return jax.random.normal(key, (ndst, nsrc), jnp.float32) / jnp.sqrt(jnp.float32(nsrc))


def build_params_and_graph(key, C0, F0, P0, P1, P2, P3, P4):
    keys = iter(jax.random.split(key, 64))
    nk = lambda: next(keys)

    params = {
        "cf_W": _winit(nk(), (2, 28)),    "cf_b": _winit(nk(), (28,)),
        "fp_W": _winit(nk(), (32, 32)),   "fp_b": _winit(nk(), (32,)),
        "c2_Wn": _winit(nk(), (32, 32)),  "c2_Ws": _winit(nk(), (32, 32)),  "c2_b": _winit(nk(), (32,)),
        "c3_Wn": _winit(nk(), (32, 32)),  "c3_Ws": _winit(nk(), (32, 32)),  "c3_b": _winit(nk(), (32,)),
        "c4_Wn": _winit(nk(), (32, 64)),  "c4_Ws": _winit(nk(), (32, 64)),  "c4_b": _winit(nk(), (64,)),
        "c5a_Wn": _winit(nk(), (64, 64)), "c5a_Ws": _winit(nk(), (64, 64)), "c5a_b": _winit(nk(), (64,)),
        "c5b_Wn": _winit(nk(), (64, 64)), "c5b_Ws": _winit(nk(), (64, 64)), "c5b_b": _winit(nk(), (64,)),
        "c6_Wn": _winit(nk(), (128, 64)), "c6_Ws": _winit(nk(), (128, 64)), "c6_b": _winit(nk(), (64,)),
        "c7_Wn": _winit(nk(), (96, 64)),  "c7_Ws": _winit(nk(), (96, 64)),  "c7_b": _winit(nk(), (64,)),
        "c8_Wn": _winit(nk(), (96, 32)),  "c8_Ws": _winit(nk(), (96, 32)),  "c8_b": _winit(nk(), (32,)),
        "c9_Wn": _winit(nk(), (64, 32)),  "c9_Ws": _winit(nk(), (64, 32)),  "c9_b": _winit(nk(), (32,)),
        "pc_W": _winit(nk(), (32, 32)),   "pc_b": _winit(nk(), (32,)),
        "final_W": _winit(nk(), (32, 1)),
    }

    adj = {
        "centerFace": _adjm(nk(), F0, C0),
        "facePoint": _adjm(nk(), P0, F0),
        "pointCenter": _adjm(nk(), C0, P0),
        "pp0": _adjm(nk(), P0, P0),
        "pp1": _adjm(nk(), P1, P1),
        "pp2": _adjm(nk(), P2, P2),
        "pp3": _adjm(nk(), P3, P3),
        "pp4": _adjm(nk(), P4, P4),
        "pool0": _adjm(nk(), P1, P0), "unpool0": _adjm(nk(), P0, P1),
        "pool1": _adjm(nk(), P2, P1), "unpool1": _adjm(nk(), P1, P2),
        "pool2": _adjm(nk(), P3, P2), "unpool2": _adjm(nk(), P2, P3),
        "pool3": _adjm(nk(), P4, P3), "unpool3": _adjm(nk(), P3, P4),
    }
    return params, adj


# ---------------------------------------------------------------------------
# main
# ---------------------------------------------------------------------------

if __name__ == "__main__":
    B = 2
    C0, F0 = 16, 32                          # cell centers / faces
    P0, P1, P2, P3, P4 = 64, 32, 16, 8, 8    # point counts per UNet level

    root = jax.random.PRNGKey(0)
    k_in, k_model = jax.random.split(root)
    k_cc, k_f = jax.random.split(k_in)

    xCellCenters = jax.random.normal(k_cc, (B, C0, 2), jnp.float32)
    xFace = jax.random.normal(k_f, (B, F0, 4), jnp.float32)

    params, adj = build_params_and_graph(k_model, C0, F0, P0, P1, P2, P3, P4)
    packed = pack_model(params, adj, B)

    out = graph_unet_forward(packed, xCellCenters, xFace)
    out = jax.block_until_ready(out)

    assert out.shape == (B, C0, 1), out.shape
    assert bool(jnp.all(jnp.isfinite(out)))
    print("KERNEL_OK")
</pallas_src>

<mosaic_0001>
module attributes {stable_mosaic.version = 11 : i64} {
  func.func @_graph_unet_kernel(%arg0: i32, %arg1: memref<16x4xf32, #tpu.memory_space<vmem>>, %arg2: memref<32x8xf32, #tpu.memory_space<vmem>>, %arg3: memref<2640x128xbf16, #tpu.memory_space<vmem>>, %arg4: memref<96x128xf32, #tpu.memory_space<vmem>>, %arg5: memref<464x128xbf16, #tpu.memory_space<vmem>>, %arg6: memref<16x2xf32, #tpu.memory_space<vmem>>) attributes {dimension_semantics = [#tpu.dimension_semantics<arbitrary>], iteration_bounds = array<i64: 1>, scalar_prefetch = 0 : i64, scratch_operands = 0 : i64, tpu.core_type = #tpu.core_type<tc>, window_params = [{pipeline_mode = #tpu.pipeline_mode<synchronous>, transform_indices = @transform_0, window_bounds = array<i64: 16, 4>}, {pipeline_mode = #tpu.pipeline_mode<synchronous>, transform_indices = @transform_1, window_bounds = array<i64: 32, 8>}, {pipeline_mode = #tpu.pipeline_mode<synchronous>, transform_indices = @transform_2, window_bounds = array<i64: 2640, 128>}, {pipeline_mode = #tpu.pipeline_mode<synchronous>, transform_indices = @transform_3, window_bounds = array<i64: 96, 128>}, {pipeline_mode = #tpu.pipeline_mode<synchronous>, transform_indices = @transform_4, window_bounds = array<i64: 464, 128>}, {pipeline_mode = #tpu.pipeline_mode<synchronous>, transform_indices = @transform_5, window_bounds = array<i64: 16, 2>}]} {
    %c0 = arith.constant 0 : index
    %c0_0 = arith.constant 0 : index
    %0 = vector.load %arg1[%c0, %c0_0] : memref<16x4xf32, #tpu.memory_space<vmem>>, vector<16x4xf32>
    %1 = arith.mulf %0, %0 : vector<16x4xf32>
    %2 = tpu.concatenate %0, %1 in 1 : vector<16x4xf32>, vector<16x4xf32> -> vector<16x8xf32>
    %cst = arith.constant dense<0.000000e+00> : vector<8xf32>
    %3 = vector.multi_reduction <add>, %2, %cst [0] : vector<16x8xf32> to vector<8xf32>
    %4 = vector.shape_cast %3 : vector<8xf32> to vector<1x8xf32>
    %cst_1 = arith.constant 6.250000e-02 : f32
    %5 = vector.broadcast %cst_1 : f32 to vector<1x8xf32>
    %6 = arith.mulf %4, %5 : vector<1x8xf32>
    %7 = vector.extract_strided_slice %6 {offsets = [0, 0], sizes = [1, 4], strides = [1, 1]} : vector<1x8xf32> to vector<1x4xf32>
    %8 = vector.extract_strided_slice %6 {offsets = [0, 4], sizes = [1, 4], strides = [1, 1]} : vector<1x8xf32> to vector<1x4xf32>
    %9 = arith.mulf %7, %7 : vector<1x4xf32>
    %10 = arith.subf %8, %9 : vector<1x4xf32>
    %cst_2 = arith.constant 0.000000e+00 : f32
    %11 = vector.broadcast %cst_2 : f32 to vector<1x4xf32>
    %12 = arith.maximumf %10, %11 : vector<1x4xf32>
    %13 = vector.broadcast %7 : vector<1x4xf32> to vector<16x4xf32>
    %14 = arith.subf %0, %13 : vector<16x4xf32>
    %cst_3 = arith.constant 9.99999974E-6 : f32
    %15 = vector.broadcast %cst_3 : f32 to vector<1x4xf32>
    %16 = arith.addf %12, %15 : vector<1x4xf32>
    %17 = math.rsqrt %16 : vector<1x4xf32>
    %18 = vector.broadcast %17 : vector<1x4xf32> to vector<16x4xf32>
    %19 = arith.mulf %14, %18 : vector<16x4xf32>
    %c0_4 = arith.constant 0 : index
    %c0_5 = arith.constant 0 : index
    %20 = vector.load %arg2[%c0_4, %c0_5] : memref<32x8xf32, #tpu.memory_space<vmem>>, vector<32x8xf32>
    %21 = arith.mulf %20, %20 : vector<32x8xf32>
    %22 = tpu.concatenate %20, %21 in 1 : vector<32x8xf32>, vector<32x8xf32> -> vector<32x16xf32>
    %cst_6 = arith.constant dense<0.000000e+00> : vector<16xf32>
    %23 = vector.multi_reduction <add>, %22, %cst_6 [0] : vector<32x16xf32> to vector<16xf32>
    %24 = vector.shape_cast %23 : vector<16xf32> to vector<1x16xf32>
    %cst_7 = arith.constant 3.125000e-02 : f32
    %25 = vector.broadcast %cst_7 : f32 to vector<1x16xf32>
    %26 = arith.mulf %24, %25 : vector<1x16xf32>
    %27 = vector.extract_strided_slice %26 {offsets = [0, 0], sizes = [1, 8], strides = [1, 1]} : vector<1x16xf32> to vector<1x8xf32>
    %28 = vector.extract_strided_slice %26 {offsets = [0, 8], sizes = [1, 8], strides = [1, 1]} : vector<1x16xf32> to vector<1x8xf32>
    %29 = arith.mulf %27, %27 : vector<1x8xf32>
    %30 = arith.subf %28, %29 : vector<1x8xf32>
    %cst_8 = arith.constant 0.000000e+00 : f32
    %31 = vector.broadcast %cst_8 : f32 to vector<1x8xf32>
    %32 = arith.maximumf %30, %31 : vector<1x8xf32>
    %33 = vector.broadcast %27 : vector<1x8xf32> to vector<32x8xf32>
    %34 = arith.subf %20, %33 : vector<32x8xf32>
    %cst_9 = arith.constant 9.99999974E-6 : f32
    %35 = vector.broadcast %cst_9 : f32 to vector<1x8xf32>
    %36 = arith.addf %32, %35 : vector<1x8xf32>
    %37 = math.rsqrt %36 : vector<1x8xf32>
    %38 = vector.broadcast %37 : vector<1x8xf32> to vector<32x8xf32>
    %39 = arith.mulf %34, %38 : vector<32x8xf32>
    %c0_10 = arith.constant 0 : index
    %c0_11 = arith.constant 0 : index
    %40 = vector.load %arg5[%c0_10, %c0_11] : memref<464x128xbf16, #tpu.memory_space<vmem>>, vector<32x16xbf16>
    %c0_12 = arith.constant 0 : index
    %c0_13 = arith.constant 0 : index
    %41 = vector.load %arg3[%c0_12, %c0_13] : memref<2640x128xbf16, #tpu.memory_space<vmem>>, vector<4x56xbf16>
    %42 = arith.truncf %19 : vector<16x4xf32> to vector<16x4xbf16>
    %cst_14 = arith.constant dense<0.000000e+00> : vector<16x56xf32>
    %43 = tpu.matmul %42, %41, %cst_14 {dimension_numbers = #tpu.dot_dimension_numbers<[1], [0], [0], [1], [0, 0, 1, 1], [], []>} : vector<16x4xbf16>, vector<4x56xbf16>, vector<16x56xf32> -> vector<16x56xf32>
    %44 = arith.truncf %43 : vector<16x56xf32> to vector<16x56xbf16>
    %cst_15 = arith.constant dense<0.000000e+00> : vector<32x56xf32>
    %45 = tpu.matmul %40, %44, %cst_15 {dimension_numbers = #tpu.dot_dimension_numbers<[1], [0], [0], [1], [0, 0, 1, 1], [], []>} : vector<32x16xbf16>, vector<16x56xbf16>, vector<32x56xf32> -> vector<32x56xf32>
    %c0_16 = arith.constant 0 : index
    %c0_17 = arith.constant 0 : index
    %46 = vector.load %arg4[%c0_16, %c0_17] : memref<96x128xf32, #tpu.memory_space<vmem>>, vector<1x56xf32>
    %47 = vector.broadcast %46 : vector<1x56xf32> to vector<32x56xf32>
    %48 = arith.addf %45, %47 : vector<32x56xf32>
    %cst_18 = arith.constant 0.000000e+00 : f32
    %49 = vector.broadcast %cst_18 : f32 to vector<32x56xf32>
    %50 = arith.maximumf %48, %49 : vector<32x56xf32>
    %51 = tpu.concatenate %50, %39 in 1 : vector<32x56xf32>, vector<32x8xf32> -> vector<32x64xf32>
    %c32 = arith.constant 32 : index
    %c0_19 = arith.constant 0 : index
    %52 = vector.load %arg5[%c32, %c0_19] : memref<464x128xbf16, #tpu.memory_space<vmem>>, vector<64x32xbf16>
    %c16 = arith.constant 16 : index
    %c0_20 = arith.constant 0 : index
    %53 = vector.load %arg3[%c16, %c0_20] : memref<2640x128xbf16, #tpu.memory_space<vmem>>, vector<64x64xbf16>
    %54 = arith.truncf %51 : vector<32x64xf32> to vector<32x64xbf16>
    %cst_21 = arith.constant dense<0.000000e+00> : vector<32x64xf32>
    %55 = tpu.matmul %54, %53, %cst_21 {dimension_numbers = #tpu.dot_dimension_numbers<[1], [0], [0], [1], [0, 0, 1, 1], [], []>} : vector<32x64xbf16>, vector<64x64xbf16>, vector<32x64xf32> -> vector<32x64xf32>
    %56 = arith.truncf %55 : vector<32x64xf32> to vector<32x64xbf16>
    %cst_22 = arith.constant dense<0.000000e+00> : vector<64x64xf32>
    %57 = tpu.matmul %52, %56, %cst_22 {dimension_numbers = #tpu.dot_dimension_numbers<[1], [0], [0], [1], [0, 0, 1, 1], [], []>} : vector<64x32xbf16>, vector<32x64xbf16>, vector<64x64xf32> -> vector<64x64xf32>
    %c8 = arith.constant 8 : index
    %c0_23 = arith.constant 0 : index
    %58 = vector.load %arg4[%c8, %c0_23] : memref<96x128xf32, #tpu.memory_space<vmem>>, vector<1x64xf32>
    %59 = vector.broadcast %58 : vector<1x64xf32> to vector<64x64xf32>
    %60 = arith.addf %57, %59 : vector<64x64xf32>
    %cst_24 = arith.constant 0.000000e+00 : f32
    %61 = vector.broadcast %cst_24 : f32 to vector<64x64xf32>
    %62 = arith.maximumf %60, %61 : vector<64x64xf32>
    %63 = arith.mulf %62, %62 : vector<64x64xf32>
    %64 = tpu.concatenate %62, %63 in 1 : vector<64x64xf32>, vector<64x64xf32> -> vector<64x128xf32>
    %cst_25 = arith.constant dense<0.000000e+00> : vector<128xf32>
    %65 = vector.multi_reduction <add>, %64, %cst_25 [0] : vector<64x128xf32> to vector<128xf32>
    %66 = vector.shape_cast %65 : vector<128xf32> to vector<1x128xf32>
    %cst_26 = arith.constant 1.562500e-02 : f32
    %67 = vector.broadcast %cst_26 : f32 to vector<1x128xf32>
    %68 = arith.mulf %66, %67 : vector<1x128xf32>
    %69 = vector.extract_strided_slice %68 {offsets = [0, 0], sizes = [1, 64], strides = [1, 1]} : vector<1x128xf32> to vector<1x64xf32>
    %70 = vector.extract_strided_slice %68 {offsets = [0, 64], sizes = [1, 64], strides = [1, 1]} : vector<1x128xf32> to vector<1x64xf32>
    %71 = arith.mulf %69, %69 : vector<1x64xf32>
    %72 = arith.subf %70, %71 : vector<1x64xf32>
    %cst_27 = arith.constant 0.000000e+00 : f32
    %73 = vector.broadcast %cst_27 : f32 to vector<1x64xf32>
    %74 = arith.maximumf %72, %73 : vector<1x64xf32>
    %75 = vector.broadcast %69 : vector<1x64xf32> to vector<64x64xf32>
    %76 = arith.subf %62, %75 : vector<64x64xf32>
    %cst_28 = arith.constant 9.99999974E-6 : f32
    %77 = vector.broadcast %cst_28 : f32 to vector<1x64xf32>
    %78 = arith.addf %74, %77 : vector<1x64xf32>
    %79 = math.rsqrt %78 : vector<1x64xf32>
    %80 = vector.broadcast %79 : vector<1x64xf32> to vector<64x64xf32>
    %81 = arith.mulf %76, %80 : vector<64x64xf32>
    %c256 = arith.constant 256 : index
    %c0_29 = arith.constant 0 : index
    %82 = vector.load %arg5[%c256, %c0_29] : memref<464x128xbf16, #tpu.memory_space<vmem>>, vector<32x64xbf16>
    %83 = arith.truncf %81 : vector<64x64xf32> to vector<64x64xbf16>
    %cst_30 = arith.constant dense<0.000000e+00> : vector<32x64xf32>
    %84 = tpu.matmul %82, %83, %cst_30 {dimension_numbers = #tpu.dot_dimension_numbers<[1], [0], [0], [1], [0, 0, 1, 1], [], []>} : vector<32x64xbf16>, vector<64x64xbf16>, vector<32x64xf32> -> vector<32x64xf32>
    %c176 = arith.constant 176 : index
    %c0_31 = arith.constant 0 : index
    %85 = vector.load %arg5[%c176, %c0_31] : memref<464x128xbf16, #tpu.memory_space<vmem>>, vector<32x32xbf16>
    %c80 = arith.constant 80 : index
    %c0_32 = arith.constant 0 : index
    %86 = vector.load %arg3[%c80, %c0_32] : memref<2640x128xbf16, #tpu.memory_space<vmem>>, vector<64x64xbf16>
    %87 = arith.truncf %84 : vector<32x64xf32> to vector<32x64xbf16>
    %cst_33 = arith.constant dense<0.000000e+00> : vector<32x64xf32>
    %88 = tpu.matmul %87, %86, %cst_33 {dimension_numbers = #tpu.dot_dimension_numbers<[1], [0], [0], [1], [0, 0, 1, 1], [], []>} : vector<32x64xbf16>, vector<64x64xbf16>, vector<32x64xf32> -> vector<32x64xf32>
    %89 = arith.truncf %88 : vector<32x64xf32> to vector<32x64xbf16>
    %cst_34 = arith.constant dense<0.000000e+00> : vector<32x64xf32>
    %90 = tpu.matmul %85, %89, %cst_34 {dimension_numbers = #tpu.dot_dimension_numbers<[1], [0], [0], [1], [0, 0, 1, 1], [], []>} : vector<32x32xbf16>, vector<32x64xbf16>, vector<32x64xf32> -> vector<32x64xf32>
    %c144 = arith.constant 144 : index
    %c0_35 = arith.constant 0 : index
    %91 = vector.load %arg3[%c144, %c0_35] : memref<2640x128xbf16, #tpu.memory_space<vmem>>, vector<64x64xbf16>
    %92 = arith.truncf %84 : vector<32x64xf32> to vector<32x64xbf16>
    %cst_36 = arith.constant dense<0.000000e+00> : vector<32x64xf32>
    %93 = tpu.matmul %92, %91, %cst_36 {dimension_numbers = #tpu.dot_dimension_numbers<[1], [0], [0], [1], [0, 0, 1, 1], [], []>} : vector<32x64xbf16>, vector<64x64xbf16>, vector<32x64xf32> -> vector<32x64xf32>
    %94 = arith.addf %90, %93 : vector<32x64xf32>
    %c16_37 = arith.constant 16 : index
    %c0_38 = arith.constant 0 : index
    %95 = vector.load %arg4[%c16_37, %c0_38] : memref<96x128xf32, #tpu.memory_space<vmem>>, vector<1x64xf32>
    %96 = vector.broadcast %95 : vector<1x64xf32> to vector<32x64xf32>
    %97 = arith.addf %94, %96 : vector<32x64xf32>
    %cst_39 = arith.constant 0.000000e+00 : f32
    %98 = vector.broadcast %cst_39 : f32 to vector<32x64xf32>
    %99 = arith.maximumf %97, %98 : vector<32x64xf32>
    %100 = arith.mulf %99, %99 : vector<32x64xf32>
    %101 = tpu.concatenate %99, %100 in 1 : vector<32x64xf32>, vector<32x64xf32> -> vector<32x128xf32>
    %cst_40 = arith.constant dense<0.000000e+00> : vector<128xf32>
    %102 = vector.multi_reduction <add>, %101, %cst_40 [0] : vector<32x128xf32> to vector<128xf32>
    %103 = vector.shape_cast %102 : vector<128xf32> to vector<1x128xf32>
    %cst_41 = arith.constant 3.125000e-02 : f32
    %104 = vector.broadcast %cst_41 : f32 to vector<1x128xf32>
    %105 = arith.mulf %103, %104 : vector<1x128xf32>
    %106 = vector.extract_strided_slice %105 {offsets = [0, 0], sizes = [1, 64], strides = [1, 1]} : vector<1x128xf32> to vector<1x64xf32>
    %107 = vector.extract_strided_slice %105 {offsets = [0, 64], sizes = [1, 64], strides = [1, 1]} : vector<1x128xf32> to vector<1x64xf32>
    %108 = arith.mulf %106, %106 : vector<1x64xf32>
    %109 = arith.subf %107, %108 : vector<1x64xf32>
    %cst_42 = arith.constant 0.000000e+00 : f32
    %110 = vector.broadcast %cst_42 : f32 to vector<1x64xf32>
    %111 = arith.maximumf %109, %110 : vector<1x64xf32>
    %112 = vector.broadcast %106 : vector<1x64xf32> to vector<32x64xf32>
    %113 = arith.subf %99, %112 : vector<32x64xf32>
    %cst_43 = arith.constant 9.99999974E-6 : f32
    %114 = vector.broadcast %cst_43 : f32 to vector<1x64xf32>
    %115 = arith.addf %111, %114 : vector<1x64xf32>
    %116 = math.rsqrt %115 : vector<1x64xf32>
    %117 = vector.broadcast %116 : vector<1x64xf32> to vector<32x64xf32>
    %118 = arith.mulf %113, %117 : vector<32x64xf32>
    %c288 = arith.constant 288 : index
    %c0_44 = arith.constant 0 : index
    %119 = vector.load %arg5[%c288, %c0_44] : memref<464x128xbf16, #tpu.memory_space<vmem>>, vector<16x32xbf16>
    %120 = arith.truncf %118 : vector<32x64xf32> to vector<32x64xbf16>
    %cst_45 = arith.constant dense<0.000000e+00> : vector<16x64xf32>
    %121 = tpu.matmul %119, %120, %cst_45 {dimension_numbers = #tpu.dot_dimension_numbers<[1], [0], [0], [1], [0, 0, 1, 1], [], []>} : vector<16x32xbf16>, vector<32x64xbf16>, vector<16x64xf32> -> vector<16x64xf32>
    %c208 = arith.constant 208 : index
    %c0_46 = arith.constant 0 : index
    %122 = vector.load %arg5[%c208, %c0_46] : memref<464x128xbf16, #tpu.memory_space<vmem>>, vector<16x16xbf16>
    %c208_47 = arith.constant 208 : index
    %c0_48 = arith.constant 0 : index
    %123 = vector.load %arg3[%c208_47, %c0_48] : memref<2640x128xbf16, #tpu.memory_space<vmem>>, vector<64x64xbf16>
    %124 = arith.truncf %121 : vector<16x64xf32> to vector<16x64xbf16>
    %cst_49 = arith.constant dense<0.000000e+00> : vector<16x64xf32>
    %125 = tpu.matmul %124, %123, %cst_49 {dimension_numbers = #tpu.dot_dimension_numbers<[1], [0], [0], [1], [0, 0, 1, 1], [], []>} : vector<16x64xbf16>, vector<64x64xbf16>, vector<16x64xf32> -> vector<16x64xf32>
    %126 = arith.truncf %125 : vector<16x64xf32> to vector<16x64xbf16>
    %cst_50 = arith.constant dense<0.000000e+00> : vector<16x64xf32>
    %127 = tpu.matmul %122, %126, %cst_50 {dimension_numbers = #tpu.dot_dimension_numbers<[1], [0], [0], [1], [0, 0, 1, 1], [], []>} : vector<16x16xbf16>, vector<16x64xbf16>, vector<16x64xf32> -> vector<16x64xf32>
    %c272 = arith.constant 272 : index
    %c0_51 = arith.constant 0 : index
    %128 = vector.load %arg3[%c272, %c0_51] : memref<2640x128xbf16, #tpu.memory_space<vmem>>, vector<64x64xbf16>
    %129 = arith.truncf %121 : vector<16x64xf32> to vector<16x64xbf16>
    %cst_52 = arith.constant dense<0.000000e+00> : vector<16x64xf32>
    %130 = tpu.matmul %129, %128, %cst_52 {dimension_numbers = #tpu.dot_dimension_numbers<[1], [0], [0], [1], [0, 0, 1, 1], [], []>} : vector<16x64xbf16>, vector<64x64xbf16>, vector<16x64xf32> -> vector<16x64xf32>
    %131 = arith.addf %127, %130 : vector<16x64xf32>
    %c24 = arith.constant 24 : index
    %c0_53 = arith.constant 0 : index
    %132 = vector.load %arg4[%c24, %c0_53] : memref<96x128xf32, #tpu.memory_space<vmem>>, vector<1x64xf32>
    %133 = vector.broadcast %132 : vector<1x64xf32> to vector<16x64xf32>
    %134 = arith.addf %131, %133 : vector<16x64xf32>
    %cst_54 = arith.constant 0.000000e+00 : f32
    %135 = vector.broadcast %cst_54 : f32 to vector<16x64xf32>
    %136 = arith.maximumf %134, %135 : vector<16x64xf32>
    %137 = arith.mulf %136, %136 : vector<16x64xf32>
    %138 = tpu.concatenate %136, %137 in 1 : vector<16x64xf32>, vector<16x64xf32> -> vector<16x128xf32>
    %cst_55 = arith.constant dense<0.000000e+00> : vector<128xf32>
    %139 = vector.multi_reduction <add>, %138, %cst_55 [0] : vector<16x128xf32> to vector<128xf32>
    %140 = vector.shape_cast %139 : vector<128xf32> to vector<1x128xf32>
    %cst_56 = arith.constant 6.250000e-02 : f32
    %141 = vector.broadcast %cst_56 : f32 to vector<1x128xf32>
    %142 = arith.mulf %140, %141 : vector<1x128xf32>
    %143 = vector.extract_strided_slice %142 {offsets = [0, 0], sizes = [1, 64], strides = [1, 1]} : vector<1x128xf32> to vector<1x64xf32>
    %144 = vector.extract_strided_slice %142 {offsets = [0, 64], sizes = [1, 64], strides = [1, 1]} : vector<1x128xf32> to vector<1x64xf32>
    %145 = arith.mulf %143, %143 : vector<1x64xf32>
    %146 = arith.subf %144, %145 : vector<1x64xf32>
    %cst_57 = arith.constant 0.000000e+00 : f32
    %147 = vector.broadcast %cst_57 : f32 to vector<1x64xf32>
    %148 = arith.maximumf %146, %147 : vector<1x64xf32>
    %149 = vector.broadcast %143 : vector<1x64xf32> to vector<16x64xf32>
    %150 = arith.subf %136, %149 : vector<16x64xf32>
    %cst_58 = arith.constant 9.99999974E-6 : f32
    %151 = vector.broadcast %cst_58 : f32 to vector<1x64xf32>
    %152 = arith.addf %148, %151 : vector<1x64xf32>
    %153 = math.rsqrt %152 : vector<1x64xf32>
    %154 = vector.broadcast %153 : vector<1x64xf32> to vector<16x64xf32>
    %155 = arith.mulf %150, %154 : vector<16x64xf32>
    %c304 = arith.constant 304 : index
    %c0_59 = arith.constant 0 : index
    %156 = vector.load %arg5[%c304, %c0_59] : memref<464x128xbf16, #tpu.memory_space<vmem>>, vector<8x16xbf16>
    %157 = arith.truncf %155 : vector<16x64xf32> to vector<16x64xbf16>
    %cst_60 = arith.constant dense<0.000000e+00> : vector<8x64xf32>
    %158 = tpu.matmul %156, %157, %cst_60 {dimension_numbers = #tpu.dot_dimension_numbers<[1], [0], [0], [1], [0, 0, 1, 1], [], []>} : vector<8x16xbf16>, vector<16x64xbf16>, vector<8x64xf32> -> vector<8x64xf32>
    %c224 = arith.constant 224 : index
    %c0_61 = arith.constant 0 : index
    %159 = vector.load %arg5[%c224, %c0_61] : memref<464x128xbf16, #tpu.memory_space<vmem>>, vector<8x8xbf16>
    %c336 = arith.constant 336 : index
    %c0_62 = arith.constant 0 : index
    %160 = vector.load %arg3[%c336, %c0_62] : memref<2640x128xbf16, #tpu.memory_space<vmem>>, vector<64x128xbf16>
    %161 = arith.truncf %158 : vector<8x64xf32> to vector<8x64xbf16>
    %cst_63 = arith.constant dense<0.000000e+00> : vector<8x128xf32>
    %162 = tpu.matmul %161, %160, %cst_63 {dimension_numbers = #tpu.dot_dimension_numbers<[1], [0], [0], [1], [0, 0, 1, 1], [], []>} : vector<8x64xbf16>, vector<64x128xbf16>, vector<8x128xf32> -> vector<8x128xf32>
    %163 = arith.truncf %162 : vector<8x128xf32> to vector<8x128xbf16>
    %cst_64 = arith.constant dense<0.000000e+00> : vector<8x128xf32>
    %164 = tpu.matmul %159, %163, %cst_64 {dimension_numbers = #tpu.dot_dimension_numbers<[1], [0], [0], [1], [0, 0, 1, 1], [], []>} : vector<8x8xbf16>, vector<8x128xbf16>, vector<8x128xf32> -> vector<8x128xf32>
    %c400 = arith.constant 400 : index
    %c0_65 = arith.constant 0 : index
    %165 = vector.load %arg3[%c400, %c0_65] : memref<2640x128xbf16, #tpu.memory_space<vmem>>, vector<64x128xbf16>
    %166 = arith.truncf %158 : vector<8x64xf32> to vector<8x64xbf16>
    %cst_66 = arith.constant dense<0.000000e+00> : vector<8x128xf32>
    %167 = tpu.matmul %166, %165, %cst_66 {dimension_numbers = #tpu.dot_dimension_numbers<[1], [0], [0], [1], [0, 0, 1, 1], [], []>} : vector<8x64xbf16>, vector<64x128xbf16>, vector<8x128xf32> -> vector<8x128xf32>
    %168 = arith.addf %164, %167 : vector<8x128xf32>
    %c32_67 = arith.constant 32 : index
    %c0_68 = arith.constant 0 : index
    %169 = vector.load %arg4[%c32_67, %c0_68] : memref<96x128xf32, #tpu.memory_space<vmem>>, vector<1x128xf32>
    %170 = vector.broadcast %169 : vector<1x128xf32> to vector<8x128xf32>
    %171 = arith.addf %168, %170 : vector<8x128xf32>
    %cst_69 = arith.constant 0.000000e+00 : f32
    %172 = vector.broadcast %cst_69 : f32 to vector<8x128xf32>
    %173 = arith.maximumf %171, %172 : vector<8x128xf32>
    %174 = arith.mulf %173, %173 : vector<8x128xf32>
    %175 = tpu.concatenate %173, %174 in 1 : vector<8x128xf32>, vector<8x128xf32> -> vector<8x256xf32>
    %cst_70 = arith.constant dense<0.000000e+00> : vector<256xf32>
    %176 = vector.multi_reduction <add>, %175, %cst_70 [0] : vector<8x256xf32> to vector<256xf32>
    %177 = vector.shape_cast %176 : vector<256xf32> to vector<1x256xf32>
    %cst_71 = arith.constant 1.250000e-01 : f32
    %178 = vector.broadcast %cst_71 : f32 to vector<1x256xf32>
    %179 = arith.mulf %177, %178 : vector<1x256xf32>
    %180 = vector.extract_strided_slice %179 {offsets = [0, 0], sizes = [1, 128], strides = [1, 1]} : vector<1x256xf32> to vector<1x128xf32>
    %181 = vector.extract_strided_slice %179 {offsets = [0, 128], sizes = [1, 128], strides = [1, 1]} : vector<1x256xf32> to vector<1x128xf32>
    %182 = arith.mulf %180, %180 : vector<1x128xf32>
    %183 = arith.subf %181, %182 : vector<1x128xf32>
    %cst_72 = arith.constant 0.000000e+00 : f32
    %184 = vector.broadcast %cst_72 : f32 to vector<1x128xf32>
    %185 = arith.maximumf %183, %184 : vector<1x128xf32>
    %186 = vector.broadcast %180 : vector<1x128xf32> to vector<8x128xf32>
    %187 = arith.subf %173, %186 : vector<8x128xf32>
    %cst_73 = arith.constant 9.99999974E-6 : f32
    %188 = vector.broadcast %cst_73 : f32 to vector<1x128xf32>
    %189 = arith.addf %185, %188 : vector<1x128xf32>
    %190 = math.rsqrt %189 : vector<1x128xf32>
    %191 = vector.broadcast %190 : vector<1x128xf32> to vector<8x128xf32>
    %192 = arith.mulf %187, %191 : vector<8x128xf32>
    %c320 = arith.constant 320 : index
    %c0_74 = arith.constant 0 : index
    %193 = vector.load %arg5[%c320, %c0_74] : memref<464x128xbf16, #tpu.memory_space<vmem>>, vector<8x8xbf16>
    %194 = arith.truncf %192 : vector<8x128xf32> to vector<8x128xbf16>
    %cst_75 = arith.constant dense<0.000000e+00> : vector<8x128xf32>
    %195 = tpu.matmul %193, %194, %cst_75 {dimension_numbers = #tpu.dot_dimension_numbers<[1], [0], [0], [1], [0, 0, 1, 1], [], []>} : vector<8x8xbf16>, vector<8x128xbf16>, vector<8x128xf32> -> vector<8x128xf32>
    %c240 = arith.constant 240 : index
    %c0_76 = arith.constant 0 : index
    %196 = vector.load %arg5[%c240, %c0_76] : memref<464x128xbf16, #tpu.memory_space<vmem>>, vector<8x8xbf16>
    %c464 = arith.constant 464 : index
    %c0_77 = arith.constant 0 : index
    %197 = vector.load %arg3[%c464, %c0_77] : memref<2640x128xbf16, #tpu.memory_space<vmem>>, vector<128x128xbf16>
    %198 = arith.truncf %195 : vector<8x128xf32> to vector<8x128xbf16>
    %cst_78 = arith.constant dense<0.000000e+00> : vector<8x128xf32>
    %199 = tpu.matmul %198, %197, %cst_78 {dimension_numbers = #tpu.dot_dimension_numbers<[1], [0], [0], [1], [0, 0, 1, 1], [], []>} : vector<8x128xbf16>, vector<128x128xbf16>, vector<8x128xf32> -> vector<8x128xf32>
    %200 = arith.truncf %199 : vector<8x128xf32> to vector<8x128xbf16>
    %cst_79 = arith.constant dense<0.000000e+00> : vector<8x128xf32>
    %201 = tpu.matmul %196, %200, %cst_79 {dimension_numbers = #tpu.dot_dimension_numbers<[1], [0], [0], [1], [0, 0, 1, 1], [], []>} : vector<8x8xbf16>, vector<8x128xbf16>, vector<8x128xf32> -> vector<8x128xf32>
    %c592 = arith.constant 592 : index
    %c0_80 = arith.constant 0 : index
    %202 = vector.load %arg3[%c592, %c0_80] : memref<2640x128xbf16, #tpu.memory_space<vmem>>, vector<128x128xbf16>
    %203 = arith.truncf %195 : vector<8x128xf32> to vector<8x128xbf16>
    %cst_81 = arith.constant dense<0.000000e+00> : vector<8x128xf32>
    %204 = tpu.matmul %203, %202, %cst_81 {dimension_numbers = #tpu.dot_dimension_numbers<[1], [0], [0], [1], [0, 0, 1, 1], [], []>} : vector<8x128xbf16>, vector<128x128xbf16>, vector<8x128xf32> -> vector<8x128xf32>
    %205 = arith.addf %201, %204 : vector<8x128xf32>
    %c40 = arith.constant 40 : index
    %c0_82 = arith.constant 0 : index
    %206 = vector.load %arg4[%c40, %c0_82] : memref<96x128xf32, #tpu.memory_space<vmem>>, vector<1x128xf32>
    %207 = vector.broadcast %206 : vector<1x128xf32> to vector<8x128xf32>
    %208 = arith.addf %205, %207 : vector<8x128xf32>
    %cst_83 = arith.constant 0.000000e+00 : f32
    %209 = vector.broadcast %cst_83 : f32 to vector<8x128xf32>
    %210 = arith.maximumf %208, %209 : vector<8x128xf32>
    %c240_84 = arith.constant 240 : index
    %c0_85 = arith.constant 0 : index
    %211 = vector.load %arg5[%c240_84, %c0_85] : memref<464x128xbf16, #tpu.memory_space<vmem>>, vector<8x8xbf16>
    %c720 = arith.constant 720 : index
    %c0_86 = arith.constant 0 : index
    %212 = vector.load %arg3[%c720, %c0_86] : memref<2640x128xbf16, #tpu.memory_space<vmem>>, vector<128x128xbf16>
    %213 = arith.truncf %210 : vector<8x128xf32> to vector<8x128xbf16>
    %cst_87 = arith.constant dense<0.000000e+00> : vector<8x128xf32>
    %214 = tpu.matmul %213, %212, %cst_87 {dimension_numbers = #tpu.dot_dimension_numbers<[1], [0], [0], [1], [0, 0, 1, 1], [], []>} : vector<8x128xbf16>, vector<128x128xbf16>, vector<8x128xf32> -> vector<8x128xf32>
    %215 = arith.truncf %214 : vector<8x128xf32> to vector<8x128xbf16>
    %cst_88 = arith.constant dense<0.000000e+00> : vector<8x128xf32>
    %216 = tpu.matmul %211, %215, %cst_88 {dimension_numbers = #tpu.dot_dimension_numbers<[1], [0], [0], [1], [0, 0, 1, 1], [], []>} : vector<8x8xbf16>, vector<8x128xbf16>, vector<8x128xf32> -> vector<8x128xf32>
    %c848 = arith.constant 848 : index
    %c0_89 = arith.constant 0 : index
    %217 = vector.load %arg3[%c848, %c0_89] : memref<2640x128xbf16, #tpu.memory_space<vmem>>, vector<128x128xbf16>
    %218 = arith.truncf %210 : vector<8x128xf32> to vector<8x128xbf16>
    %cst_90 = arith.constant dense<0.000000e+00> : vector<8x128xf32>
    %219 = tpu.matmul %218, %217, %cst_90 {dimension_numbers = #tpu.dot_dimension_numbers<[1], [0], [0], [1], [0, 0, 1, 1], [], []>} : vector<8x128xbf16>, vector<128x128xbf16>, vector<8x128xf32> -> vector<8x128xf32>
    %220 = arith.addf %216, %219 : vector<8x128xf32>
    %c48 = arith.constant 48 : index
    %c0_91 = arith.constant 0 : index
    %221 = vector.load %arg4[%c48, %c0_91] : memref<96x128xf32, #tpu.memory_space<vmem>>, vector<1x128xf32>
    %222 = vector.broadcast %221 : vector<1x128xf32> to vector<8x128xf32>
    %223 = arith.addf %220, %222 : vector<8x128xf32>
    %cst_92 = arith.constant 0.000000e+00 : f32
    %224 = vector.broadcast %cst_92 : f32 to vector<8x128xf32>
    %225 = arith.maximumf %223, %224 : vector<8x128xf32>
    %c448 = arith.constant 448 : index
    %c0_93 = arith.constant 0 : index
    %226 = vector.load %arg5[%c448, %c0_93] : memref<464x128xbf16, #tpu.memory_space<vmem>>, vector<8x8xbf16>
    %227 = arith.truncf %225 : vector<8x128xf32> to vector<8x128xbf16>
    %cst_94 = arith.constant dense<0.000000e+00> : vector<8x128xf32>
    %228 = tpu.matmul %226, %227, %cst_94 {dimension_numbers = #tpu.dot_dimension_numbers<[1], [0], [0], [1], [0, 0, 1, 1], [], []>} : vector<8x8xbf16>, vector<8x128xbf16>, vector<8x128xf32> -> vector<8x128xf32>
    %229 = arith.mulf %228, %228 : vector<8x128xf32>
    %230 = tpu.concatenate %228, %229 in 1 : vector<8x128xf32>, vector<8x128xf32> -> vector<8x256xf32>
    %cst_95 = arith.constant dense<0.000000e+00> : vector<256xf32>
    %231 = vector.multi_reduction <add>, %230, %cst_95 [0] : vector<8x256xf32> to vector<256xf32>
    %232 = vector.shape_cast %231 : vector<256xf32> to vector<1x256xf32>
    %cst_96 = arith.constant 1.250000e-01 : f32
    %233 = vector.broadcast %cst_96 : f32 to vector<1x256xf32>
    %234 = arith.mulf %232, %233 : vector<1x256xf32>
    %235 = vector.extract_strided_slice %234 {offsets = [0, 0], sizes = [1, 128], strides = [1, 1]} : vector<1x256xf32> to vector<1x128xf32>
    %236 = vector.extract_strided_slice %234 {offsets = [0, 128], sizes = [1, 128], strides = [1, 1]} : vector<1x256xf32> to vector<1x128xf32>
    %237 = arith.mulf %235, %235 : vector<1x128xf32>
    %238 = arith.subf %236, %237 : vector<1x128xf32>
    %cst_97 = arith.constant 0.000000e+00 : f32
    %239 = vector.broadcast %cst_97 : f32 to vector<1x128xf32>
    %240 = arith.maximumf %238, %239 : vector<1x128xf32>
    %241 = vector.broadcast %235 : vector<1x128xf32> to vector<8x128xf32>
    %242 = arith.subf %228, %241 : vector<8x128xf32>
    %cst_98 = arith.constant 9.99999974E-6 : f32
    %243 = vector.broadcast %cst_98 : f32 to vector<1x128xf32>
    %244 = arith.addf %240, %243 : vector<1x128xf32>
    %245 = math.rsqrt %244 : vector<1x128xf32>
    %246 = vector.broadcast %245 : vector<1x128xf32> to vector<8x128xf32>
    %247 = arith.mulf %242, %246 : vector<8x128xf32>
    %248 = tpu.concatenate %247, %192 in 1 : vector<8x128xf32>, vector<8x128xf32> -> vector<8x256xf32>
    %c224_99 = arith.constant 224 : index
    %c0_100 = arith.constant 0 : index
    %249 = vector.load %arg5[%c224_99, %c0_100] : memref<464x128xbf16, #tpu.memory_space<vmem>>, vector<8x8xbf16>
    %c976 = arith.constant 976 : index
    %c0_101 = arith.constant 0 : index
    %250 = vector.load %arg3[%c976, %c0_101] : memref<2640x128xbf16, #tpu.memory_space<vmem>>, vector<256x128xbf16>
    %251 = arith.truncf %248 : vector<8x256xf32> to vector<8x256xbf16>
    %cst_102 = arith.constant dense<0.000000e+00> : vector<8x128xf32>
    %252 = tpu.matmul %251, %250, %cst_102 {dimension_numbers = #tpu.dot_dimension_numbers<[1], [0], [0], [1], [0, 0, 1, 1], [], []>} : vector<8x256xbf16>, vector<256x128xbf16>, vector<8x128xf32> -> vector<8x128xf32>
    %253 = arith.truncf %252 : vector<8x128xf32> to vector<8x128xbf16>
    %cst_103 = arith.constant dense<0.000000e+00> : vector<8x128xf32>
    %254 = tpu.matmul %249, %253, %cst_103 {dimension_numbers = #tpu.dot_dimension_numbers<[1], [0], [0], [1], [0, 0, 1, 1], [], []>} : vector<8x8xbf16>, vector<8x128xbf16>, vector<8x128xf32> -> vector<8x128xf32>
    %c1232 = arith.constant 1232 : index
    %c0_104 = arith.constant 0 : index
    %255 = vector.load %arg3[%c1232, %c0_104] : memref<2640x128xbf16, #tpu.memory_space<vmem>>, vector<256x128xbf16>
    %256 = arith.truncf %248 : vector<8x256xf32> to vector<8x256xbf16>
    %cst_105 = arith.constant dense<0.000000e+00> : vector<8x128xf32>
    %257 = tpu.matmul %256, %255, %cst_105 {dimension_numbers = #tpu.dot_dimension_numbers<[1], [0], [0], [1], [0, 0, 1, 1], [], []>} : vector<8x256xbf16>, vector<256x128xbf16>, vector<8x128xf32> -> vector<8x128xf32>
    %258 = arith.addf %254, %257 : vector<8x128xf32>
    %c56 = arith.constant 56 : index
    %c0_106 = arith.constant 0 : index
    %259 = vector.load %arg4[%c56, %c0_106] : memref<96x128xf32, #tpu.memory_space<vmem>>, vector<1x128xf32>
    %260 = vector.broadcast %259 : vector<1x128xf32> to vector<8x128xf32>
    %261 = arith.addf %258, %260 : vector<8x128xf32>
    %cst_107 = arith.constant 0.000000e+00 : f32
    %262 = vector.broadcast %cst_107 : f32 to vector<8x128xf32>
    %263 = arith.maximumf %261, %262 : vector<8x128xf32>
    %c432 = arith.constant 432 : index
    %c0_108 = arith.constant 0 : index
    %264 = vector.load %arg5[%c432, %c0_108] : memref<464x128xbf16, #tpu.memory_space<vmem>>, vector<16x8xbf16>
    %265 = arith.truncf %263 : vector<8x128xf32> to vector<8x128xbf16>
    %cst_109 = arith.constant dense<0.000000e+00> : vector<16x128xf32>
    %266 = tpu.matmul %264, %265, %cst_109 {dimension_numbers = #tpu.dot_dimension_numbers<[1], [0], [0], [1], [0, 0, 1, 1], [], []>} : vector<16x8xbf16>, vector<8x128xbf16>, vector<16x128xf32> -> vector<16x128xf32>
    %267 = arith.mulf %266, %266 : vector<16x128xf32>
    %268 = tpu.concatenate %266, %267 in 1 : vector<16x128xf32>, vector<16x128xf32> -> vector<16x256xf32>
    %cst_110 = arith.constant dense<0.000000e+00> : vector<256xf32>
    %269 = vector.multi_reduction <add>, %268, %cst_110 [0] : vector<16x256xf32> to vector<256xf32>
    %270 = vector.shape_cast %269 : vector<256xf32> to vector<1x256xf32>
    %cst_111 = arith.constant 6.250000e-02 : f32
    %271 = vector.broadcast %cst_111 : f32 to vector<1x256xf32>
    %272 = arith.mulf %270, %271 : vector<1x256xf32>
    %273 = vector.extract_strided_slice %272 {offsets = [0, 0], sizes = [1, 128], strides = [1, 1]} : vector<1x256xf32> to vector<1x128xf32>
    %274 = vector.extract_strided_slice %272 {offsets = [0, 128], sizes = [1, 128], strides = [1, 1]} : vector<1x256xf32> to vector<1x128xf32>
    %275 = arith.mulf %273, %273 : vector<1x128xf32>
    %276 = arith.subf %274, %275 : vector<1x128xf32>
    %cst_112 = arith.constant 0.000000e+00 : f32
    %277 = vector.broadcast %cst_112 : f32 to vector<1x128xf32>
    %278 = arith.maximumf %276, %277 : vector<1x128xf32>
    %279 = vector.broadcast %273 : vector<1x128xf32> to vector<16x128xf32>
    %280 = arith.subf %266, %279 : vector<16x128xf32>
    %cst_113 = arith.constant 9.99999974E-6 : f32
    %281 = vector.broadcast %cst_113 : f32 to vector<1x128xf32>
    %282 = arith.addf %278, %281 : vector<1x128xf32>
    %283 = math.rsqrt %282 : vector<1x128xf32>
    %284 = vector.broadcast %283 : vector<1x128xf32> to vector<16x128xf32>
    %285 = arith.mulf %280, %284 : vector<16x128xf32>
    %286 = tpu.concatenate %285, %155 in 1 : vector<16x128xf32>, vector<16x64xf32> -> vector<16x192xf32>
    %c208_114 = arith.constant 208 : index
    %c0_115 = arith.constant 0 : index
    %287 = vector.load %arg5[%c208_114, %c0_115] : memref<464x128xbf16, #tpu.memory_space<vmem>>, vector<16x16xbf16>
    %c1488 = arith.constant 1488 : index
    %c0_116 = arith.constant 0 : index
    %288 = vector.load %arg3[%c1488, %c0_116] : memref<2640x128xbf16, #tpu.memory_space<vmem>>, vector<192x128xbf16>
    %289 = arith.truncf %286 : vector<16x192xf32> to vector<16x192xbf16>
    %cst_117 = arith.constant dense<0.000000e+00> : vector<16x128xf32>
    %290 = tpu.matmul %289, %288, %cst_117 {dimension_numbers = #tpu.dot_dimension_numbers<[1], [0], [0], [1], [0, 0, 1, 1], [], []>} : vector<16x192xbf16>, vector<192x128xbf16>, vector<16x128xf32> -> vector<16x128xf32>
    %291 = arith.truncf %290 : vector<16x128xf32> to vector<16x128xbf16>
    %cst_118 = arith.constant dense<0.000000e+00> : vector<16x128xf32>
    %292 = tpu.matmul %287, %291, %cst_118 {dimension_numbers = #tpu.dot_dimension_numbers<[1], [0], [0], [1], [0, 0, 1, 1], [], []>} : vector<16x16xbf16>, vector<16x128xbf16>, vector<16x128xf32> -> vector<16x128xf32>
    %c1680 = arith.constant 1680 : index
    %c0_119 = arith.constant 0 : index
    %293 = vector.load %arg3[%c1680, %c0_119] : memref<2640x128xbf16, #tpu.memory_space<vmem>>, vector<192x128xbf16>
    %294 = arith.truncf %286 : vector<16x192xf32> to vector<16x192xbf16>
    %cst_120 = arith.constant dense<0.000000e+00> : vector<16x128xf32>
    %295 = tpu.matmul %294, %293, %cst_120 {dimension_numbers = #tpu.dot_dimension_numbers<[1], [0], [0], [1], [0, 0, 1, 1], [], []>} : vector<16x192xbf16>, vector<192x128xbf16>, vector<16x128xf32> -> vector<16x128xf32>
    %296 = arith.addf %292, %295 : vector<16x128xf32>
    %c64 = arith.constant 64 : index
    %c0_121 = arith.constant 0 : index
    %297 = vector.load %arg4[%c64, %c0_121] : memref<96x128xf32, #tpu.memory_space<vmem>>, vector<1x128xf32>
    %298 = vector.broadcast %297 : vector<1x128xf32> to vector<16x128xf32>
    %299 = arith.addf %296, %298 : vector<16x128xf32>
    %cst_122 = arith.constant 0.000000e+00 : f32
    %300 = vector.broadcast %cst_122 : f32 to vector<16x128xf32>
    %301 = arith.maximumf %299, %300 : vector<16x128xf32>
    %c400_123 = arith.constant 400 : index
    %c0_124 = arith.constant 0 : index
    %302 = vector.load %arg5[%c400_123, %c0_124] : memref<464x128xbf16, #tpu.memory_space<vmem>>, vector<32x16xbf16>
    %303 = arith.truncf %301 : vector<16x128xf32> to vector<16x128xbf16>
    %cst_125 = arith.constant dense<0.000000e+00> : vector<32x128xf32>
    %304 = tpu.matmul %302, %303, %cst_125 {dimension_numbers = #tpu.dot_dimension_numbers<[1], [0], [0], [1], [0, 0, 1, 1], [], []>} : vector<32x16xbf16>, vector<16x128xbf16>, vector<32x128xf32> -> vector<32x128xf32>
    %305 = arith.mulf %304, %304 : vector<32x128xf32>
    %306 = tpu.concatenate %304, %305 in 1 : vector<32x128xf32>, vector<32x128xf32> -> vector<32x256xf32>
    %cst_126 = arith.constant dense<0.000000e+00> : vector<256xf32>
    %307 = vector.multi_reduction <add>, %306, %cst_126 [0] : vector<32x256xf32> to vector<256xf32>
    %308 = vector.shape_cast %307 : vector<256xf32> to vector<1x256xf32>
    %cst_127 = arith.constant 3.125000e-02 : f32
    %309 = vector.broadcast %cst_127 : f32 to vector<1x256xf32>
    %310 = arith.mulf %308, %309 : vector<1x256xf32>
    %311 = vector.extract_strided_slice %310 {offsets = [0, 0], sizes = [1, 128], strides = [1, 1]} : vector<1x256xf32> to vector<1x128xf32>
    %312 = vector.extract_strided_slice %310 {offsets = [0, 128], sizes = [1, 128], strides = [1, 1]} : vector<1x256xf32> to vector<1x128xf32>
    %313 = arith.mulf %311, %311 : vector<1x128xf32>
    %314 = arith.subf %312, %313 : vector<1x128xf32>
    %cst_128 = arith.constant 0.000000e+00 : f32
    %315 = vector.broadcast %cst_128 : f32 to vector<1x128xf32>
    %316 = arith.maximumf %314, %315 : vector<1x128xf32>
    %317 = vector.broadcast %311 : vector<1x128xf32> to vector<32x128xf32>
    %318 = arith.subf %304, %317 : vector<32x128xf32>
    %cst_129 = arith.constant 9.99999974E-6 : f32
    %319 = vector.broadcast %cst_129 : f32 to vector<1x128xf32>
    %320 = arith.addf %316, %319 : vector<1x128xf32>
    %321 = math.rsqrt %320 : vector<1x128xf32>
    %322 = vector.broadcast %321 : vector<1x128xf32> to vector<32x128xf32>
    %323 = arith.mulf %318, %322 : vector<32x128xf32>
    %324 = tpu.concatenate %323, %118 in 1 : vector<32x128xf32>, vector<32x64xf32> -> vector<32x192xf32>
    %c176_130 = arith.constant 176 : index
    %c0_131 = arith.constant 0 : index
    %325 = vector.load %arg5[%c176_130, %c0_131] : memref<464x128xbf16, #tpu.memory_space<vmem>>, vector<32x32xbf16>
    %c1872 = arith.constant 1872 : index
    %c0_132 = arith.constant 0 : index
    %326 = vector.load %arg3[%c1872, %c0_132] : memref<2640x128xbf16, #tpu.memory_space<vmem>>, vector<192x64xbf16>
    %327 = arith.truncf %324 : vector<32x192xf32> to vector<32x192xbf16>
    %cst_133 = arith.constant dense<0.000000e+00> : vector<32x64xf32>
    %328 = tpu.matmul %327, %326, %cst_133 {dimension_numbers = #tpu.dot_dimension_numbers<[1], [0], [0], [1], [0, 0, 1, 1], [], []>} : vector<32x192xbf16>, vector<192x64xbf16>, vector<32x64xf32> -> vector<32x64xf32>
    %329 = arith.truncf %328 : vector<32x64xf32> to vector<32x64xbf16>
    %cst_134 = arith.constant dense<0.000000e+00> : vector<32x64xf32>
    %330 = tpu.matmul %325, %329, %cst_134 {dimension_numbers = #tpu.dot_dimension_numbers<[1], [0], [0], [1], [0, 0, 1, 1], [], []>} : vector<32x32xbf16>, vector<32x64xbf16>, vector<32x64xf32> -> vector<32x64xf32>
    %c2064 = arith.constant 2064 : index
    %c0_135 = arith.constant 0 : index
    %331 = vector.load %arg3[%c2064, %c0_135] : memref<2640x128xbf16, #tpu.memory_space<vmem>>, vector<192x64xbf16>
    %332 = arith.truncf %324 : vector<32x192xf32> to vector<32x192xbf16>
    %cst_136 = arith.constant dense<0.000000e+00> : vector<32x64xf32>
    %333 = tpu.matmul %332, %331, %cst_136 {dimension_numbers = #tpu.dot_dimension_numbers<[1], [0], [0], [1], [0, 0, 1, 1], [], []>} : vector<32x192xbf16>, vector<192x64xbf16>, vector<32x64xf32> -> vector<32x64xf32>
    %334 = arith.addf %330, %333 : vector<32x64xf32>
    %c72 = arith.constant 72 : index
    %c0_137 = arith.constant 0 : index
    %335 = vector.load %arg4[%c72, %c0_137] : memref<96x128xf32, #tpu.memory_space<vmem>>, vector<1x64xf32>
    %336 = vector.broadcast %335 : vector<1x64xf32> to vector<32x64xf32>
    %337 = arith.addf %334, %336 : vector<32x64xf32>
    %cst_138 = arith.constant 0.000000e+00 : f32
    %338 = vector.broadcast %cst_138 : f32 to vector<32x64xf32>
    %339 = arith.maximumf %337, %338 : vector<32x64xf32>
    %c336_139 = arith.constant 336 : index
    %c0_140 = arith.constant 0 : index
    %340 = vector.load %arg5[%c336_139, %c0_140] : memref<464x128xbf16, #tpu.memory_space<vmem>>, vector<64x32xbf16>
    %341 = arith.truncf %339 : vector<32x64xf32> to vector<32x64xbf16>
    %cst_141 = arith.constant dense<0.000000e+00> : vector<64x64xf32>
    %342 = tpu.matmul %340, %341, %cst_141 {dimension_numbers = #tpu.dot_dimension_numbers<[1], [0], [0], [1], [0, 0, 1, 1], [], []>} : vector<64x32xbf16>, vector<32x64xbf16>, vector<64x64xf32> -> vector<64x64xf32>
    %343 = arith.mulf %342, %342 : vector<64x64xf32>
    %344 = tpu.concatenate %342, %343 in 1 : vector<64x64xf32>, vector<64x64xf32> -> vector<64x128xf32>
    %cst_142 = arith.constant dense<0.000000e+00> : vector<128xf32>
    %345 = vector.multi_reduction <add>, %344, %cst_142 [0] : vector<64x128xf32> to vector<128xf32>
    %346 = vector.shape_cast %345 : vector<128xf32> to vector<1x128xf32>
    %cst_143 = arith.constant 1.562500e-02 : f32
    %347 = vector.broadcast %cst_143 : f32 to vector<1x128xf32>
    %348 = arith.mulf %346, %347 : vector<1x128xf32>
    %349 = vector.extract_strided_slice %348 {offsets = [0, 0], sizes = [1, 64], strides = [1, 1]} : vector<1x128xf32> to vector<1x64xf32>
    %350 = vector.extract_strided_slice %348 {offsets = [0, 64], sizes = [1, 64], strides = [1, 1]} : vector<1x128xf32> to vector<1x64xf32>
    %351 = arith.mulf %349, %349 : vector<1x64xf32>
    %352 = arith.subf %350, %351 : vector<1x64xf32>
    %cst_144 = arith.constant 0.000000e+00 : f32
    %353 = vector.broadcast %cst_144 : f32 to vector<1x64xf32>
    %354 = arith.maximumf %352, %353 : vector<1x64xf32>
    %355 = vector.broadcast %349 : vector<1x64xf32> to vector<64x64xf32>
    %356 = arith.subf %342, %355 : vector<64x64xf32>
    %cst_145 = arith.constant 9.99999974E-6 : f32
    %357 = vector.broadcast %cst_145 : f32 to vector<1x64xf32>
    %358 = arith.addf %354, %357 : vector<1x64xf32>
    %359 = math.rsqrt %358 : vector<1x64xf32>
    %360 = vector.broadcast %359 : vector<1x64xf32> to vector<64x64xf32>
    %361 = arith.mulf %356, %360 : vector<64x64xf32>
    %362 = tpu.concatenate %361, %81 in 1 : vector<64x64xf32>, vector<64x64xf32> -> vector<64x128xf32>
    %c112 = arith.constant 112 : index
    %c0_146 = arith.constant 0 : index
    %363 = vector.load %arg5[%c112, %c0_146] : memref<464x128xbf16, #tpu.memory_space<vmem>>, vector<64x64xbf16>
    %c2256 = arith.constant 2256 : index
    %c0_147 = arith.constant 0 : index
    %364 = vector.load %arg3[%c2256, %c0_147] : memref<2640x128xbf16, #tpu.memory_space<vmem>>, vector<128x64xbf16>
    %365 = arith.truncf %362 : vector<64x128xf32> to vector<64x128xbf16>
    %cst_148 = arith.constant dense<0.000000e+00> : vector<64x64xf32>
    %366 = tpu.matmul %365, %364, %cst_148 {dimension_numbers = #tpu.dot_dimension_numbers<[1], [0], [0], [1], [0, 0, 1, 1], [], []>} : vector<64x128xbf16>, vector<128x64xbf16>, vector<64x64xf32> -> vector<64x64xf32>
    %367 = arith.truncf %366 : vector<64x64xf32> to vector<64x64xbf16>
    %cst_149 = arith.constant dense<0.000000e+00> : vector<64x64xf32>
    %368 = tpu.matmul %363, %367, %cst_149 {dimension_numbers = #tpu.dot_dimension_numbers<[1], [0], [0], [1], [0, 0, 1, 1], [], []>} : vector<64x64xbf16>, vector<64x64xbf16>, vector<64x64xf32> -> vector<64x64xf32>
    %c2384 = arith.constant 2384 : index
    %c0_150 = arith.constant 0 : index
    %369 = vector.load %arg3[%c2384, %c0_150] : memref<2640x128xbf16, #tpu.memory_space<vmem>>, vector<128x64xbf16>
    %370 = arith.truncf %362 : vector<64x128xf32> to vector<64x128xbf16>
    %cst_151 = arith.constant dense<0.000000e+00> : vector<64x64xf32>
    %371 = tpu.matmul %370, %369, %cst_151 {dimension_numbers = #tpu.dot_dimension_numbers<[1], [0], [0], [1], [0, 0, 1, 1], [], []>} : vector<64x128xbf16>, vector<128x64xbf16>, vector<64x64xf32> -> vector<64x64xf32>
    %372 = arith.addf %368, %371 : vector<64x64xf32>
    %c80_152 = arith.constant 80 : index
    %c0_153 = arith.constant 0 : index
    %373 = vector.load %arg4[%c80_152, %c0_153] : memref<96x128xf32, #tpu.memory_space<vmem>>, vector<1x64xf32>
    %374 = vector.broadcast %373 : vector<1x64xf32> to vector<64x64xf32>
    %375 = arith.addf %372, %374 : vector<64x64xf32>
    %cst_154 = arith.constant 0.000000e+00 : f32
    %376 = vector.broadcast %cst_154 : f32 to vector<64x64xf32>
    %377 = arith.maximumf %375, %376 : vector<64x64xf32>
    %c96 = arith.constant 96 : index
    %c0_155 = arith.constant 0 : index
    %378 = vector.load %arg5[%c96, %c0_155] : memref<464x128xbf16, #tpu.memory_space<vmem>>, vector<16x64xbf16>
    %c2512 = arith.constant 2512 : index
    %c0_156 = arith.constant 0 : index
    %379 = vector.load %arg3[%c2512, %c0_156] : memref<2640x128xbf16, #tpu.memory_space<vmem>>, vector<64x64xbf16>
    %380 = arith.truncf %377 : vector<64x64xf32> to vector<64x64xbf16>
    %cst_157 = arith.constant dense<0.000000e+00> : vector<64x64xf32>
    %381 = tpu.matmul %380, %379, %cst_157 {dimension_numbers = #tpu.dot_dimension_numbers<[1], [0], [0], [1], [0, 0, 1, 1], [], []>} : vector<64x64xbf16>, vector<64x64xbf16>, vector<64x64xf32> -> vector<64x64xf32>
    %382 = arith.truncf %381 : vector<64x64xf32> to vector<64x64xbf16>
    %cst_158 = arith.constant dense<0.000000e+00> : vector<16x64xf32>
    %383 = tpu.matmul %378, %382, %cst_158 {dimension_numbers = #tpu.dot_dimension_numbers<[1], [0], [0], [1], [0, 0, 1, 1], [], []>} : vector<16x64xbf16>, vector<64x64xbf16>, vector<16x64xf32> -> vector<16x64xf32>
    %c88 = arith.constant 88 : index
    %c0_159 = arith.constant 0 : index
    %384 = vector.load %arg4[%c88, %c0_159] : memref<96x128xf32, #tpu.memory_space<vmem>>, vector<1x64xf32>
    %385 = vector.broadcast %384 : vector<1x64xf32> to vector<16x64xf32>
    %386 = arith.addf %383, %385 : vector<16x64xf32>
    %cst_160 = arith.constant 0.000000e+00 : f32
    %387 = vector.broadcast %cst_160 : f32 to vector<16x64xf32>
    %388 = arith.maximumf %386, %387 : vector<16x64xf32>
    %389 = arith.mulf %388, %388 : vector<16x64xf32>
    %390 = tpu.concatenate %388, %389 in 1 : vector<16x64xf32>, vector<16x64xf32> -> vector<16x128xf32>
    %cst_161 = arith.constant dense<0.000000e+00> : vector<128xf32>
    %391 = vector.multi_reduction <add>, %390, %cst_161 [0] : vector<16x128xf32> to vector<128xf32>
    %392 = vector.shape_cast %391 : vector<128xf32> to vector<1x128xf32>
    %cst_162 = arith.constant 6.250000e-02 : f32
    %393 = vector.broadcast %cst_162 : f32 to vector<1x128xf32>
    %394 = arith.mulf %392, %393 : vector<1x128xf32>
    %395 = vector.extract_strided_slice %394 {offsets = [0, 0], sizes = [1, 64], strides = [1, 1]} : vector<1x128xf32> to vector<1x64xf32>
    %396 = vector.extract_strided_slice %394 {offsets = [0, 64], sizes = [1, 64], strides = [1, 1]} : vector<1x128xf32> to vector<1x64xf32>
    %397 = arith.mulf %395, %395 : vector<1x64xf32>
    %398 = arith.subf %396, %397 : vector<1x64xf32>
    %cst_163 = arith.constant 0.000000e+00 : f32
    %399 = vector.broadcast %cst_163 : f32 to vector<1x64xf32>
    %400 = arith.maximumf %398, %399 : vector<1x64xf32>
    %401 = vector.broadcast %395 : vector<1x64xf32> to vector<16x64xf32>
    %402 = arith.subf %388, %401 : vector<16x64xf32>
    %cst_164 = arith.constant 9.99999974E-6 : f32
    %403 = vector.broadcast %cst_164 : f32 to vector<1x64xf32>
    %404 = arith.addf %400, %403 : vector<1x64xf32>
    %405 = math.rsqrt %404 : vector<1x64xf32>
    %406 = vector.broadcast %405 : vector<1x64xf32> to vector<16x64xf32>
    %407 = arith.mulf %402, %406 : vector<16x64xf32>
    %c2576 = arith.constant 2576 : index
    %c0_165 = arith.constant 0 : index
    %408 = vector.load %arg3[%c2576, %c0_165] : memref<2640x128xbf16, #tpu.memory_space<vmem>>, vector<64x2xbf16>
    %409 = arith.truncf %407 : vector<16x64xf32> to vector<16x64xbf16>
    %cst_166 = arith.constant dense<0.000000e+00> : vector<16x2xf32>
    %410 = tpu.matmul %409, %408, %cst_166 {dimension_numbers = #tpu.dot_dimension_numbers<[1], [0], [0], [1], [0, 0, 1, 1], [], []>} : vector<16x64xbf16>, vector<64x2xbf16>, vector<16x2xf32> -> vector<16x2xf32>
    %c0_167 = arith.constant 0 : index
    %c0_168 = arith.constant 0 : index
    %411 = vector.load %arg6[%c0_167, %c0_168] : memref<16x2xf32, #tpu.memory_space<vmem>>, vector<16x2xf32>
    tpu.vector_store %arg6[%c0_167, %c0_168], %410 {strides = array<i32>} : memref<16x2xf32, #tpu.memory_space<vmem>>, vector<16x2xf32>,
    return
  }
  func.func @transform_0(%arg0: i32) -> (i32, i32) {
    %c0_i32 = arith.constant 0 : i32
    %c0_i32_0 = arith.constant 0 : i32
    %c0_i32_1 = arith.constant 0 : i32
    return %c0_i32, %c0_i32_0 : i32, i32
  }
  func.func @transform_1(%arg0: i32) -> (i32, i32) {
    %c0_i32 = arith.constant 0 : i32
    %c0_i32_0 = arith.constant 0 : i32
    %c0_i32_1 = arith.constant 0 : i32
    return %c0_i32, %c0_i32_0 : i32, i32
  }
  func.func @transform_2(%arg0: i32) -> (i32, i32) {
    %c0_i32 = arith.constant 0 : i32
    %c0_i32_0 = arith.constant 0 : i32
    %c0_i32_1 = arith.constant 0 : i32
    return %c0_i32, %c0_i32_0 : i32, i32
  }
  func.func @transform_3(%arg0: i32) -> (i32, i32) {
    %c0_i32 = arith.constant 0 : i32
    %c0_i32_0 = arith.constant 0 : i32
    %c0_i32_1 = arith.constant 0 : i32
    return %c0_i32, %c0_i32_0 : i32, i32
  }
  func.func @transform_4(%arg0: i32) -> (i32, i32) {
    %c0_i32 = arith.constant 0 : i32
    %c0_i32_0 = arith.constant 0 : i32
    %c0_i32_1 = arith.constant 0 : i32
    return %c0_i32, %c0_i32_0 : i32, i32
  }
  func.func @transform_5(%arg0: i32) -> (i32, i32) {
    %c0_i32 = arith.constant 0 : i32
    %c0_i32_0 = arith.constant 0 : i32
    %c0_i32_1 = arith.constant 0 : i32
    return %c0_i32, %c0_i32_0 : i32, i32
  }
}

</mosaic_0001>

<llo_original>
// kernel: tpu_custom_call.1
$region0: #{tpu_custom_call.1}
  #allocation0 [shape = 'u32[]', space=smem, size = 0x4, offset = 0x4, fixed_abs, tag = 'smem constant byte address 0x4 - core index']
  #allocation1 [shape = 'u32[144,128]{1,0:T(1,128)}', space=vmem, size = 0x12000, scoped, tag = 'internal scratch']
  %s0 = inlined_call_operand.vmem [shape: f32[16,4], index: 0, kind: input, shape index: {}]
  %s1 = inlined_call_operand.vmem [shape: f32[32,8], index: 1, kind: input, shape index: {}]
  %s2 = inlined_call_operand.hbm [shape: bf16[2640,128], index: 2, kind: input, shape index: {}]
  %s3 = inlined_call_operand.hbm [shape: f32[96,128], index: 3, kind: input, shape index: {}]
  %s4 = inlined_call_operand.hbm [shape: bf16[464,128], index: 4, kind: input, shape index: {}]
  %s5 = inlined_call_operand.vmem [shape: f32[16,2], index: 5, kind: output, shape index: {}]
  %s6 = sld [smem:[#allocation0]]
  $region42: #{tpu_custom_call.1} parent=0
    _
  %s8 = ssub.s32 1, %s6
  %s9 = scalar_select 0, %s8, %s6
  $region1: #{tpu_custom_call.1} parent=0
    #allocation2 [shape = 'u8[675840]{0}', space=vmem, size = 0xa5000, scoped, tag = 'input window, operand 2, single buffered']
    #allocation3 [shape = 's32[1]{0}', space=sflag, size = 0x4, scoped, tag = 'scoped memory for tpu_custom_call.1']
    #allocation4 [shape = 'u8[49152]{0}', space=vmem, size = 0xc000, scoped, tag = 'input window, operand 3, single buffered']
    #allocation5 [shape = 's32[1]{0}', space=sflag, size = 0x4, scoped, tag = 'scoped memory for tpu_custom_call.1']
    #allocation6 [shape = 'u8[118784]{0}', space=vmem, size = 0x1d000, scoped, tag = 'input window, operand 4, single buffered']
    %10 = vsyncpa [#allocation3], 0
    %11 = vsyncpa [#allocation5], 0
    // Predicated region
    $region2: #{tpu_custom_call.1} parent=1 // pred_check
      _
    $region3: #{tpu_custom_call.1} parent=1 // pred_check_branch
      %13 = sbr.rel (0) target = $region5
    $region4: #{tpu_custom_call.1} parent=1 // pred_region
      _
    $region5: #{tpu_custom_call.1} parent=1 // pred_fallthru
      _
    // Predicated region
    $region6: #{tpu_custom_call.1} parent=1 // pred_check
      _
    $region7: #{tpu_custom_call.1} parent=1 // pred_check_branch
      %15 = sbr.rel (0) target = $region9
    $region8: #{tpu_custom_call.1} parent=1 // pred_region
      _
    $region9: #{tpu_custom_call.1} parent=1 // pred_fallthru
      _
    // Predicated region
    $region10: #{tpu_custom_call.1} parent=1 // pred_check
      _
    $region11: #{tpu_custom_call.1} parent=1 // pred_check_branch
      %17 = sbr.rel (0) target = $region13
    $region12: #{tpu_custom_call.1} parent=1 // pred_region
      %s19 = ssub.s32 21120, 21120
      %20 = vsyncadd [#allocation3], %s19
      %s21 = sshll.u32 [#allocation2], 4
      %s22 = int_to_ptr.vmem [resolvable:$true] %s21
      %27 = dma.hbm_to_vmem [thread:$0]  %s2, 21120, %s22, [#allocation3], 64, 64, 4
    $region13: #{tpu_custom_call.1} parent=1 // pred_fallthru
      _
    // Predicated region
    $region14: #{tpu_custom_call.1} parent=1 // pred_check
      _
    $region15: #{tpu_custom_call.1} parent=1 // pred_check_branch
      %29 = sbr.rel (0) target = $region17
    $region16: #{tpu_custom_call.1} parent=1 // pred_region
      %s31 = ssub.s32 1536, 1536
      %32 = vsyncadd [#allocation5], %s31
      %s33 = sshll.u32 [#allocation4], 4
      %s34 = int_to_ptr.vmem [resolvable:$true] %s33
      %39 = dma.hbm_to_vmem [thread:$0]  %s3, 1536, %s34, [#allocation5], 128, 128, 8
    $region17: #{tpu_custom_call.1} parent=1 // pred_fallthru
      _
    // Predicated region
    $region18: #{tpu_custom_call.1} parent=1 // pred_check
      _
    $region19: #{tpu_custom_call.1} parent=1 // pred_check_branch
      %41 = sbr.rel (0) target = $region21
    $region20: #{tpu_custom_call.1} parent=1 // pred_region
      %s43 = ssub.s32 3712, 3712
      %44 = vsyncadd [#allocation5], %s43
      %s45 = sshll.u32 [#allocation6], 4
      %s46 = int_to_ptr.vmem [resolvable:$true] %s45
      %51 = dma.hbm_to_vmem [thread:$0]  %s4, 3712, %s46, [#allocation5], 64, 64, 4
    $region21: #{tpu_custom_call.1} parent=1 // pred_fallthru
      _
    // Predicated region
    $region22: #{tpu_custom_call.1} parent=1 // pred_check
      _
    $region23: #{tpu_custom_call.1} parent=1 // pred_check_branch
      %53 = sbr.rel (0) target = $region25
    $region24: #{tpu_custom_call.1} parent=1 // pred_region
      %54 = dma.done [#allocation3], 21120
    $region25: #{tpu_custom_call.1} parent=1 // pred_fallthru
      _
    // Predicated region
    $region26: #{tpu_custom_call.1} parent=1 // pred_check
      _
    $region27: #{tpu_custom_call.1} parent=1 // pred_check_branch
      %56 = sbr.rel (0) target = $region29
    $region28: #{tpu_custom_call.1} parent=1 // pred_region
      %57 = dma.done [#allocation5], 1536
    $region29: #{tpu_custom_call.1} parent=1 // pred_fallthru
      _
    // Predicated region
    $region30: #{tpu_custom_call.1} parent=1 // pred_check
      _
    $region31: #{tpu_custom_call.1} parent=1 // pred_check_branch
      %59 = sbr.rel (0) target = $region33
    $region32: #{tpu_custom_call.1} parent=1 // pred_region
      %60 = dma.done [#allocation5], 3712
    $region33: #{tpu_custom_call.1} parent=1 // pred_fallthru
      _
    %v62 = vld [vmem:[%s0] sm:$0xff]
    %v63 = vld [vmem:[%s0 + $0x8] sm:$0xff]
    %v64 = vmul.f32 %v62, %v62
    %v65 = vmul.f32 %v63, %v63
    %68 = vrot.lane.b32.xlu0 %v64, 4
    %v69 = vpop.permute.xlu0 %68
    %70 = vrot.lane.b32.xlu0 %v65, 4
    %v71 = vpop.permute.xlu0 %70
    %vm74 = vcmask 31744
    %v75 = vsel %vm74, %v62, %v69
    %v76 = vsel %vm74, %v63, %v71
    %vm77 = vcmask 64512
    %v78 = vsel %vm77, %v75, 0.0
    %v79 = vsel %vm77, %v76, 0.0
    %v80 = vadd.f32 %v78, %v79
    %v81 = vrot.slane %v80, 4
    %v82 = vadd.f32 %v80, %v81
    %v83 = vrot.slane %v82, 2
    %v84 = vadd.f32 %v82, %v83
    %v85 = vrot.slane %v84, 1
    %v86 = vadd.f32 %v84, %v85
    %v87 = vmul.f32 %v86, 0.0625
    %v88 = vmul.f32 %v87, %v87
    %90 = vrot.lane.b32.xlu0 %v88, 4
    %v91 = vpop.permute.xlu0 %90
    %v93 = vsub.f32 %v87, %v91
    %v94 = vmax.f32 %v93, 0.0
    %v95 = vsub.f32 %v62, %v87
    %v96 = vsub.f32 %v63, %v87
    %v97 = vadd.f32 %v94, 1e-05
    %v98 = vrsqrt.pop %v97
    %v99 = vlaneseq
    %v100 = vshrl.u32 %v99, 7
    %v101 = vsub.s32 0, %v100
    %v102 = vrot.slane %v98, %v101
    %104 = vrot.lane.b32.xlu0 %v102, 124
    %v105 = vpop.permute.xlu0 %104
    %v107 = vmul.f32 %v95, %v105
    %v108 = vmul.f32 %v96, %v105
    %v109 = vld [vmem:[%s1] sm:$0xff]
    %v110 = vld [vmem:[%s1 + $0x8] sm:$0xff]
    %v111 = vld [vmem:[%s1 + $0x10] sm:$0xff]
    %v112 = vld [vmem:[%s1 + $0x18] sm:$0xff]
    %v113 = vmul.f32 %v109, %v109
    %v114 = vmul.f32 %v110, %v110
    %v115 = vmul.f32 %v111, %v111
    %v116 = vmul.f32 %v112, %v112
    %121 = vrot.lane.b32.xlu0 %v113, 8
    %v122 = vpop.permute.xlu0 %121
    %123 = vrot.lane.b32.xlu0 %v114, 8
    %v124 = vpop.permute.xlu0 %123
    %125 = vrot.lane.b32.xlu0 %v115, 8
    %v126 = vpop.permute.xlu0 %125
    %127 = vrot.lane.b32.xlu0 %v116, 8
    %v128 = vpop.permute.xlu0 %127
    %v133 = vsel %vm77, %v109, %v122
    %v134 = vsel %vm77, %v110, %v124
    %v135 = vsel %vm77, %v111, %v126
    %v136 = vsel %vm77, %v112, %v128
    %vm137 = vcmask 130048
    %v138 = vsel %vm137, %v133, 0.0
    %v139 = vsel %vm137, %v134, 0.0
    %v140 = vadd.f32 %v138, %v139
    %v141 = vsel %vm137, %v135, 0.0
    %v142 = vadd.f32 %v140, %v141
    %v143 = vsel %vm137, %v136, 0.0
    %v144 = vadd.f32 %v142, %v143
    %v145 = vrot.slane %v144, 4
    %v146 = vadd.f32 %v144, %v145
    %v147 = vrot.slane %v146, 2
    %v148 = vadd.f32 %v146, %v147
    %v149 = vrot.slane %v148, 1
    %v150 = vadd.f32 %v148, %v149
    %v151 = vmul.f32 %v150, 0.03125
    %v152 = vmul.f32 %v151, %v151
    %154 = vrot.lane.b32.xlu0 %v152, 8
    %v155 = vpop.permute.xlu0 %154
    %v157 = vsub.f32 %v151, %v155
    %v158 = vmax.f32 %v157, 0.0
    %v159 = vsub.f32 %v109, %v151
    %v160 = vsub.f32 %v110, %v151
    %v161 = vsub.f32 %v111, %v151
    %v162 = vsub.f32 %v112, %v151
    %v163 = vadd.f32 %v158, 1e-05
    %v164 = vrsqrt.pop %v163
    %v165 = vlaneseq
    %v166 = vshrl.u32 %v165, 7
    %v167 = vsub.s32 0, %v166
    %v168 = vrot.slane %v164, %v167
    %170 = vrot.lane.b32.xlu0 %v168, 120
    %v171 = vpop.permute.xlu0 %170
    %v173 = vmul.f32 %v159, %v171
    %v174 = vmul.f32 %v160, %v171
    %v175 = vmul.f32 %v161, %v171
    %v176 = vmul.f32 %v162, %v171
    %v177 = vld [vmem:[#allocation6] sm:$0xf]
    %v178 = vld [vmem:[#allocation6 + $0x4] sm:$0xf]
    %v179 = vld [vmem:[#allocation6 + $0x8] sm:$0xf]
    %v180 = vld [vmem:[#allocation6 + $0xc] sm:$0xf]
    %v181 = vld [vmem:[#allocation2] sm:$0x3]
    %v182 = vpack.c.bf16 %v108, %v107
    %v184 = vsel %vm74, %v182, 0
    %vm186 = vcmask 1041408
    %v188 = vsel %vm186, %v181, 0
    %190 = vmatprep.subr.bf16.mxu0 0
    %191 = vmatpush1.bf16.msra.mxu0 %v188
    %192 = vmatprep.subr.bf16.mxu0 0
    %193 = vmatpush1.bf16.msra.mxu0 0
    %194 = vmatprep.subr.bf16.mxu0 0
    %195 = vmatpush1.bf16.msra.mxu0 0
    %196 = vmatprep.subr.bf16.mxu0 0
    %197 = vmatpush1.bf16.msra.mxu0 0
    %198 = vmatprep.subr.bf16.mxu0 0
    %199 = vmatpush1.bf16.msra.mxu0 0
    %200 = vmatprep.subr.bf16.mxu0 0
    %201 = vmatpush1.bf16.msra.mxu0 0
    %202 = vmatprep.subr.bf16.mxu0 0
    %203 = vmatpush1.bf16.msra.mxu0 0
    %204 = vmatprep.subr.bf16.mxu0 0
    %205 = vmatpush1.bf16.msra.mxu0 0
    %206 = vmatprep.subr.bf16.mxu0 0
    %207 = vmatpush1.bf16.msra.mxu0 0
    %208 = vmatprep.subr.bf16.mxu0 0
    %209 = vmatpush1.bf16.msra.mxu0 0
    %210 = vmatprep.subr.bf16.mxu0 0
    %211 = vmatpush1.bf16.msra.mxu0 0
    %212 = vmatprep.subr.bf16.mxu0 0
    %213 = vmatpush1.bf16.msra.mxu0 0
    %214 = vmatprep.subr.bf16.mxu0 0
    %215 = vmatpush1.bf16.msra.mxu0 0
    %216 = vmatprep.subr.bf16.mxu0 0
    %217 = vmatpush1.bf16.msra.mxu0 0
    %218 = vmatprep.subr.bf16.mxu0 0
    %219 = vmatpush1.bf16.msra.mxu0 0
    %220 = vmatprep.subr.bf16.mxu0 0
    %221 = vmatpush1.bf16.msra.mxu0 0
    %222 = vmatprep.mubr.bf16.mxu0 0
    %223 = vmatmul.mubr.bf16.gmra.mrb[0].mxu0 %v184
    %v224 = vpop.f32.mrb[0].mxu0
    %v225 = vadd.f32 0.0, %v224
    %v226 = vpop.f32.mrb[0].mxu0
    %v227 = vpop.f32.mrb[0].mxu0
    %v228 = vadd.f32 0.0, %v227
    %v229 = vpop.f32.mrb[0].mxu0
    %230 = vdwg.mxu0
    %v231 = vpack.c.bf16 %v228, %v225
    %v232 = vld [vmem:[#allocation4] sm:$0x1]
    %v233 = vlaneseq
    %v234 = vshrl.u32 %v233, 7
    %v235 = vsub.s32 0, %v234
    %v236 = vrot.slane %v232, %v235
    %v241 = vunpack.c.l.b16 %v177
    %v242 = vunpack.c.l.b16 %v178
    %v243 = vunpack.c.l.b16 %v179
    %v244 = vunpack.c.l.b16 %v180
    %v245 = vpack.c.b16 %v242, %v241
    %v246 = vpack.c.b16 %v244, %v243
    %v248 = vsel %vm137, %v245, 0
    %v251 = vsel %vm137, %v246, 0
    %253 = vmatprep.subr.bf16.mxu0 0
    %254 = vmatpush1.bf16.msra.mxu0 %v231
    %255 = vmatprep.subr.bf16.mxu0 0
    %256 = vmatpush1.bf16.msra.mxu0 0
    %257 = vmatprep.subr.bf16.mxu0 0
    %258 = vmatpush1.bf16.msra.mxu0 0
    %259 = vmatprep.subr.bf16.mxu0 0
    %260 = vmatpush1.bf16.msra.mxu0 0
    %261 = vmatprep.subr.bf16.mxu0 0
    %262 = vmatpush1.bf16.msra.mxu0 0
    %263 = vmatprep.subr.bf16.mxu0 0
    %264 = vmatpush1.bf16.msra.mxu0 0
    %265 = vmatprep.subr.bf16.mxu0 0
    %266 = vmatpush1.bf16.msra.mxu0 0
    %267 = vmatprep.subr.bf16.mxu0 0
    %268 = vmatpush1.bf16.msra.mxu0 0
    %269 = vmatprep.subr.bf16.mxu0 0
    %270 = vmatpush1.bf16.msra.mxu0 0
    %271 = vmatprep.subr.bf16.mxu0 0
    %272 = vmatpush1.bf16.msra.mxu0 0
    %273 = vmatprep.subr.bf16.mxu0 0
    %274 = vmatpush1.bf16.msra.mxu0 0
    %275 = vmatprep.subr.bf16.mxu0 0
    %276 = vmatpush1.bf16.msra.mxu0 0
    %277 = vmatprep.subr.bf16.mxu0 0
    %278 = vmatpush1.bf16.msra.mxu0 0
    %279 = vmatprep.subr.bf16.mxu0 0
    %280 = vmatpush1.bf16.msra.mxu0 0
    %281 = vmatprep.subr.bf16.mxu0 0
    %282 = vmatpush1.bf16.msra.mxu0 0
    %283 = vmatprep.subr.bf16.mxu0 0
    %284 = vmatpush1.bf16.msra.mxu0 0
    %285 = vmatprep.mubr.bf16.mxu0 0
    %286 = vmatmul.mubr.bf16.gmra.mrb[0].mxu0 %v248
    %v287 = vpop.f32.mrb[0].mxu0
    %v288 = vadd.f32 %v236, %v287
    %v289 = vpop.f32.mrb[0].mxu0
    %v290 = vpop.f32.mrb[0].mxu0
    %v291 = vadd.f32 %v236, %v290
    %v292 = vpop.f32.mrb[0].mxu0
    %293 = vmatprep.mubr.bf16.mxu0 0
    %294 = vmatmul.mubr.bf16.gmra.mrb[0].mxu0 %v251
    %v295 = vpop.f32.mrb[0].mxu0
    %v296 = vadd.f32 %v236, %v295
    %v297 = vpop.f32.mrb[0].mxu0
    %v298 = vpop.f32.mrb[0].mxu0
    %v299 = vadd.f32 %v236, %v298
    %v300 = vpop.f32.mrb[0].mxu0
    %301 = vdwg.mxu0
    %v302 = vmax.f32 %v288, 0.0
    %v303 = vmax.f32 %v291, 0.0
    %v304 = vmax.f32 %v296, 0.0
    %v305 = vmax.f32 %v299, 0.0
    %310 = vrot.lane.b32.xlu0 %v173, 56
    %v311 = vpop.permute.xlu0 %310
    %312 = vrot.lane.b32.xlu0 %v174, 56
    %v313 = vpop.permute.xlu0 %312
    %314 = vrot.lane.b32.xlu0 %v175, 56
    %v315 = vpop.permute.xlu0 %314
    %316 = vrot.lane.b32.xlu0 %v176, 56
    %v317 = vpop.permute.xlu0 %316
    %vm322 = vcmask 457728
    %v323 = vsel %vm322, %v302, %v311
    %v324 = vsel %vm322, %v303, %v313
    %v325 = vsel %vm322, %v304, %v315
    %v326 = vsel %vm322, %v305, %v317
    %v327 = vld [vmem:[#allocation6 + $0x10] sm:$0xf]
    %v328 = vld [vmem:[#allocation6 + $0x14] sm:$0xf]
    %v329 = vld [vmem:[#allocation6 + $0x18] sm:$0xf]
    %v330 = vld [vmem:[#allocation6 + $0x1c] sm:$0xf]
    %v331 = vld [vmem:[#allocation6 + $0x20] sm:$0xf]
    %v332 = vld [vmem:[#allocation6 + $0x24] sm:$0xf]
    %v333 = vld [vmem:[#allocation6 + $0x28] sm:$0xf]
    %v334 = vld [vmem:[#allocation6 + $0x2c] sm:$0xf]
    %v335 = vld [vmem:[#allocation2 + $0x8] sm:$0xf]
    %v336 = vld [vmem:[#allocation2 + $0xc] sm:$0xf]
    %v337 = vld [vmem:[#allocation2 + $0x10] sm:$0xf]
    %v338 = vld [vmem:[#allocation2 + $0x14] sm:$0xf]
    %v339 = vld [vmem:[#allocation2 + $0x18] sm:$0xf]
    %v340 = vld [vmem:[#allocation2 + $0x1c] sm:$0xf]
    %v341 = vld [vmem:[#allocation2 + $0x20] sm:$0xf]
    %v342 = vld [vmem:[#allocation2 + $0x24] sm:$0xf]
    %v343 = vpack.c.bf16 %v324, %v323
    %v344 = vpack.c.bf16 %v326, %v325
    %v353 = vunpack.c.l.b16 %v335
    %v354 = vunpack.c.l.b16 %v336
    %v355 = vunpack.c.l.b16 %v337
    %v356 = vunpack.c.l.b16 %v338
    %v357 = vunpack.c.l.b16 %v339
    %v358 = vunpack.c.l.b16 %v340
    %v359 = vunpack.c.l.b16 %v341
    %v360 = vunpack.c.l.b16 %v342
    %v361 = vpack.c.b16 %v354, %v353
    %v362 = vpack.c.b16 %v356, %v355
    %v363 = vpack.c.b16 %v358, %v357
    %v364 = vpack.c.b16 %v360, %v359
    %vm369 = vcmask 523264
    %v371 = vsel %vm369, %v343, 0
    %v374 = vsel %vm369, %v344, 0
    %376 = vmatprep.subr.bf16.mxu0 0
    %377 = vmatpush1.bf16.msra.mxu0 %v361
    %378 = vmatprep.subr.bf16.mxu0 0
    %379 = vmatpush1.bf16.msra.mxu0 %v362
    %380 = vmatprep.subr.bf16.mxu0 0
    %381 = vmatpush1.bf16.msra.mxu0 %v363
    %382 = vmatprep.subr.bf16.mxu0 0
    %383 = vmatpush1.bf16.msra.mxu0 %v364
    %384 = vmatprep.subr.bf16.mxu0 0
    %385 = vmatpush1.bf16.msra.mxu0 0
    %386 = vmatprep.subr.bf16.mxu0 0
    %387 = vmatpush1.bf16.msra.mxu0 0
    %388 = vmatprep.subr.bf16.mxu0 0
    %389 = vmatpush1.bf16.msra.mxu0 0
    %390 = vmatprep.subr.bf16.mxu0 0
    %391 = vmatpush1.bf16.msra.mxu0 0
    %392 = vmatprep.subr.bf16.mxu0 0
    %393 = vmatpush1.bf16.msra.mxu0 0
    %394 = vmatprep.subr.bf16.mxu0 0
    %395 = vmatpush1.bf16.msra.mxu0 0
    %396 = vmatprep.subr.bf16.mxu0 0
    %397 = vmatpush1.bf16.msra.mxu0 0
    %398 = vmatprep.subr.bf16.mxu0 0
    %399 = vmatpush1.bf16.msra.mxu0 0
    %400 = vmatprep.subr.bf16.mxu0 0
    %401 = vmatpush1.bf16.msra.mxu0 0
    %402 = vmatprep.subr.bf16.mxu0 0
    %403 = vmatpush1.bf16.msra.mxu0 0
    %404 = vmatprep.subr.bf16.mxu0 0
    %405 = vmatpush1.bf16.msra.mxu0 0
    %406 = vmatprep.subr.bf16.mxu0 0
    %407 = vmatpush1.bf16.msra.mxu0 0
    %408 = vmatprep.mubr.bf16.mxu0 0
    %409 = vmatmul.mubr.bf16.gmra.mrb[0].mxu0 %v371
    %v410 = vpop.f32.mrb[0].mxu0
    %v411 = vadd.f32 0.0, %v410
    %v412 = vpop.f32.mrb[0].mxu0
    %v413 = vpop.f32.mrb[0].mxu0
    %v414 = vadd.f32 0.0, %v413
    %v415 = vpop.f32.mrb[0].mxu0
    %416 = vmatprep.mubr.bf16.mxu0 0
    %417 = vmatmul.mubr.bf16.gmra.mrb[0].mxu0 %v374
    %v418 = vpop.f32.mrb[0].mxu0
    %v419 = vadd.f32 0.0, %v418
    %v420 = vpop.f32.mrb[0].mxu0
    %v421 = vpop.f32.mrb[0].mxu0
    %v422 = vadd.f32 0.0, %v421
    %v423 = vpop.f32.mrb[0].mxu0
    %424 = vdwg.mxu0
    %v425 = vpack.c.bf16 %v414, %v411
    %v426 = vpack.c.bf16 %v422, %v419
    %v427 = vld [vmem:[#allocation4 + $0x8] sm:$0x1]
    %v428 = vlaneseq
    %v429 = vshrl.u32 %v428, 7
    %v430 = vsub.s32 0, %v429
    %v431 = vrot.slane %v427, %v430
    %v440 = vunpack.c.l.b16 %v327
    %v441 = vunpack.c.l.b16 %v328
    %v442 = vunpack.c.l.b16 %v329
    %v443 = vunpack.c.l.b16 %v330
    %v444 = vunpack.c.l.b16 %v331
    %v445 = vunpack.c.l.b16 %v332
    %v446 = vunpack.c.l.b16 %v333
    %v447 = vunpack.c.l.b16 %v334
    %v448 = vpack.c.b16 %v441, %v440
    %v449 = vpack.c.b16 %v443, %v442
    %v450 = vpack.c.b16 %v445, %v444
    %v451 = vpack.c.b16 %v447, %v446
    %vm452 = vcmask 261120
    %v454 = vsel %vm452, %v448, 0
    %v457 = vsel %vm452, %v449, 0
    %v460 = vsel %vm452, %v450, 0
    %v463 = vsel %vm452, %v451, 0
    %465 = vmatprep.subr.bf16.mxu0 0
    %466 = vmatpush1.bf16.msra.mxu0 %v425
    %467 = vmatprep.subr.bf16.mxu0 0
    %468 = vmatpush1.bf16.msra.mxu0 %v426
    %469 = vmatprep.subr.bf16.mxu0 0
    %470 = vmatpush1.bf16.msra.mxu0 0
    %471 = vmatprep.subr.bf16.mxu0 0
    %472 = vmatpush1.bf16.msra.mxu0 0
    %473 = vmatprep.subr.bf16.mxu0 0
    %474 = vmatpush1.bf16.msra.mxu0 0
    %475 = vmatprep.subr.bf16.mxu0 0
    %476 = vmatpush1.bf16.msra.mxu0 0
    %477 = vmatprep.subr.bf16.mxu0 0
    %478 = vmatpush1.bf16.msra.mxu0 0
    %479 = vmatprep.subr.bf16.mxu0 0
    %480 = vmatpush1.bf16.msra.mxu0 0
    %481 = vmatprep.subr.bf16.mxu0 0
    %482 = vmatpush1.bf16.msra.mxu0 0
    %483 = vmatprep.subr.bf16.mxu0 0
    %484 = vmatpush1.bf16.msra.mxu0 0
    %485 = vmatprep.subr.bf16.mxu0 0
    %486 = vmatpush1.bf16.msra.mxu0 0
    %487 = vmatprep.subr.bf16.mxu0 0
    %488 = vmatpush1.bf16.msra.mxu0 0
    %489 = vmatprep.subr.bf16.mxu0 0
    %490 = vmatpush1.bf16.msra.mxu0 0
    %491 = vmatprep.subr.bf16.mxu0 0
    %492 = vmatpush1.bf16.msra.mxu0 0
    %493 = vmatprep.subr.bf16.mxu0 0
    %494 = vmatpush1.bf16.msra.mxu0 0
    %495 = vmatprep.subr.bf16.mxu0 0
    %496 = vmatpush1.bf16.msra.mxu0 0
    %497 = vmatprep.mubr.bf16.mxu0 0
    %498 = vmatmul.mubr.bf16.gmra.mrb[0].mxu0 %v454
    %v499 = vpop.f32.mrb[0].mxu0
    %v500 = vadd.f32 %v431, %v499
    %v501 = vpop.f32.mrb[0].mxu0
    %v502 = vpop.f32.mrb[0].mxu0
    %v503 = vadd.f32 %v431, %v502
    %v504 = vpop.f32.mrb[0].mxu0
    %505 = vmatprep.mubr.bf16.mxu0 0
    %506 = vmatmul.mubr.bf16.gmra.mrb[0].mxu0 %v457
    %v507 = vpop.f32.mrb[0].mxu0
    %v508 = vadd.f32 %v431, %v507
    %v509 = vpop.f32.mrb[0].mxu0
    %v510 = vpop.f32.mrb[0].mxu0
    %v511 = vadd.f32 %v431, %v510
    %v512 = vpop.f32.mrb[0].mxu0
    %513 = vmatprep.mubr.bf16.mxu0 0
    %514 = vmatmul.mubr.bf16.gmra.mrb[0].mxu0 %v460
    %v515 = vpop.f32.mrb[0].mxu0
    %v516 = vadd.f32 %v431, %v515
    %v517 = vpop.f32.mrb[0].mxu0
    %v518 = vpop.f32.mrb[0].mxu0
    %v519 = vadd.f32 %v431, %v518
    %v520 = vpop.f32.mrb[0].mxu0
    %521 = vmatprep.mubr.bf16.mxu0 0
    %522 = vmatmul.mubr.bf16.gmra.mrb[0].mxu0 %v463
    %v523 = vpop.f32.mrb[0].mxu0
    %v524 = vadd.f32 %v431, %v523
    %v525 = vpop.f32.mrb[0].mxu0
    %v526 = vpop.f32.mrb[0].mxu0
    %v527 = vadd.f32 %v431, %v526
    %v528 = vpop.f32.mrb[0].mxu0
    %529 = vdwg.mxu0
    %v530 = vmax.f32 %v500, 0.0
    %v531 = vmax.f32 %v503, 0.0
    %v532 = vmax.f32 %v508, 0.0
    %v533 = vmax.f32 %v511, 0.0
    %v534 = vmax.f32 %v516, 0.0
    %v535 = vmax.f32 %v519, 0.0
    %v536 = vmax.f32 %v524, 0.0
    %v537 = vmax.f32 %v527, 0.0
    %v538 = vmul.f32 %v530, %v530
    %v539 = vmul.f32 %v531, %v531
    %v540 = vmul.f32 %v532, %v532
    %v541 = vmul.f32 %v533, %v533
    %v542 = vmul.f32 %v534, %v534
    %v543 = vmul.f32 %v535, %v535
    %v544 = vmul.f32 %v536, %v536
    %v545 = vmul.f32 %v537, %v537
    %554 = vrot.lane.b32.xlu0 %v538, 64
    %v555 = vpop.permute.xlu0 %554
    %556 = vrot.lane.b32.xlu0 %v539, 64
    %v557 = vpop.permute.xlu0 %556
    %558 = vrot.lane.b32.xlu0 %v540, 64
    %v559 = vpop.permute.xlu0 %558
    %560 = vrot.lane.b32.xlu0 %v541, 64
    %v561 = vpop.permute.xlu0 %560
    %562 = vrot.lane.b32.xlu0 %v542, 64
    %v563 = vpop.permute.xlu0 %562
    %564 = vrot.lane.b32.xlu0 %v543, 64
    %v565 = vpop.permute.xlu0 %564
    %566 = vrot.lane.b32.xlu0 %v544, 64
    %v567 = vpop.permute.xlu0 %566
    %568 = vrot.lane.b32.xlu0 %v545, 64
    %v569 = vpop.permute.xlu0 %568
    %v578 = vsel %vm369, %v530, %v555
    %v579 = vsel %vm369, %v531, %v557
    %v580 = vsel %vm369, %v532, %v559
    %v581 = vsel %vm369, %v533, %v561
    %v582 = vsel %vm369, %v534, %v563
    %v583 = vsel %vm369, %v535, %v565
    %v584 = vsel %vm369, %v536, %v567
    %v585 = vsel %vm369, %v537, %v569
    %v586 = vadd.f32 %v578, %v579
    %v587 = vadd.f32 %v586, %v580
    %v588 = vadd.f32 %v587, %v581
    %v589 = vadd.f32 %v588, %v582
    %v590 = vadd.f32 %v589, %v583
    %v591 = vadd.f32 %v590, %v584
    %v592 = vadd.f32 %v591, %v585
    %v593 = vrot.slane %v592, 4
    %v594 = vadd.f32 %v592, %v593
    %v595 = vrot.slane %v594, 2
    %v596 = vadd.f32 %v594, %v595
    %v597 = vrot.slane %v596, 1
    %v598 = vadd.f32 %v596, %v597
    %v599 = vmul.f32 %v598, 0.015625
    %v600 = vmul.f32 %v599, %v599
    %602 = vrot.lane.b32.xlu0 %v600, 64
    %v603 = vpop.permute.xlu0 %602
    %v605 = vsub.f32 %v599, %v603
    %v606 = vmax.f32 %v605, 0.0
    %v607 = vsub.f32 %v530, %v599
    %v608 = vsub.f32 %v531, %v599
    %v609 = vsub.f32 %v532, %v599
    %v610 = vsub.f32 %v533, %v599
    %v611 = vsub.f32 %v534, %v599
    %v612 = vsub.f32 %v535, %v599
    %v613 = vsub.f32 %v536, %v599
    %v614 = vsub.f32 %v537, %v599
    %v615 = vadd.f32 %v606, 1e-05
    %v616 = vrsqrt.pop %v615
    %v617 = vlaneseq
    %v618 = vshrl.u32 %v617, 7
    %v619 = vsub.s32 0, %v618
    %v620 = vrot.slane %v616, %v619
    %622 = vrot.lane.b32.xlu0 %v620, 64
    %v623 = vpop.permute.xlu0 %622
    %v625 = vmul.f32 %v607, %v623
    %v626 = vmul.f32 %v608, %v623
    %v627 = vmul.f32 %v609, %v623
    %v628 = vmul.f32 %v610, %v623
    %v629 = vmul.f32 %v611, %v623
    %v630 = vmul.f32 %v612, %v623
    %v631 = vmul.f32 %v613, %v623
    %v632 = vmul.f32 %v614, %v623
    %v633 = vld [vmem:[#allocation6 + $0x80] sm:$0xf]
    %v634 = vld [vmem:[#allocation6 + $0x84] sm:$0xf]
    %v635 = vld [vmem:[#allocation6 + $0x88] sm:$0xf]
    %v636 = vld [vmem:[#allocation6 + $0x8c] sm:$0xf]
    %v637 = vpack.c.bf16 %v626, %v625
    %v638 = vpack.c.bf16 %v628, %v627
    %v639 = vpack.c.bf16 %v630, %v629
    %v640 = vpack.c.bf16 %v632, %v631
    %v645 = vunpack.c.l.b16 %v633
    %v646 = vunpack.c.l.b16 %v634
    %v647 = vunpack.c.l.b16 %v635
    %v648 = vunpack.c.l.b16 %v636
    %v649 = vpack.c.b16 %v646, %v645
    %v650 = vpack.c.b16 %v648, %v647
    %v652 = vsel %vm369, %v649, 0
    %v655 = vsel %vm369, %v650, 0
    %657 = vmatprep.subr.bf16.mxu0 0
    %658 = vmatpush1.bf16.msra.mxu0 %v637
    %659 = vmatprep.subr.bf16.mxu0 0
    %660 = vmatpush1.bf16.msra.mxu0 %v638
    %661 = vmatprep.subr.bf16.mxu0 0
    %662 = vmatpush1.bf16.msra.mxu0 %v639
    %663 = vmatprep.subr.bf16.mxu0 0
    %664 = vmatpush1.bf16.msra.mxu0 %v640
    %665 = vmatprep.subr.bf16.mxu0 0
    %666 = vmatpush1.bf16.msra.mxu0 0
    %667 = vmatprep.subr.bf16.mxu0 0
    %668 = vmatpush1.bf16.msra.mxu0 0
    %669 = vmatprep.subr.bf16.mxu0 0
    %670 = vmatpush1.bf16.msra.mxu0 0
    %671 = vmatprep.subr.bf16.mxu0 0
    %672 = vmatpush1.bf16.msra.mxu0 0
    %673 = vmatprep.subr.bf16.mxu0 0
    %674 = vmatpush1.bf16.msra.mxu0 0
    %675 = vmatprep.subr.bf16.mxu0 0
    %676 = vmatpush1.bf16.msra.mxu0 0
    %677 = vmatprep.subr.bf16.mxu0 0
    %678 = vmatpush1.bf16.msra.mxu0 0
    %679 = vmatprep.subr.bf16.mxu0 0
    %680 = vmatpush1.bf16.msra.mxu0 0
    %681 = vmatprep.subr.bf16.mxu0 0
    %682 = vmatpush1.bf16.msra.mxu0 0
    %683 = vmatprep.subr.bf16.mxu0 0
    %684 = vmatpush1.bf16.msra.mxu0 0
    %685 = vmatprep.subr.bf16.mxu0 0
    %686 = vmatpush1.bf16.msra.mxu0 0
    %687 = vmatprep.subr.bf16.mxu0 0
    %688 = vmatpush1.bf16.msra.mxu0 0
    %689 = vmatprep.mubr.bf16.mxu0 0
    %690 = vmatmul.mubr.bf16.gmra.mrb[0].mxu0 %v652
    %v691 = vpop.f32.mrb[0].mxu0
    %v692 = vadd.f32 0.0, %v691
    %v693 = vpop.f32.mrb[0].mxu0
    %v694 = vpop.f32.mrb[0].mxu0
    %v695 = vadd.f32 0.0, %v694
    %v696 = vpop.f32.mrb[0].mxu0
    %697 = vmatprep.mubr.bf16.mxu0 0
    %698 = vmatmul.mubr.bf16.gmra.mrb[0].mxu0 %v655
    %v699 = vpop.f32.mrb[0].mxu0
    %v700 = vadd.f32 0.0, %v699
    %v701 = vpop.f32.mrb[0].mxu0
    %v702 = vpop.f32.mrb[0].mxu0
    %v703 = vadd.f32 0.0, %v702
    %v704 = vpop.f32.mrb[0].mxu0
    %705 = vdwg.mxu0
    %v706 = vld [vmem:[#allocation6 + $0x58] sm:$0xf]
    %v707 = vld [vmem:[#allocation6 + $0x5c] sm:$0xf]
    %v708 = vld [vmem:[#allocation6 + $0x60] sm:$0xf]
    %v709 = vld [vmem:[#allocation6 + $0x64] sm:$0xf]
    %v710 = vld [vmem:[#allocation2 + $0x28] sm:$0xf]
    %v711 = vld [vmem:[#allocation2 + $0x2c] sm:$0xf]
    %v712 = vld [vmem:[#allocation2 + $0x30] sm:$0xf]
    %v713 = vld [vmem:[#allocation2 + $0x34] sm:$0xf]
    %v714 = vld [vmem:[#allocation2 + $0x38] sm:$0xf]
    %v715 = vld [vmem:[#allocation2 + $0x3c] sm:$0xf]
    %v716 = vld [vmem:[#allocation2 + $0x40] sm:$0xf]
    %v717 = vld [vmem:[#allocation2 + $0x44] sm:$0xf]
    %v718 = vpack.c.bf16 %v695, %v692
    %v719 = vpack.c.bf16 %v703, %v700
    %v728 = vunpack.c.l.b16 %v710
    %v729 = vunpack.c.l.b16 %v711
    %v730 = vunpack.c.l.b16 %v712
    %v731 = vunpack.c.l.b16 %v713
    %v732 = vunpack.c.l.b16 %v714
    %v733 = vunpack.c.l.b16 %v715
    %v734 = vunpack.c.l.b16 %v716
    %v735 = vunpack.c.l.b16 %v717
    %v736 = vpack.c.b16 %v729, %v728
    %v737 = vpack.c.b16 %v731, %v730
    %v738 = vpack.c.b16 %v733, %v732
    %v739 = vpack.c.b16 %v735, %v734
    %v745 = vsel %vm369, %v718, 0
    %v748 = vsel %vm369, %v719, 0
    %750 = vmatprep.subr.bf16.mxu0 0
    %751 = vmatpush1.bf16.msra.mxu0 %v736
    %752 = vmatprep.subr.bf16.mxu0 0
    %753 = vmatpush1.bf16.msra.mxu0 %v737
    %754 = vmatprep.subr.bf16.mxu0 0
    %755 = vmatpush1.bf16.msra.mxu0 %v738
    %756 = vmatprep.subr.bf16.mxu0 0
    %757 = vmatpush1.bf16.msra.mxu0 %v739
    %758 = vmatprep.subr.bf16.mxu0 0
    %759 = vmatpush1.bf16.msra.mxu0 0
    %760 = vmatprep.subr.bf16.mxu0 0
    %761 = vmatpush1.bf16.msra.mxu0 0
    %762 = vmatprep.subr.bf16.mxu0 0
    %763 = vmatpush1.bf16.msra.mxu0 0
    %764 = vmatprep.subr.bf16.mxu0 0
    %765 = vmatpush1.bf16.msra.mxu0 0
    %766 = vmatprep.subr.bf16.mxu0 0
    %767 = vmatpush1.bf16.msra.mxu0 0
    %768 = vmatprep.subr.bf16.mxu0 0
    %769 = vmatpush1.bf16.msra.mxu0 0
    %770 = vmatprep.subr.bf16.mxu0 0
    %771 = vmatpush1.bf16.msra.mxu0 0
    %772 = vmatprep.subr.bf16.mxu0 0
    %773 = vmatpush1.bf16.msra.mxu0 0
    %774 = vmatprep.subr.bf16.mxu0 0
    %775 = vmatpush1.bf16.msra.mxu0 0
    %776 = vmatprep.subr.bf16.mxu0 0
    %777 = vmatpush1.bf16.msra.mxu0 0
    %778 = vmatprep.subr.bf16.mxu0 0
    %779 = vmatpush1.bf16.msra.mxu0 0
    %780 = vmatprep.subr.bf16.mxu0 0
    %781 = vmatpush1.bf16.msra.mxu0 0
    %782 = vmatprep.mubr.bf16.mxu0 0
    %783 = vmatmul.mubr.bf16.gmra.mrb[0].mxu0 %v745
    %v784 = vpop.f32.mrb[0].mxu0
    %v785 = vadd.f32 0.0, %v784
    %v786 = vpop.f32.mrb[0].mxu0
    %v787 = vpop.f32.mrb[0].mxu0
    %v788 = vadd.f32 0.0, %v787
    %v789 = vpop.f32.mrb[0].mxu0
    %790 = vmatprep.mubr.bf16.mxu0 0
    %791 = vmatmul.mubr.bf16.gmra.mrb[0].mxu0 %v748
    %v792 = vpop.f32.mrb[0].mxu0
    %v793 = vadd.f32 0.0, %v792
    %v794 = vpop.f32.mrb[0].mxu0
    %v795 = vpop.f32.mrb[0].mxu0
    %v796 = vadd.f32 0.0, %v795
    %v797 = vpop.f32.mrb[0].mxu0
    %798 = vdwg.mxu0
    %v799 = vpack.c.bf16 %v788, %v785
    %v800 = vpack.c.bf16 %v796, %v793
    %v801 = vld [vmem:[#allocation2 + $0x48] sm:$0xf]
    %v802 = vld [vmem:[#allocation2 + $0x4c] sm:$0xf]
    %v803 = vld [vmem:[#allocation2 + $0x50] sm:$0xf]
    %v804 = vld [vmem:[#allocation2 + $0x54] sm:$0xf]
    %v805 = vld [vmem:[#allocation2 + $0x58] sm:$0xf]
    %v806 = vld [vmem:[#allocation2 + $0x5c] sm:$0xf]
    %v807 = vld [vmem:[#allocation2 + $0x60] sm:$0xf]
    %v808 = vld [vmem:[#allocation2 + $0x64] sm:$0xf]
    %v817 = vunpack.c.l.b16 %v801
    %v818 = vunpack.c.l.b16 %v802
    %v819 = vunpack.c.l.b16 %v803
    %v820 = vunpack.c.l.b16 %v804
    %v821 = vunpack.c.l.b16 %v805
    %v822 = vunpack.c.l.b16 %v806
    %v823 = vunpack.c.l.b16 %v807
    %v824 = vunpack.c.l.b16 %v808
    %v825 = vpack.c.b16 %v818, %v817
    %v826 = vpack.c.b16 %v820, %v819
    %v827 = vpack.c.b16 %v822, %v821
    %v828 = vpack.c.b16 %v824, %v823
    %833 = vmatprep.subr.bf16.mxu0 0
    %834 = vmatpush1.bf16.msra.mxu0 %v825
    %835 = vmatprep.subr.bf16.mxu0 0
    %836 = vmatpush1.bf16.msra.mxu0 %v826
    %837 = vmatprep.subr.bf16.mxu0 0
    %838 = vmatpush1.bf16.msra.mxu0 %v827
    %839 = vmatprep.subr.bf16.mxu0 0
    %840 = vmatpush1.bf16.msra.mxu0 %v828
    %841 = vmatprep.subr.bf16.mxu0 0
    %842 = vmatpush1.bf16.msra.mxu0 0
    %843 = vmatprep.subr.bf16.mxu0 0
    %844 = vmatpush1.bf16.msra.mxu0 0
    %845 = vmatprep.subr.bf16.mxu0 0
    %846 = vmatpush1.bf16.msra.mxu0 0
    %847 = vmatprep.subr.bf16.mxu0 0
    %848 = vmatpush1.bf16.msra.mxu0 0
    %849 = vmatprep.subr.bf16.mxu0 0
    %850 = vmatpush1.bf16.msra.mxu0 0
    %851 = vmatprep.subr.bf16.mxu0 0
    %852 = vmatpush1.bf16.msra.mxu0 0
    %853 = vmatprep.subr.bf16.mxu0 0
    %854 = vmatpush1.bf16.msra.mxu0 0
    %855 = vmatprep.subr.bf16.mxu0 0
    %856 = vmatpush1.bf16.msra.mxu0 0
    %857 = vmatprep.subr.bf16.mxu0 0
    %858 = vmatpush1.bf16.msra.mxu0 0
    %859 = vmatprep.subr.bf16.mxu0 0
    %860 = vmatpush1.bf16.msra.mxu0 0
    %861 = vmatprep.subr.bf16.mxu0 0
    %862 = vmatpush1.bf16.msra.mxu0 0
    %863 = vmatprep.subr.bf16.mxu0 0
    %864 = vmatpush1.bf16.msra.mxu0 0
    %865 = vmatprep.mubr.bf16.mxu0 0
    %866 = vmatmul.mubr.bf16.gmra.mrb[0].mxu0 %v745
    %v867 = vpop.f32.mrb[0].mxu0
    %v868 = vadd.f32 0.0, %v867
    %v869 = vpop.f32.mrb[0].mxu0
    %v870 = vpop.f32.mrb[0].mxu0
    %v871 = vadd.f32 0.0, %v870
    %v872 = vpop.f32.mrb[0].mxu0
    %873 = vmatprep.mubr.bf16.mxu0 0
    %874 = vmatmul.mubr.bf16.gmra.mrb[0].mxu0 %v748
    %v875 = vpop.f32.mrb[0].mxu0
    %v876 = vadd.f32 0.0, %v875
    %v877 = vpop.f32.mrb[0].mxu0
    %v878 = vpop.f32.mrb[0].mxu0
    %v879 = vadd.f32 0.0, %v878
    %v880 = vpop.f32.mrb[0].mxu0
    %881 = vdwg.mxu0
    %v886 = vunpack.c.l.b16 %v706
    %v887 = vunpack.c.l.b16 %v707
    %v888 = vunpack.c.l.b16 %v708
    %v889 = vunpack.c.l.b16 %v709
    %v890 = vpack.c.b16 %v887, %v886
    %v891 = vpack.c.b16 %v889, %v888
    %v893 = vsel %vm452, %v890, 0
    %v896 = vsel %vm452, %v891, 0
    %898 = vmatprep.subr.bf16.mxu0 0
    %899 = vmatpush1.bf16.msra.mxu0 %v799
    %900 = vmatprep.subr.bf16.mxu0 0
    %901 = vmatpush1.bf16.msra.mxu0 %v800
    %902 = vmatprep.subr.bf16.mxu0 0
    %903 = vmatpush1.bf16.msra.mxu0 0
    %904 = vmatprep.subr.bf16.mxu0 0
    %905 = vmatpush1.bf16.msra.mxu0 0
    %906 = vmatprep.subr.bf16.mxu0 0
    %907 = vmatpush1.bf16.msra.mxu0 0
    %908 = vmatprep.subr.bf16.mxu0 0
    %909 = vmatpush1.bf16.msra.mxu0 0
    %910 = vmatprep.subr.bf16.mxu0 0
    %911 = vmatpush1.bf16.msra.mxu0 0
    %912 = vmatprep.subr.bf16.mxu0 0
    %913 = vmatpush1.bf16.msra.mxu0 0
    %914 = vmatprep.subr.bf16.mxu0 0
    %915 = vmatpush1.bf16.msra.mxu0 0
    %916 = vmatprep.subr.bf16.mxu0 0
    %917 = vmatpush1.bf16.msra.mxu0 0
    %918 = vmatprep.subr.bf16.mxu0 0
    %919 = vmatpush1.bf16.msra.mxu0 0
    %920 = vmatprep.subr.bf16.mxu0 0
    %921 = vmatpush1.bf16.msra.mxu0 0
    %922 = vmatprep.subr.bf16.mxu0 0
    %923 = vmatpush1.bf16.msra.mxu0 0
    %924 = vmatprep.subr.bf16.mxu0 0
    %925 = vmatpush1.bf16.msra.mxu0 0
    %926 = vmatprep.subr.bf16.mxu0 0
    %927 = vmatpush1.bf16.msra.mxu0 0
    %928 = vmatprep.subr.bf16.mxu0 0
    %929 = vmatpush1.bf16.msra.mxu0 0
    %930 = vmatprep.mubr.bf16.mxu0 0
    %931 = vmatmul.mubr.bf16.gmra.mrb[0].mxu0 %v893
    %v932 = vpop.f32.mrb[0].mxu0
    %v933 = vadd.f32 %v868, %v932
    %v934 = vpop.f32.mrb[0].mxu0
    %v935 = vpop.f32.mrb[0].mxu0
    %v936 = vadd.f32 %v871, %v935
    %v937 = vpop.f32.mrb[0].mxu0
    %938 = vmatprep.mubr.bf16.mxu0 0
    %939 = vmatmul.mubr.bf16.gmra.mrb[0].mxu0 %v896
    %v940 = vpop.f32.mrb[0].mxu0
    %v941 = vadd.f32 %v876, %v940
    %v942 = vpop.f32.mrb[0].mxu0
    %v943 = vpop.f32.mrb[0].mxu0
    %v944 = vadd.f32 %v879, %v943
    %v945 = vpop.f32.mrb[0].mxu0
    %946 = vdwg.mxu0
    %v947 = vld [vmem:[#allocation4 + $0x10] sm:$0x1]
    %v948 = vlaneseq
    %v949 = vshrl.u32 %v948, 7
    %v950 = vsub.s32 0, %v949
    %v951 = vrot.slane %v947, %v950
    %v952 = vadd.f32 %v933, %v951
    %v953 = vadd.f32 %v936, %v951
    %v954 = vadd.f32 %v941, %v951
    %v955 = vadd.f32 %v944, %v951
    %v956 = vmax.f32 %v952, 0.0
    %v957 = vmax.f32 %v953, 0.0
    %v958 = vmax.f32 %v954, 0.0
    %v959 = vmax.f32 %v955, 0.0
    %v960 = vmul.f32 %v956, %v956
    %v961 = vmul.f32 %v957, %v957
    %v962 = vmul.f32 %v958, %v958
    %v963 = vmul.f32 %v959, %v959
    %968 = vrot.lane.b32.xlu0 %v960, 64
    %v969 = vpop.permute.xlu0 %968
    %970 = vrot.lane.b32.xlu0 %v961, 64
    %v971 = vpop.permute.xlu0 %970
    %972 = vrot.lane.b32.xlu0 %v962, 64
    %v973 = vpop.permute.xlu0 %972
    %974 = vrot.lane.b32.xlu0 %v963, 64
    %v975 = vpop.permute.xlu0 %974
    %v980 = vsel %vm369, %v956, %v969
    %v981 = vsel %vm369, %v957, %v971
    %v982 = vsel %vm369, %v958, %v973
    %v983 = vsel %vm369, %v959, %v975
    %v984 = vadd.f32 %v980, %v981
    %v985 = vadd.f32 %v984, %v982
    %v986 = vadd.f32 %v985, %v983
    %v987 = vrot.slane %v986, 4
    %v988 = vadd.f32 %v986, %v987
    %v989 = vrot.slane %v988, 2
    %v990 = vadd.f32 %v988, %v989
    %v991 = vrot.slane %v990, 1
    %v992 = vadd.f32 %v990, %v991
    %v993 = vmul.f32 %v992, 0.03125
    %v994 = vmul.f32 %v993, %v993
    %996 = vrot.lane.b32.xlu0 %v994, 64
    %v997 = vpop.permute.xlu0 %996
    %v999 = vsub.f32 %v993, %v997
    %v1000 = vmax.f32 %v999, 0.0
    %v1001 = vsub.f32 %v956, %v993
    %v1002 = vsub.f32 %v957, %v993
    %v1003 = vsub.f32 %v958, %v993
    %v1004 = vsub.f32 %v959, %v993
    %v1005 = vadd.f32 %v1000, 1e-05
    %v1006 = vrsqrt.pop %v1005
    %v1007 = vlaneseq
    %v1008 = vshrl.u32 %v1007, 7
    %v1009 = vsub.s32 0, %v1008
    %v1010 = vrot.slane %v1006, %v1009
    %1012 = vrot.lane.b32.xlu0 %v1010, 64
    %v1013 = vpop.permute.xlu0 %1012
    %v1015 = vmul.f32 %v1001, %v1013
    %v1016 = vmul.f32 %v1002, %v1013
    %v1017 = vmul.f32 %v1003, %v1013
    %v1018 = vmul.f32 %v1004, %v1013
    %v1019 = vld [vmem:[#allocation6 + $0x90] sm:$0xf]
    %v1020 = vld [vmem:[#allocation6 + $0x94] sm:$0xf]
    %v1021 = vpack.c.bf16 %v1016, %v1015
    %v1022 = vpack.c.bf16 %v1018, %v1017
    %v1025 = vunpack.c.l.b16 %v1019
    %v1026 = vunpack.c.l.b16 %v1020
    %v1027 = vpack.c.b16 %v1026, %v1025
    %v1029 = vsel %vm452, %v1027, 0
    %1031 = vmatprep.subr.bf16.mxu0 0
    %1032 = vmatpush1.bf16.msra.mxu0 %v1021
    %1033 = vmatprep.subr.bf16.mxu0 0
    %1034 = vmatpush1.bf16.msra.mxu0 %v1022
    %1035 = vmatprep.subr.bf16.mxu0 0
    %1036 = vmatpush1.bf16.msra.mxu0 0
    %1037 = vmatprep.subr.bf16.mxu0 0
    %1038 = vmatpush1.bf16.msra.mxu0 0
    %1039 = vmatprep.subr.bf16.mxu0 0
    %1040 = vmatpush1.bf16.msra.mxu0 0
    %1041 = vmatprep.subr.bf16.mxu0 0
    %1042 = vmatpush1.bf16.msra.mxu0 0
    %1043 = vmatprep.subr.bf16.mxu0 0
    %1044 = vmatpush1.bf16.msra.mxu0 0
    %1045 = vmatprep.subr.bf16.mxu0 0
    %1046 = vmatpush1.bf16.msra.mxu0 0
    %1047 = vmatprep.subr.bf16.mxu0 0
    %1048 = vmatpush1.bf16.msra.mxu0 0
    %1049 = vmatprep.subr.bf16.mxu0 0
    %1050 = vmatpush1.bf16.msra.mxu0 0
    %1051 = vmatprep.subr.bf16.mxu0 0
    %1052 = vmatpush1.bf16.msra.mxu0 0
    %1053 = vmatprep.subr.bf16.mxu0 0
    %1054 = vmatpush1.bf16.msra.mxu0 0
    %1055 = vmatprep.subr.bf16.mxu0 0
    %1056 = vmatpush1.bf16.msra.mxu0 0
    %1057 = vmatprep.subr.bf16.mxu0 0
    %1058 = vmatpush1.bf16.msra.mxu0 0
    %1059 = vmatprep.subr.bf16.mxu0 0
    %1060 = vmatpush1.bf16.msra.mxu0 0
    %1061 = vmatprep.subr.bf16.mxu0 0
    %1062 = vmatpush1.bf16.msra.mxu0 0
    %1063 = vmatprep.mubr.bf16.mxu0 0
    %1064 = vmatmul.mubr.bf16.gmra.mrb[0].mxu0 %v1029
    %v1065 = vpop.f32.mrb[0].mxu0
    %v1066 = vadd.f32 0.0, %v1065
    %v1067 = vpop.f32.mrb[0].mxu0
    %v1068 = vpop.f32.mrb[0].mxu0
    %v1069 = vadd.f32 0.0, %v1068
    %v1070 = vpop.f32.mrb[0].mxu0
    %1071 = vdwg.mxu0
    %v1072 = vld [vmem:[#allocation6 + $0x68] sm:$0xf]
    %v1073 = vld [vmem:[#allocation6 + $0x6c] sm:$0xf]
    %v1074 = vld [vmem:[#allocation2 + $0x68] sm:$0xf]
    %v1075 = vld [vmem:[#allocation2 + $0x6c] sm:$0xf]
    %v1076 = vld [vmem:[#allocation2 + $0x70] sm:$0xf]
    %v1077 = vld [vmem:[#allocation2 + $0x74] sm:$0xf]
    %v1078 = vld [vmem:[#allocation2 + $0x78] sm:$0xf]
    %v1079 = vld [vmem:[#allocation2 + $0x7c] sm:$0xf]
    %v1080 = vld [vmem:[#allocation2 + $0x80] sm:$0xf]
    %v1081 = vld [vmem:[#allocation2 + $0x84] sm:$0xf]
    %v1082 = vpack.c.bf16 %v1069, %v1066
    %v1091 = vunpack.c.l.b16 %v1074
    %v1092 = vunpack.c.l.b16 %v1075
    %v1093 = vunpack.c.l.b16 %v1076
    %v1094 = vunpack.c.l.b16 %v1077
    %v1095 = vunpack.c.l.b16 %v1078
    %v1096 = vunpack.c.l.b16 %v1079
    %v1097 = vunpack.c.l.b16 %v1080
    %v1098 = vunpack.c.l.b16 %v1081
    %v1099 = vpack.c.b16 %v1092, %v1091
    %v1100 = vpack.c.b16 %v1094, %v1093
    %v1101 = vpack.c.b16 %v1096, %v1095
    %v1102 = vpack.c.b16 %v1098, %v1097
    %v1108 = vsel %vm369, %v1082, 0
    %1110 = vmatprep.subr.bf16.mxu0 0
    %1111 = vmatpush1.bf16.msra.mxu0 %v1099
    %1112 = vmatprep.subr.bf16.mxu0 0
    %1113 = vmatpush1.bf16.msra.mxu0 %v1100
    %1114 = vmatprep.subr.bf16.mxu0 0
    %1115 = vmatpush1.bf16.msra.mxu0 %v1101
    %1116 = vmatprep.subr.bf16.mxu0 0
    %1117 = vmatpush1.bf16.msra.mxu0 %v1102
    %1118 = vmatprep.subr.bf16.mxu0 0
    %1119 = vmatpush1.bf16.msra.mxu0 0
    %1120 = vmatprep.subr.bf16.mxu0 0
    %1121 = vmatpush1.bf16.msra.mxu0 0
    %1122 = vmatprep.subr.bf16.mxu0 0
    %1123 = vmatpush1.bf16.msra.mxu0 0
    %1124 = vmatprep.subr.bf16.mxu0 0
    %1125 = vmatpush1.bf16.msra.mxu0 0
    %1126 = vmatprep.subr.bf16.mxu0 0
    %1127 = vmatpush1.bf16.msra.mxu0 0
    %1128 = vmatprep.subr.bf16.mxu0 0
    %1129 = vmatpush1.bf16.msra.mxu0 0
    %1130 = vmatprep.subr.bf16.mxu0 0
    %1131 = vmatpush1.bf16.msra.mxu0 0
    %1132 = vmatprep.subr.bf16.mxu0 0
    %1133 = vmatpush1.bf16.msra.mxu0 0
    %1134 = vmatprep.subr.bf16.mxu0 0
    %1135 = vmatpush1.bf16.msra.mxu0 0
    %1136 = vmatprep.subr.bf16.mxu0 0
    %1137 = vmatpush1.bf16.msra.mxu0 0
    %1138 = vmatprep.subr.bf16.mxu0 0
    %1139 = vmatpush1.bf16.msra.mxu0 0
    %1140 = vmatprep.subr.bf16.mxu0 0
    %1141 = vmatpush1.bf16.msra.mxu0 0
    %1142 = vmatprep.mubr.bf16.mxu0 0
    %1143 = vmatmul.mubr.bf16.gmra.mrb[0].mxu0 %v1108
    %v1144 = vpop.f32.mrb[0].mxu0
    %v1145 = vadd.f32 0.0, %v1144
    %v1146 = vpop.f32.mrb[0].mxu0
    %v1147 = vpop.f32.mrb[0].mxu0
    %v1148 = vadd.f32 0.0, %v1147
    %v1149 = vpop.f32.mrb[0].mxu0
    %1150 = vdwg.mxu0
    %v1151 = vpack.c.bf16 %v1148, %v1145
    %v1152 = vld [vmem:[#allocation2 + $0x88] sm:$0xf]
    %v1153 = vld [vmem:[#allocation2 + $0x8c] sm:$0xf]
    %v1154 = vld [vmem:[#allocation2 + $0x90] sm:$0xf]
    %v1155 = vld [vmem:[#allocation2 + $0x94] sm:$0xf]
    %v1156 = vld [vmem:[#allocation2 + $0x98] sm:$0xf]
    %v1157 = vld [vmem:[#allocation2 + $0x9c] sm:$0xf]
    %v1158 = vld [vmem:[#allocation2 + $0xa0] sm:$0xf]
    %v1159 = vld [vmem:[#allocation2 + $0xa4] sm:$0xf]
    %v1168 = vunpack.c.l.b16 %v1152
    %v1169 = vunpack.c.l.b16 %v1153
    %v1170 = vunpack.c.l.b16 %v1154
    %v1171 = vunpack.c.l.b16 %v1155
    %v1172 = vunpack.c.l.b16 %v1156
    %v1173 = vunpack.c.l.b16 %v1157
    %v1174 = vunpack.c.l.b16 %v1158
    %v1175 = vunpack.c.l.b16 %v1159
    %v1176 = vpack.c.b16 %v1169, %v1168
    %v1177 = vpack.c.b16 %v1171, %v1170
    %v1178 = vpack.c.b16 %v1173, %v1172
    %v1179 = vpack.c.b16 %v1175, %v1174
    %1184 = vmatprep.subr.bf16.mxu0 0
    %1185 = vmatpush1.bf16.msra.mxu0 %v1176
    %1186 = vmatprep.subr.bf16.mxu0 0
    %1187 = vmatpush1.bf16.msra.mxu0 %v1177
    %1188 = vmatprep.subr.bf16.mxu0 0
    %1189 = vmatpush1.bf16.msra.mxu0 %v1178
    %1190 = vmatprep.subr.bf16.mxu0 0
    %1191 = vmatpush1.bf16.msra.mxu0 %v1179
    %1192 = vmatprep.subr.bf16.mxu0 0
    %1193 = vmatpush1.bf16.msra.mxu0 0
    %1194 = vmatprep.subr.bf16.mxu0 0
    %1195 = vmatpush1.bf16.msra.mxu0 0
    %1196 = vmatprep.subr.bf16.mxu0 0
    %1197 = vmatpush1.bf16.msra.mxu0 0
    %1198 = vmatprep.subr.bf16.mxu0 0
    %1199 = vmatpush1.bf16.msra.mxu0 0
    %1200 = vmatprep.subr.bf16.mxu0 0
    %1201 = vmatpush1.bf16.msra.mxu0 0
    %1202 = vmatprep.subr.bf16.mxu0 0
    %1203 = vmatpush1.bf16.msra.mxu0 0
    %1204 = vmatprep.subr.bf16.mxu0 0
    %1205 = vmatpush1.bf16.msra.mxu0 0
    %1206 = vmatprep.subr.bf16.mxu0 0
    %1207 = vmatpush1.bf16.msra.mxu0 0
    %1208 = vmatprep.subr.bf16.mxu0 0
    %1209 = vmatpush1.bf16.msra.mxu0 0
    %1210 = vmatprep.subr.bf16.mxu0 0
    %1211 = vmatpush1.bf16.msra.mxu0 0
    %1212 = vmatprep.subr.bf16.mxu0 0
    %1213 = vmatpush1.bf16.msra.mxu0 0
    %1214 = vmatprep.subr.bf16.mxu0 0
    %1215 = vmatpush1.bf16.msra.mxu0 0
    %1216 = vmatprep.mubr.bf16.mxu0 0
    %1217 = vmatmul.mubr.bf16.gmra.mrb[0].mxu0 %v1108
    %v1218 = vpop.f32.mrb[0].mxu0
    %v1219 = vadd.f32 0.0, %v1218
    %v1220 = vpop.f32.mrb[0].mxu0
    %v1221 = vpop.f32.mrb[0].mxu0
    %v1222 = vadd.f32 0.0, %v1221
    %v1223 = vpop.f32.mrb[0].mxu0
    %1224 = vdwg.mxu0
    %v1227 = vunpack.c.l.b16 %v1072
    %v1228 = vunpack.c.l.b16 %v1073
    %v1229 = vpack.c.b16 %v1228, %v1227
    %v1231 = vsel %vm137, %v1229, 0
    %1233 = vmatprep.subr.bf16.mxu0 0
    %1234 = vmatpush1.bf16.msra.mxu0 %v1151
    %1235 = vmatprep.subr.bf16.mxu0 0
    %1236 = vmatpush1.bf16.msra.mxu0 0
    %1237 = vmatprep.subr.bf16.mxu0 0
    %1238 = vmatpush1.bf16.msra.mxu0 0
    %1239 = vmatprep.subr.bf16.mxu0 0
    %1240 = vmatpush1.bf16.msra.mxu0 0
    %1241 = vmatprep.subr.bf16.mxu0 0
    %1242 = vmatpush1.bf16.msra.mxu0 0
    %1243 = vmatprep.subr.bf16.mxu0 0
    %1244 = vmatpush1.bf16.msra.mxu0 0
    %1245 = vmatprep.subr.bf16.mxu0 0
    %1246 = vmatpush1.bf16.msra.mxu0 0
    %1247 = vmatprep.subr.bf16.mxu0 0
    %1248 = vmatpush1.bf16.msra.mxu0 0
    %1249 = vmatprep.subr.bf16.mxu0 0
    %1250 = vmatpush1.bf16.msra.mxu0 0
    %1251 = vmatprep.subr.bf16.mxu0 0
    %1252 = vmatpush1.bf16.msra.mxu0 0
    %1253 = vmatprep.subr.bf16.mxu0 0
    %1254 = vmatpush1.bf16.msra.mxu0 0
    %1255 = vmatprep.subr.bf16.mxu0 0
    %1256 = vmatpush1.bf16.msra.mxu0 0
    %1257 = vmatprep.subr.bf16.mxu0 0
    %1258 = vmatpush1.bf16.msra.mxu0 0
    %1259 = vmatprep.subr.bf16.mxu0 0
    %1260 = vmatpush1.bf16.msra.mxu0 0
    %1261 = vmatprep.subr.bf16.mxu0 0
    %1262 = vmatpush1.bf16.msra.mxu0 0
    %1263 = vmatprep.subr.bf16.mxu0 0
    %1264 = vmatpush1.bf16.msra.mxu0 0
    %1265 = vmatprep.mubr.bf16.mxu0 0
    %1266 = vmatmul.mubr.bf16.gmra.mrb[0].mxu0 %v1231
    %v1267 = vpop.f32.mrb[0].mxu0
    %v1268 = vadd.f32 %v1219, %v1267
    %v1269 = vpop.f32.mrb[0].mxu0
    %v1270 = vpop.f32.mrb[0].mxu0
    %v1271 = vadd.f32 %v1222, %v1270
    %v1272 = vpop.f32.mrb[0].mxu0
    %1273 = vdwg.mxu0
    %v1274 = vld [vmem:[#allocation4 + $0x18] sm:$0x1]
    %v1275 = vlaneseq
    %v1276 = vshrl.u32 %v1275, 7
    %v1277 = vsub.s32 0, %v1276
    %v1278 = vrot.slane %v1274, %v1277
    %v1279 = vadd.f32 %v1268, %v1278
    %v1280 = vadd.f32 %v1271, %v1278
    %v1281 = vmax.f32 %v1279, 0.0
    %v1282 = vmax.f32 %v1280, 0.0
    %v1283 = vmul.f32 %v1281, %v1281
    %v1284 = vmul.f32 %v1282, %v1282
    %1287 = vrot.lane.b32.xlu0 %v1283, 64
    %v1288 = vpop.permute.xlu0 %1287
    %1289 = vrot.lane.b32.xlu0 %v1284, 64
    %v1290 = vpop.permute.xlu0 %1289
    %v1293 = vsel %vm369, %v1281, %v1288
    %v1294 = vsel %vm369, %v1282, %v1290
    %v1295 = vadd.f32 %v1293, %v1294
    %v1296 = vrot.slane %v1295, 4
    %v1297 = vadd.f32 %v1295, %v1296
    %v1298 = vrot.slane %v1297, 2
    %v1299 = vadd.f32 %v1297, %v1298
    %v1300 = vrot.slane %v1299, 1
    %v1301 = vadd.f32 %v1299, %v1300
    %v1302 = vmul.f32 %v1301, 0.0625
    %v1303 = vmul.f32 %v1302, %v1302
    %1305 = vrot.lane.b32.xlu0 %v1303, 64
    %v1306 = vpop.permute.xlu0 %1305
    %v1308 = vsub.f32 %v1302, %v1306
    %v1309 = vmax.f32 %v1308, 0.0
    %v1310 = vsub.f32 %v1281, %v1302
    %v1311 = vsub.f32 %v1282, %v1302
    %v1312 = vadd.f32 %v1309, 1e-05
    %v1313 = vrsqrt.pop %v1312
    %v1314 = vlaneseq
    %v1315 = vshrl.u32 %v1314, 7
    %v1316 = vsub.s32 0, %v1315
    %v1317 = vrot.slane %v1313, %v1316
    %1319 = vrot.lane.b32.xlu0 %v1317, 64
    %v1320 = vpop.permute.xlu0 %1319
    %v1322 = vmul.f32 %v1310, %v1320
    %v1323 = vmul.f32 %v1311, %v1320
    %v1324 = vld [vmem:[#allocation6 + $0x98] sm:$0xf]
    %v1325 = vpack.c.bf16 %v1323, %v1322
    %v1327 = vsel %vm137, %v1324, 0
    %1329 = vmatprep.subr.bf16.mxu0 0
    %1330 = vmatpush1.bf16.msra.mxu0 %v1325
    %1331 = vmatprep.subr.bf16.mxu0 0
    %1332 = vmatpush1.bf16.msra.mxu0 0
    %1333 = vmatprep.subr.bf16.mxu0 0
    %1334 = vmatpush1.bf16.msra.mxu0 0
    %1335 = vmatprep.subr.bf16.mxu0 0
    %1336 = vmatpush1.bf16.msra.mxu0 0
    %1337 = vmatprep.subr.bf16.mxu0 0
    %1338 = vmatpush1.bf16.msra.mxu0 0
    %1339 = vmatprep.subr.bf16.mxu0 0
    %1340 = vmatpush1.bf16.msra.mxu0 0
    %1341 = vmatprep.subr.bf16.mxu0 0
    %1342 = vmatpush1.bf16.msra.mxu0 0
    %1343 = vmatprep.subr.bf16.mxu0 0
    %1344 = vmatpush1.bf16.msra.mxu0 0
    %1345 = vmatprep.subr.bf16.mxu0 0
    %1346 = vmatpush1.bf16.msra.mxu0 0
    %1347 = vmatprep.subr.bf16.mxu0 0
    %1348 = vmatpush1.bf16.msra.mxu0 0
    %1349 = vmatprep.subr.bf16.mxu0 0
    %1350 = vmatpush1.bf16.msra.mxu0 0
    %1351 = vmatprep.subr.bf16.mxu0 0
    %1352 = vmatpush1.bf16.msra.mxu0 0
    %1353 = vmatprep.subr.bf16.mxu0 0
    %1354 = vmatpush1.bf16.msra.mxu0 0
    %1355 = vmatprep.subr.bf16.mxu0 0
    %1356 = vmatpush1.bf16.msra.mxu0 0
    %1357 = vmatprep.subr.bf16.mxu0 0
    %1358 = vmatpush1.bf16.msra.mxu0 0
    %1359 = vmatprep.subr.bf16.mxu0 0
    %1360 = vmatpush1.bf16.msra.mxu0 0
    %1361 = vmatprep.mubr.bf16.mxu0 0
    %1362 = vmatmul.mubr.bf16.gmra.mrb[0].mxu0 %v1327
    %v1363 = vpop.f32.mrb[0].mxu0
    %v1364 = vadd.f32 0.0, %v1363
    %v1365 = vpop.f32.mrb[0].mxu0
    %v1366 = vpop.f32.mrb[0].mxu0
    %v1367 = vpop.f32.mrb[0].mxu0
    %1368 = vdwg.mxu0
    %v1369 = vld [vmem:[#allocation6 + $0x70] sm:$0xf]
    %v1370 = vld [vmem:[#allocation2 + $0xa8] sm:$0xf]
    %v1371 = vld [vmem:[#allocation2 + $0xac] sm:$0xf]
    %v1372 = vld [vmem:[#allocation2 + $0xb0] sm:$0xf]
    %v1373 = vld [vmem:[#allocation2 + $0xb4] sm:$0xf]
    %v1374 = vld [vmem:[#allocation2 + $0xb8] sm:$0xf]
    %v1375 = vld [vmem:[#allocation2 + $0xbc] sm:$0xf]
    %v1376 = vld [vmem:[#allocation2 + $0xc0] sm:$0xf]
    %v1377 = vld [vmem:[#allocation2 + $0xc4] sm:$0xf]
    %v1378 = vpack.c.bf16 %v1364, %v1364
    %v1387 = vunpack.c.l.b16 %v1370
    %v1388 = vunpack.c.l.b16 %v1371
    %v1389 = vunpack.c.l.b16 %v1372
    %v1390 = vunpack.c.l.b16 %v1373
    %v1391 = vunpack.c.l.b16 %v1374
    %v1392 = vunpack.c.l.b16 %v1375
    %v1393 = vunpack.c.l.b16 %v1376
    %v1394 = vunpack.c.l.b16 %v1377
    %v1395 = vpack.c.b16 %v1388, %v1387
    %v1396 = vpack.c.b16 %v1390, %v1389
    %v1397 = vpack.c.b16 %v1392, %v1391
    %v1398 = vpack.c.b16 %v1394, %v1393
    %v1404 = vsel %vm369, %v1378, 0
    %1406 = vmatprep.subr.bf16.mxu0 0
    %1407 = vmatpush1.bf16.msra.mxu0 %v1395
    %1408 = vmatprep.subr.bf16.mxu0 0
    %1409 = vmatpush1.bf16.msra.mxu0 %v1396
    %1410 = vmatprep.subr.bf16.mxu0 0
    %1411 = vmatpush1.bf16.msra.mxu0 %v1397
    %1412 = vmatprep.subr.bf16.mxu0 0
    %1413 = vmatpush1.bf16.msra.mxu0 %v1398
    %1414 = vmatprep.subr.bf16.mxu0 0
    %1415 = vmatpush1.bf16.msra.mxu0 0
    %1416 = vmatprep.subr.bf16.mxu0 0
    %1417 = vmatpush1.bf16.msra.mxu0 0
    %1418 = vmatprep.subr.bf16.mxu0 0
    %1419 = vmatpush1.bf16.msra.mxu0 0
    %1420 = vmatprep.subr.bf16.mxu0 0
    %1421 = vmatpush1.bf16.msra.mxu0 0
    %1422 = vmatprep.subr.bf16.mxu0 0
    %1423 = vmatpush1.bf16.msra.mxu0 0
    %1424 = vmatprep.subr.bf16.mxu0 0
    %1425 = vmatpush1.bf16.msra.mxu0 0
    %1426 = vmatprep.subr.bf16.mxu0 0
    %1427 = vmatpush1.bf16.msra.mxu0 0
    %1428 = vmatprep.subr.bf16.mxu0 0
    %1429 = vmatpush1.bf16.msra.mxu0 0
    %1430 = vmatprep.subr.bf16.mxu0 0
    %1431 = vmatpush1.bf16.msra.mxu0 0
    %1432 = vmatprep.subr.bf16.mxu0 0
    %1433 = vmatpush1.bf16.msra.mxu0 0
    %1434 = vmatprep.subr.bf16.mxu0 0
    %1435 = vmatpush1.bf16.msra.mxu0 0
    %1436 = vmatprep.subr.bf16.mxu0 0
    %1437 = vmatpush1.bf16.msra.mxu0 0
    %1438 = vmatprep.mubr.bf16.mxu0 0
    %1439 = vmatmul.mubr.bf16.gmra.mrb[0].mxu0 %v1404
    %v1440 = vpop.f32.mrb[0].mxu0
    %v1441 = vadd.f32 0.0, %v1440
    %v1442 = vpop.f32.mrb[0].mxu0
    %v1443 = vpop.f32.mrb[0].mxu0
    %v1444 = vpop.f32.mrb[0].mxu0
    %1445 = vdwg.mxu0
    %v1446 = vpack.c.bf16 %v1441, %v1441
    %v1447 = vld [vmem:[#allocation2 + $0xc8] sm:$0xf]
    %v1448 = vld [vmem:[#allocation2 + $0xcc] sm:$0xf]
    %v1449 = vld [vmem:[#allocation2 + $0xd0] sm:$0xf]
    %v1450 = vld [vmem:[#allocation2 + $0xd4] sm:$0xf]
    %v1451 = vld [vmem:[#allocation2 + $0xd8] sm:$0xf]
    %v1452 = vld [vmem:[#allocation2 + $0xdc] sm:$0xf]
    %v1453 = vld [vmem:[#allocation2 + $0xe0] sm:$0xf]
    %v1454 = vld [vmem:[#allocation2 + $0xe4] sm:$0xf]
    %v1463 = vunpack.c.l.b16 %v1447
    %v1464 = vunpack.c.l.b16 %v1448
    %v1465 = vunpack.c.l.b16 %v1449
    %v1466 = vunpack.c.l.b16 %v1450
    %v1467 = vunpack.c.l.b16 %v1451
    %v1468 = vunpack.c.l.b16 %v1452
    %v1469 = vunpack.c.l.b16 %v1453
    %v1470 = vunpack.c.l.b16 %v1454
    %v1471 = vpack.c.b16 %v1464, %v1463
    %v1472 = vpack.c.b16 %v1466, %v1465
    %v1473 = vpack.c.b16 %v1468, %v1467
    %v1474 = vpack.c.b16 %v1470, %v1469
    %1479 = vmatprep.subr.bf16.mxu0 0
    %1480 = vmatpush1.bf16.msra.mxu0 %v1471
    %1481 = vmatprep.subr.bf16.mxu0 0
    %1482 = vmatpush1.bf16.msra.mxu0 %v1472
    %1483 = vmatprep.subr.bf16.mxu0 0
    %1484 = vmatpush1.bf16.msra.mxu0 %v1473
    %1485 = vmatprep.subr.bf16.mxu0 0
    %1486 = vmatpush1.bf16.msra.mxu0 %v1474
    %1487 = vmatprep.subr.bf16.mxu0 0
    %1488 = vmatpush1.bf16.msra.mxu0 0
    %1489 = vmatprep.subr.bf16.mxu0 0
    %1490 = vmatpush1.bf16.msra.mxu0 0
    %1491 = vmatprep.subr.bf16.mxu0 0
    %1492 = vmatpush1.bf16.msra.mxu0 0
    %1493 = vmatprep.subr.bf16.mxu0 0
    %1494 = vmatpush1.bf16.msra.mxu0 0
    %1495 = vmatprep.subr.bf16.mxu0 0
    %1496 = vmatpush1.bf16.msra.mxu0 0
    %1497 = vmatprep.subr.bf16.mxu0 0
    %1498 = vmatpush1.bf16.msra.mxu0 0
    %1499 = vmatprep.subr.bf16.mxu0 0
    %1500 = vmatpush1.bf16.msra.mxu0 0
    %1501 = vmatprep.subr.bf16.mxu0 0
    %1502 = vmatpush1.bf16.msra.mxu0 0
    %1503 = vmatprep.subr.bf16.mxu0 0
    %1504 = vmatpush1.bf16.msra.mxu0 0
    %1505 = vmatprep.subr.bf16.mxu0 0
    %1506 = vmatpush1.bf16.msra.mxu0 0
    %1507 = vmatprep.subr.bf16.mxu0 0
    %1508 = vmatpush1.bf16.msra.mxu0 0
    %1509 = vmatprep.subr.bf16.mxu0 0
    %1510 = vmatpush1.bf16.msra.mxu0 0
    %1511 = vmatprep.mubr.bf16.mxu0 0
    %1512 = vmatmul.mubr.bf16.gmra.mrb[0].mxu0 %v1404
    %v1513 = vpop.f32.mrb[0].mxu0
    %v1514 = vadd.f32 0.0, %v1513
    %v1515 = vpop.f32.mrb[0].mxu0
    %v1516 = vpop.f32.mrb[0].mxu0
    %v1517 = vpop.f32.mrb[0].mxu0
    %1518 = vdwg.mxu0
    %v1520 = vsel %vm77, %v1369, 0
    %vm1522 = vcmask 1043456
    %v1524 = vsel %vm1522, %v1446, 0
    %1526 = vmatprep.subr.bf16.mxu0 0
    %1527 = vmatpush1.bf16.msra.mxu0 %v1524
    %1528 = vmatprep.subr.bf16.mxu0 0
    %1529 = vmatpush1.bf16.msra.mxu0 0
    %1530 = vmatprep.subr.bf16.mxu0 0
    %1531 = vmatpush1.bf16.msra.mxu0 0
    %1532 = vmatprep.subr.bf16.mxu0 0
    %1533 = vmatpush1.bf16.msra.mxu0 0
    %1534 = vmatprep.subr.bf16.mxu0 0
    %1535 = vmatpush1.bf16.msra.mxu0 0
    %1536 = vmatprep.subr.bf16.mxu0 0
    %1537 = vmatpush1.bf16.msra.mxu0 0
    %1538 = vmatprep.subr.bf16.mxu0 0
    %1539 = vmatpush1.bf16.msra.mxu0 0
    %1540 = vmatprep.subr.bf16.mxu0 0
    %1541 = vmatpush1.bf16.msra.mxu0 0
    %1542 = vmatprep.subr.bf16.mxu0 0
    %1543 = vmatpush1.bf16.msra.mxu0 0
    %1544 = vmatprep.subr.bf16.mxu0 0
    %1545 = vmatpush1.bf16.msra.mxu0 0
    %1546 = vmatprep.subr.bf16.mxu0 0
    %1547 = vmatpush1.bf16.msra.mxu0 0
    %1548 = vmatprep.subr.bf16.mxu0 0
    %1549 = vmatpush1.bf16.msra.mxu0 0
    %1550 = vmatprep.subr.bf16.mxu0 0
    %1551 = vmatpush1.bf16.msra.mxu0 0
    %1552 = vmatprep.subr.bf16.mxu0 0
    %1553 = vmatpush1.bf16.msra.mxu0 0
    %1554 = vmatprep.subr.bf16.mxu0 0
    %1555 = vmatpush1.bf16.msra.mxu0 0
    %1556 = vmatprep.subr.bf16.mxu0 0
    %1557 = vmatpush1.bf16.msra.mxu0 0
    %1558 = vmatprep.mubr.bf16.mxu0 0
    %1559 = vmatmul.mubr.bf16.gmra.mrb[0].mxu0 %v1520
    %v1560 = vpop.f32.mrb[0].mxu0
    %v1561 = vadd.f32 %v1514, %v1560
    %v1562 = vpop.f32.mrb[0].mxu0
    %v1563 = vpop.f32.mrb[0].mxu0
    %v1564 = vpop.f32.mrb[0].mxu0
    %1565 = vdwg.mxu0
    %v1566 = vld [vmem:[#allocation4 + $0x20] sm:$0x1]
    %v1567 = vlaneseq
    %v1568 = vshrl.u32 %v1567, 7
    %v1569 = vsub.s32 0, %v1568
    %v1570 = vrot.slane %v1566, %v1569
    %v1571 = vadd.f32 %v1561, %v1570
    %v1572 = vmax.f32 %v1571, 0.0
    %v1573 = vmul.f32 %v1572, %v1572
    %v1574 = vrot.slane %v1572, 4
    %v1575 = vadd.f32 %v1572, %v1574
    %v1576 = vrot.slane %v1575, 2
    %v1577 = vadd.f32 %v1575, %v1576
    %v1578 = vrot.slane %v1577, 1
    %v1579 = vadd.f32 %v1577, %v1578
    %v1580 = vrot.slane %v1573, 4
    %v1581 = vadd.f32 %v1573, %v1580
    %v1582 = vrot.slane %v1581, 2
    %v1583 = vadd.f32 %v1581, %v1582
    %v1584 = vrot.slane %v1583, 1
    %v1585 = vadd.f32 %v1583, %v1584
    %v1586 = vmul.f32 %v1579, 0.125
    %v1587 = vmul.f32 %v1585, 0.125
    %v1588 = vmul.f32 %v1586, %v1586
    %v1589 = vsub.f32 %v1587, %v1588
    %v1590 = vmax.f32 %v1589, 0.0
    %v1591 = vsub.f32 %v1572, %v1586
    %v1592 = vadd.f32 %v1590, 1e-05
    %v1593 = vrsqrt.pop %v1592
    %v1594 = vmul.f32 %v1591, %v1593
    %v1595 = vld [vmem:[#allocation6 + $0xa0] sm:$0xf]
    %v1596 = vpack.c.bf16 %v1594, %v1594
    %v1598 = vsel %vm77, %v1595, 0
    %v1601 = vsel %vm1522, %v1596, 0
    %1603 = vmatprep.subr.bf16.mxu0 0
    %1604 = vmatpush1.bf16.msra.mxu0 %v1601
    %1605 = vmatprep.subr.bf16.mxu0 0
    %1606 = vmatpush1.bf16.msra.mxu0 0
    %1607 = vmatprep.subr.bf16.mxu0 0
    %1608 = vmatpush1.bf16.msra.mxu0 0
    %1609 = vmatprep.subr.bf16.mxu0 0
    %1610 = vmatpush1.bf16.msra.mxu0 0
    %1611 = vmatprep.subr.bf16.mxu0 0
    %1612 = vmatpush1.bf16.msra.mxu0 0
    %1613 = vmatprep.subr.bf16.mxu0 0
    %1614 = vmatpush1.bf16.msra.mxu0 0
    %1615 = vmatprep.subr.bf16.mxu0 0
    %1616 = vmatpush1.bf16.msra.mxu0 0
    %1617 = vmatprep.subr.bf16.mxu0 0
    %1618 = vmatpush1.bf16.msra.mxu0 0
    %1619 = vmatprep.subr.bf16.mxu0 0
    %1620 = vmatpush1.bf16.msra.mxu0 0
    %1621 = vmatprep.subr.bf16.mxu0 0
    %1622 = vmatpush1.bf16.msra.mxu0 0
    %1623 = vmatprep.subr.bf16.mxu0 0
    %1624 = vmatpush1.bf16.msra.mxu0 0
    %1625 = vmatprep.subr.bf16.mxu0 0
    %1626 = vmatpush1.bf16.msra.mxu0 0
    %1627 = vmatprep.subr.bf16.mxu0 0
    %1628 = vmatpush1.bf16.msra.mxu0 0
    %1629 = vmatprep.subr.bf16.mxu0 0
    %1630 = vmatpush1.bf16.msra.mxu0 0
    %1631 = vmatprep.subr.bf16.mxu0 0
    %1632 = vmatpush1.bf16.msra.mxu0 0
    %1633 = vmatprep.subr.bf16.mxu0 0
    %1634 = vmatpush1.bf16.msra.mxu0 0
    %1635 = vmatprep.mubr.bf16.mxu0 0
    %1636 = vmatmul.mubr.bf16.gmra.mrb[0].mxu0 %v1598
    %v1637 = vpop.f32.mrb[0].mxu0
    %v1638 = vadd.f32 0.0, %v1637
    %v1639 = vpop.f32.mrb[0].mxu0
    %v1640 = vpop.f32.mrb[0].mxu0
    %v1641 = vpop.f32.mrb[0].mxu0
    %1642 = vdwg.mxu0
    %v1643 = vld [vmem:[#allocation6 + $0x78] sm:$0xf]
    %v1644 = vld [vmem:[#allocation2 + $0xe8] sm:$0xf]
    %v1645 = vld [vmem:[#allocation2 + $0xec] sm:$0xf]
    %v1646 = vld [vmem:[#allocation2 + $0xf0] sm:$0xf]
    %v1647 = vld [vmem:[#allocation2 + $0xf4] sm:$0xf]
    %v1648 = vld [vmem:[#allocation2 + $0xf8] sm:$0xf]
    %v1649 = vld [vmem:[#allocation2 + $0xfc] sm:$0xf]
    %v1650 = vld [vmem:[#allocation2 + $0x100] sm:$0xf]
    %v1651 = vld [vmem:[#allocation2 + $0x104] sm:$0xf]
    %v1652 = vld [vmem:[#allocation2 + $0x108] sm:$0xf]
    %v1653 = vld [vmem:[#allocation2 + $0x10c] sm:$0xf]
    %v1654 = vld [vmem:[#allocation2 + $0x110] sm:$0xf]
    %v1655 = vld [vmem:[#allocation2 + $0x114] sm:$0xf]
    %v1656 = vld [vmem:[#allocation2 + $0x118] sm:$0xf]
    %v1657 = vld [vmem:[#allocation2 + $0x11c] sm:$0xf]
    %v1658 = vld [vmem:[#allocation2 + $0x120] sm:$0xf]
    %v1659 = vld [vmem:[#allocation2 + $0x124] sm:$0xf]
    %v1660 = vpack.c.bf16 %v1638, %v1638
    %v1677 = vunpack.c.l.b16 %v1644
    %v1678 = vunpack.c.l.b16 %v1645
    %v1679 = vunpack.c.l.b16 %v1646
    %v1680 = vunpack.c.l.b16 %v1647
    %v1681 = vunpack.c.l.b16 %v1648
    %v1682 = vunpack.c.l.b16 %v1649
    %v1683 = vunpack.c.l.b16 %v1650
    %v1684 = vunpack.c.l.b16 %v1651
    %v1685 = vunpack.c.l.b16 %v1652
    %v1686 = vunpack.c.l.b16 %v1653
    %v1687 = vunpack.c.l.b16 %v1654
    %v1688 = vunpack.c.l.b16 %v1655
    %v1689 = vunpack.c.l.b16 %v1656
    %v1690 = vunpack.c.l.b16 %v1657
    %v1691 = vunpack.c.l.b16 %v1658
    %v1692 = vunpack.c.l.b16 %v1659
    %v1693 = vpack.c.b16 %v1678, %v1677
    %v1694 = vpack.c.b16 %v1680, %v1679
    %v1695 = vpack.c.b16 %v1682, %v1681
    %v1696 = vpack.c.b16 %v1684, %v1683
    %v1697 = vpack.c.b16 %v1686, %v1685
    %v1698 = vpack.c.b16 %v1688, %v1687
    %v1699 = vpack.c.b16 %v1690, %v1689
    %v1700 = vpack.c.b16 %v1692, %v1691
    %1709 = vmatprep.subr.bf16.mxu0 0
    %1710 = vmatpush1.bf16.msra.mxu0 %v1693
    %1711 = vmatprep.subr.bf16.mxu0 0
    %1712 = vmatpush1.bf16.msra.mxu0 %v1694
    %1713 = vmatprep.subr.bf16.mxu0 0
    %1714 = vmatpush1.bf16.msra.mxu0 %v1695
    %1715 = vmatprep.subr.bf16.mxu0 0
    %1716 = vmatpush1.bf16.msra.mxu0 %v1696
    %1717 = vmatprep.subr.bf16.mxu0 0
    %1718 = vmatpush1.bf16.msra.mxu0 %v1697
    %1719 = vmatprep.subr.bf16.mxu0 0
    %1720 = vmatpush1.bf16.msra.mxu0 %v1698
    %1721 = vmatprep.subr.bf16.mxu0 0
    %1722 = vmatpush1.bf16.msra.mxu0 %v1699
    %1723 = vmatprep.subr.bf16.mxu0 0
    %1724 = vmatpush1.bf16.msra.mxu0 %v1700
    %1725 = vmatprep.subr.bf16.mxu0 0
    %1726 = vmatpush1.bf16.msra.mxu0 0
    %1727 = vmatprep.subr.bf16.mxu0 0
    %1728 = vmatpush1.bf16.msra.mxu0 0
    %1729 = vmatprep.subr.bf16.mxu0 0
    %1730 = vmatpush1.bf16.msra.mxu0 0
    %1731 = vmatprep.subr.bf16.mxu0 0
    %1732 = vmatpush1.bf16.msra.mxu0 0
    %1733 = vmatprep.subr.bf16.mxu0 0
    %1734 = vmatpush1.bf16.msra.mxu0 0
    %1735 = vmatprep.subr.bf16.mxu0 0
    %1736 = vmatpush1.bf16.msra.mxu0 0
    %1737 = vmatprep.subr.bf16.mxu0 0
    %1738 = vmatpush1.bf16.msra.mxu0 0
    %1739 = vmatprep.subr.bf16.mxu0 0
    %1740 = vmatpush1.bf16.msra.mxu0 0
    %1741 = vmatprep.mubr.bf16.mxu0 0
    %1742 = vmatmul.mubr.bf16.gmra.mrb[0].mxu0 %v1660
    %v1743 = vpop.f32.mrb[0].mxu0
    %v1744 = vadd.f32 0.0, %v1743
    %v1745 = vpop.f32.mrb[0].mxu0
    %v1746 = vpop.f32.mrb[0].mxu0
    %v1747 = vpop.f32.mrb[0].mxu0
    %1748 = vdwg.mxu0
    %v1749 = vpack.c.bf16 %v1744, %v1744
    %v1750 = vld [vmem:[#allocation2 + $0x128] sm:$0xf]
    %v1751 = vld [vmem:[#allocation2 + $0x12c] sm:$0xf]
    %v1752 = vld [vmem:[#allocation2 + $0x130] sm:$0xf]
    %v1753 = vld [vmem:[#allocation2 + $0x134] sm:$0xf]
    %v1754 = vld [vmem:[#allocation2 + $0x138] sm:$0xf]
    %v1755 = vld [vmem:[#allocation2 + $0x13c] sm:$0xf]
    %v1756 = vld [vmem:[#allocation2 + $0x140] sm:$0xf]
    %v1757 = vld [vmem:[#allocation2 + $0x144] sm:$0xf]
    %v1758 = vld [vmem:[#allocation2 + $0x148] sm:$0xf]
    %v1759 = vld [vmem:[#allocation2 + $0x14c] sm:$0xf]
    %v1760 = vld [vmem:[#allocation2 + $0x150] sm:$0xf]
    %v1761 = vld [vmem:[#allocation2 + $0x154] sm:$0xf]
    %v1762 = vld [vmem:[#allocation2 + $0x158] sm:$0xf]
    %v1763 = vld [vmem:[#allocation2 + $0x15c] sm:$0xf]
    %v1764 = vld [vmem:[#allocation2 + $0x160] sm:$0xf]
    %v1765 = vld [vmem:[#allocation2 + $0x164] sm:$0xf]
    %v1782 = vunpack.c.l.b16 %v1750
    %v1783 = vunpack.c.l.b16 %v1751
    %v1784 = vunpack.c.l.b16 %v1752
    %v1785 = vunpack.c.l.b16 %v1753
    %v1786 = vunpack.c.l.b16 %v1754
    %v1787 = vunpack.c.l.b16 %v1755
    %v1788 = vunpack.c.l.b16 %v1756
    %v1789 = vunpack.c.l.b16 %v1757
    %v1790 = vunpack.c.l.b16 %v1758
    %v1791 = vunpack.c.l.b16 %v1759
    %v1792 = vunpack.c.l.b16 %v1760
    %v1793 = vunpack.c.l.b16 %v1761
    %v1794 = vunpack.c.l.b16 %v1762
    %v1795 = vunpack.c.l.b16 %v1763
    %v1796 = vunpack.c.l.b16 %v1764
    %v1797 = vunpack.c.l.b16 %v1765
    %v1798 = vpack.c.b16 %v1783, %v1782
    %v1799 = vpack.c.b16 %v1785, %v1784
    %v1800 = vpack.c.b16 %v1787, %v1786
    %v1801 = vpack.c.b16 %v1789, %v1788
    %v1802 = vpack.c.b16 %v1791, %v1790
    %v1803 = vpack.c.b16 %v1793, %v1792
    %v1804 = vpack.c.b16 %v1795, %v1794
    %v1805 = vpack.c.b16 %v1797, %v1796
    %1814 = vmatprep.subr.bf16.mxu0 0
    %1815 = vmatpush1.bf16.msra.mxu0 %v1798
    %1816 = vmatprep.subr.bf16.mxu0 0
    %1817 = vmatpush1.bf16.msra.mxu0 %v1799
    %1818 = vmatprep.subr.bf16.mxu0 0
    %1819 = vmatpush1.bf16.msra.mxu0 %v1800
    %1820 = vmatprep.subr.bf16.mxu0 0
    %1821 = vmatpush1.bf16.msra.mxu0 %v1801
    %1822 = vmatprep.subr.bf16.mxu0 0
    %1823 = vmatpush1.bf16.msra.mxu0 %v1802
    %1824 = vmatprep.subr.bf16.mxu0 0
    %1825 = vmatpush1.bf16.msra.mxu0 %v1803
    %1826 = vmatprep.subr.bf16.mxu0 0
    %1827 = vmatpush1.bf16.msra.mxu0 %v1804
    %1828 = vmatprep.subr.bf16.mxu0 0
    %1829 = vmatpush1.bf16.msra.mxu0 %v1805
    %1830 = vmatprep.subr.bf16.mxu0 0
    %1831 = vmatpush1.bf16.msra.mxu0 0
    %1832 = vmatprep.subr.bf16.mxu0 0
    %1833 = vmatpush1.bf16.msra.mxu0 0
    %1834 = vmatprep.subr.bf16.mxu0 0
    %1835 = vmatpush1.bf16.msra.mxu0 0
    %1836 = vmatprep.subr.bf16.mxu0 0
    %1837 = vmatpush1.bf16.msra.mxu0 0
    %1838 = vmatprep.subr.bf16.mxu0 0
    %1839 = vmatpush1.bf16.msra.mxu0 0
    %1840 = vmatprep.subr.bf16.mxu0 0
    %1841 = vmatpush1.bf16.msra.mxu0 0
    %1842 = vmatprep.subr.bf16.mxu0 0
    %1843 = vmatpush1.bf16.msra.mxu0 0
    %1844 = vmatprep.subr.bf16.mxu0 0
    %1845 = vmatpush1.bf16.msra.mxu0 0
    %1846 = vmatprep.mubr.bf16.mxu0 0
    %1847 = vmatmul.mubr.bf16.gmra.mrb[0].mxu0 %v1660
    %v1848 = vpop.f32.mrb[0].mxu0
    %v1849 = vadd.f32 0.0, %v1848
    %v1850 = vpop.f32.mrb[0].mxu0
    %v1851 = vpop.f32.mrb[0].mxu0
    %v1852 = vpop.f32.mrb[0].mxu0
    %1853 = vdwg.mxu0
    %v1855 = vsel %vm77, %v1643, 0
    %v1858 = vsel %vm1522, %v1749, 0
    %1860 = vmatprep.subr.bf16.mxu0 0
    %1861 = vmatpush1.bf16.msra.mxu0 %v1858
    %1862 = vmatprep.subr.bf16.mxu0 0
    %1863 = vmatpush1.bf16.msra.mxu0 0
    %1864 = vmatprep.subr.bf16.mxu0 0
    %1865 = vmatpush1.bf16.msra.mxu0 0
    %1866 = vmatprep.subr.bf16.mxu0 0
    %1867 = vmatpush1.bf16.msra.mxu0 0
    %1868 = vmatprep.subr.bf16.mxu0 0
    %1869 = vmatpush1.bf16.msra.mxu0 0
    %1870 = vmatprep.subr.bf16.mxu0 0
    %1871 = vmatpush1.bf16.msra.mxu0 0
    %1872 = vmatprep.subr.bf16.mxu0 0
    %1873 = vmatpush1.bf16.msra.mxu0 0
    %1874 = vmatprep.subr.bf16.mxu0 0
    %1875 = vmatpush1.bf16.msra.mxu0 0
    %1876 = vmatprep.subr.bf16.mxu0 0
    %1877 = vmatpush1.bf16.msra.mxu0 0
    %1878 = vmatprep.subr.bf16.mxu0 0
    %1879 = vmatpush1.bf16.msra.mxu0 0
    %1880 = vmatprep.subr.bf16.mxu0 0
    %1881 = vmatpush1.bf16.msra.mxu0 0
    %1882 = vmatprep.subr.bf16.mxu0 0
    %1883 = vmatpush1.bf16.msra.mxu0 0
    %1884 = vmatprep.subr.bf16.mxu0 0
    %1885 = vmatpush1.bf16.msra.mxu0 0
    %1886 = vmatprep.subr.bf16.mxu0 0
    %1887 = vmatpush1.bf16.msra.mxu0 0
    %1888 = vmatprep.subr.bf16.mxu0 0
    %1889 = vmatpush1.bf16.msra.mxu0 0
    %1890 = vmatprep.subr.bf16.mxu0 0
    %1891 = vmatpush1.bf16.msra.mxu0 0
    %1892 = vmatprep.mubr.bf16.mxu0 0
    %1893 = vmatmul.mubr.bf16.gmra.mrb[0].mxu0 %v1855
    %v1894 = vpop.f32.mrb[0].mxu0
    %v1895 = vadd.f32 %v1849, %v1894
    %v1896 = vpop.f32.mrb[0].mxu0
    %v1897 = vpop.f32.mrb[0].mxu0
    %v1898 = vpop.f32.mrb[0].mxu0
    %1899 = vdwg.mxu0
    %v1900 = vld [vmem:[#allocation4 + $0x28] sm:$0x1]
    %v1901 = vlaneseq
    %v1902 = vshrl.u32 %v1901, 7
    %v1903 = vsub.s32 0, %v1902
    %v1904 = vrot.slane %v1900, %v1903
    %v1905 = vadd.f32 %v1895, %v1904
    %v1906 = vmax.f32 %v1905, 0.0
    %v1907 = vld [vmem:[#allocation2 + $0x168] sm:$0xf]
    %v1908 = vld [vmem:[#allocation2 + $0x16c] sm:$0xf]
    %v1909 = vld [vmem:[#allocation2 + $0x170] sm:$0xf]
    %v1910 = vld [vmem:[#allocation2 + $0x174] sm:$0xf]
    %v1911 = vld [vmem:[#allocation2 + $0x178] sm:$0xf]
    %v1912 = vld [vmem:[#allocation2 + $0x17c] sm:$0xf]
    %v1913 = vld [vmem:[#allocation2 + $0x180] sm:$0xf]
    %v1914 = vld [vmem:[#allocation2 + $0x184] sm:$0xf]
    %v1915 = vld [vmem:[#allocation2 + $0x188] sm:$0xf]
    %v1916 = vld [vmem:[#allocation2 + $0x18c] sm:$0xf]
    %v1917 = vld [vmem:[#allocation2 + $0x190] sm:$0xf]
    %v1918 = vld [vmem:[#allocation2 + $0x194] sm:$0xf]
    %v1919 = vld [vmem:[#allocation2 + $0x198] sm:$0xf]
    %v1920 = vld [vmem:[#allocation2 + $0x19c] sm:$0xf]
    %v1921 = vld [vmem:[#allocation2 + $0x1a0] sm:$0xf]
    %v1922 = vld [vmem:[#allocation2 + $0x1a4] sm:$0xf]
    %v1923 = vpack.c.bf16 %v1906, %v1906
    %v1940 = vunpack.c.l.b16 %v1907
    %v1941 = vunpack.c.l.b16 %v1908
    %v1942 = vunpack.c.l.b16 %v1909
    %v1943 = vunpack.c.l.b16 %v1910
    %v1944 = vunpack.c.l.b16 %v1911
    %v1945 = vunpack.c.l.b16 %v1912
    %v1946 = vunpack.c.l.b16 %v1913
    %v1947 = vunpack.c.l.b16 %v1914
    %v1948 = vunpack.c.l.b16 %v1915
    %v1949 = vunpack.c.l.b16 %v1916
    %v1950 = vunpack.c.l.b16 %v1917
    %v1951 = vunpack.c.l.b16 %v1918
    %v1952 = vunpack.c.l.b16 %v1919
    %v1953 = vunpack.c.l.b16 %v1920
    %v1954 = vunpack.c.l.b16 %v1921
    %v1955 = vunpack.c.l.b16 %v1922
    %v1956 = vpack.c.b16 %v1941, %v1940
    %v1957 = vpack.c.b16 %v1943, %v1942
    %v1958 = vpack.c.b16 %v1945, %v1944
    %v1959 = vpack.c.b16 %v1947, %v1946
    %v1960 = vpack.c.b16 %v1949, %v1948
    %v1961 = vpack.c.b16 %v1951, %v1950
    %v1962 = vpack.c.b16 %v1953, %v1952
    %v1963 = vpack.c.b16 %v1955, %v1954
    %1972 = vmatprep.subr.bf16.mxu0 0
    %1973 = vmatpush1.bf16.msra.mxu0 %v1956
    %1974 = vmatprep.subr.bf16.mxu0 0
    %1975 = vmatpush1.bf16.msra.mxu0 %v1957
    %1976 = vmatprep.subr.bf16.mxu0 0
    %1977 = vmatpush1.bf16.msra.mxu0 %v1958
    %1978 = vmatprep.subr.bf16.mxu0 0
    %1979 = vmatpush1.bf16.msra.mxu0 %v1959
    %1980 = vmatprep.subr.bf16.mxu0 0
    %1981 = vmatpush1.bf16.msra.mxu0 %v1960
    %1982 = vmatprep.subr.bf16.mxu0 0
    %1983 = vmatpush1.bf16.msra.mxu0 %v1961
    %1984 = vmatprep.subr.bf16.mxu0 0
    %1985 = vmatpush1.bf16.msra.mxu0 %v1962
    %1986 = vmatprep.subr.bf16.mxu0 0
    %1987 = vmatpush1.bf16.msra.mxu0 %v1963
    %1988 = vmatprep.subr.bf16.mxu0 0
    %1989 = vmatpush1.bf16.msra.mxu0 0
    %1990 = vmatprep.subr.bf16.mxu0 0
    %1991 = vmatpush1.bf16.msra.mxu0 0
    %1992 = vmatprep.subr.bf16.mxu0 0
    %1993 = vmatpush1.bf16.msra.mxu0 0
    %1994 = vmatprep.subr.bf16.mxu0 0
    %1995 = vmatpush1.bf16.msra.mxu0 0
    %1996 = vmatprep.subr.bf16.mxu0 0
    %1997 = vmatpush1.bf16.msra.mxu0 0
    %1998 = vmatprep.subr.bf16.mxu0 0
    %1999 = vmatpush1.bf16.msra.mxu0 0
    %2000 = vmatprep.subr.bf16.mxu0 0
    %2001 = vmatpush1.bf16.msra.mxu0 0
    %2002 = vmatprep.subr.bf16.mxu0 0
    %2003 = vmatpush1.bf16.msra.mxu0 0
    %2004 = vmatprep.mubr.bf16.mxu0 0
    %2005 = vmatmul.mubr.bf16.gmra.mrb[0].mxu0 %v1923
    %v2006 = vpop.f32.mrb[0].mxu0
    %v2007 = vadd.f32 0.0, %v2006
    %v2008 = vpop.f32.mrb[0].mxu0
    %v2009 = vpop.f32.mrb[0].mxu0
    %v2010 = vpop.f32.mrb[0].mxu0
    %2011 = vdwg.mxu0
    %v2012 = vpack.c.bf16 %v2007, %v2007
    %v2013 = vld [vmem:[#allocation2 + $0x1a8] sm:$0xf]
    %v2014 = vld [vmem:[#allocation2 + $0x1ac] sm:$0xf]
    %v2015 = vld [vmem:[#allocation2 + $0x1b0] sm:$0xf]
    %v2016 = vld [vmem:[#allocation2 + $0x1b4] sm:$0xf]
    %v2017 = vld [vmem:[#allocation2 + $0x1b8] sm:$0xf]
    %v2018 = vld [vmem:[#allocation2 + $0x1bc] sm:$0xf]
    %v2019 = vld [vmem:[#allocation2 + $0x1c0] sm:$0xf]
    %v2020 = vld [vmem:[#allocation2 + $0x1c4] sm:$0xf]
    %v2021 = vld [vmem:[#allocation2 + $0x1c8] sm:$0xf]
    %v2022 = vld [vmem:[#allocation2 + $0x1cc] sm:$0xf]
    %v2023 = vld [vmem:[#allocation2 + $0x1d0] sm:$0xf]
    %v2024 = vld [vmem:[#allocation2 + $0x1d4] sm:$0xf]
    %v2025 = vld [vmem:[#allocation2 + $0x1d8] sm:$0xf]
    %v2026 = vld [vmem:[#allocation2 + $0x1dc] sm:$0xf]
    %v2027 = vld [vmem:[#allocation2 + $0x1e0] sm:$0xf]
    %v2028 = vld [vmem:[#allocation2 + $0x1e4] sm:$0xf]
    %v2045 = vunpack.c.l.b16 %v2013
    %v2046 = vunpack.c.l.b16 %v2014
    %v2047 = vunpack.c.l.b16 %v2015
    %v2048 = vunpack.c.l.b16 %v2016
    %v2049 = vunpack.c.l.b16 %v2017
    %v2050 = vunpack.c.l.b16 %v2018
    %v2051 = vunpack.c.l.b16 %v2019
    %v2052 = vunpack.c.l.b16 %v2020
    %v2053 = vunpack.c.l.b16 %v2021
    %v2054 = vunpack.c.l.b16 %v2022
    %v2055 = vunpack.c.l.b16 %v2023
    %v2056 = vunpack.c.l.b16 %v2024
    %v2057 = vunpack.c.l.b16 %v2025
    %v2058 = vunpack.c.l.b16 %v2026
    %v2059 = vunpack.c.l.b16 %v2027
    %v2060 = vunpack.c.l.b16 %v2028
    %v2061 = vpack.c.b16 %v2046, %v2045
    %v2062 = vpack.c.b16 %v2048, %v2047
    %v2063 = vpack.c.b16 %v2050, %v2049
    %v2064 = vpack.c.b16 %v2052, %v2051
    %v2065 = vpack.c.b16 %v2054, %v2053
    %v2066 = vpack.c.b16 %v2056, %v2055
    %v2067 = vpack.c.b16 %v2058, %v2057
    %v2068 = vpack.c.b16 %v2060, %v2059
    %2077 = vmatprep.subr.bf16.mxu0 0
    %2078 = vmatpush1.bf16.msra.mxu0 %v2061
    %2079 = vmatprep.subr.bf16.mxu0 0
    %2080 = vmatpush1.bf16.msra.mxu0 %v2062
    %2081 = vmatprep.subr.bf16.mxu0 0
    %2082 = vmatpush1.bf16.msra.mxu0 %v2063
    %2083 = vmatprep.subr.bf16.mxu0 0
    %2084 = vmatpush1.bf16.msra.mxu0 %v2064
    %2085 = vmatprep.subr.bf16.mxu0 0
    %2086 = vmatpush1.bf16.msra.mxu0 %v2065
    %2087 = vmatprep.subr.bf16.mxu0 0
    %2088 = vmatpush1.bf16.msra.mxu0 %v2066
    %2089 = vmatprep.subr.bf16.mxu0 0
    %2090 = vmatpush1.bf16.msra.mxu0 %v2067
    %2091 = vmatprep.subr.bf16.mxu0 0
    %2092 = vmatpush1.bf16.msra.mxu0 %v2068
    %2093 = vmatprep.subr.bf16.mxu0 0
    %2094 = vmatpush1.bf16.msra.mxu0 0
    %2095 = vmatprep.subr.bf16.mxu0 0
    %2096 = vmatpush1.bf16.msra.mxu0 0
    %2097 = vmatprep.subr.bf16.mxu0 0
    %2098 = vmatpush1.bf16.msra.mxu0 0
    %2099 = vmatprep.subr.bf16.mxu0 0
    %2100 = vmatpush1.bf16.msra.mxu0 0
    %2101 = vmatprep.subr.bf16.mxu0 0
    %2102 = vmatpush1.bf16.msra.mxu0 0
    %2103 = vmatprep.subr.bf16.mxu0 0
    %2104 = vmatpush1.bf16.msra.mxu0 0
    %2105 = vmatprep.subr.bf16.mxu0 0
    %2106 = vmatpush1.bf16.msra.mxu0 0
    %2107 = vmatprep.subr.bf16.mxu0 0
    %2108 = vmatpush1.bf16.msra.mxu0 0
    %2109 = vmatprep.mubr.bf16.mxu0 0
    %2110 = vmatmul.mubr.bf16.gmra.mrb[0].mxu0 %v1923
    %v2111 = vpop.f32.mrb[0].mxu0
    %v2112 = vadd.f32 0.0, %v2111
    %v2113 = vpop.f32.mrb[0].mxu0
    %v2114 = vpop.f32.mrb[0].mxu0
    %v2115 = vpop.f32.mrb[0].mxu0
    %2116 = vdwg.mxu0
    %v2118 = vsel %vm1522, %v2012, 0
    %2120 = vmatprep.subr.bf16.mxu0 0
    %2121 = vmatpush1.bf16.msra.mxu0 %v2118
    %2122 = vmatprep.subr.bf16.mxu0 0
    %2123 = vmatpush1.bf16.msra.mxu0 0
    %2124 = vmatprep.subr.bf16.mxu0 0
    %2125 = vmatpush1.bf16.msra.mxu0 0
    %2126 = vmatprep.subr.bf16.mxu0 0
    %2127 = vmatpush1.bf16.msra.mxu0 0
    %2128 = vmatprep.subr.bf16.mxu0 0
    %2129 = vmatpush1.bf16.msra.mxu0 0
    %2130 = vmatprep.subr.bf16.mxu0 0
    %2131 = vmatpush1.bf16.msra.mxu0 0
    %2132 = vmatprep.subr.bf16.mxu0 0
    %2133 = vmatpush1.bf16.msra.mxu0 0
    %2134 = vmatprep.subr.bf16.mxu0 0
    %2135 = vmatpush1.bf16.msra.mxu0 0
    %2136 = vmatprep.subr.bf16.mxu0 0
    %2137 = vmatpush1.bf16.msra.mxu0 0
    %2138 = vmatprep.subr.bf16.mxu0 0
    %2139 = vmatpush1.bf16.msra.mxu0 0
    %2140 = vmatprep.subr.bf16.mxu0 0
    %2141 = vmatpush1.bf16.msra.mxu0 0
    %2142 = vmatprep.subr.bf16.mxu0 0
    %2143 = vmatpush1.bf16.msra.mxu0 0
    %2144 = vmatprep.subr.bf16.mxu0 0
    %2145 = vmatpush1.bf16.msra.mxu0 0
    %2146 = vmatprep.subr.bf16.mxu0 0
    %2147 = vmatpush1.bf16.msra.mxu0 0
    %2148 = vmatprep.subr.bf16.mxu0 0
    %2149 = vmatpush1.bf16.msra.mxu0 0
    %2150 = vmatprep.subr.bf16.mxu0 0
    %2151 = vmatpush1.bf16.msra.mxu0 0
    %2152 = vmatprep.mubr.bf16.mxu0 0
    %2153 = vmatmul.mubr.bf16.gmra.mrb[0].mxu0 %v1855
    %v2154 = vpop.f32.mrb[0].mxu0
    %v2155 = vadd.f32 %v2112, %v2154
    %v2156 = vpop.f32.mrb[0].mxu0
    %v2157 = vpop.f32.mrb[0].mxu0
    %v2158 = vpop.f32.mrb[0].mxu0
    %2159 = vdwg.mxu0
    %v2160 = vld [vmem:[#allocation4 + $0x30] sm:$0x1]
    %v2161 = vlaneseq
    %v2162 = vshrl.u32 %v2161, 7
    %v2163 = vsub.s32 0, %v2162
    %v2164 = vrot.slane %v2160, %v2163
    %v2165 = vadd.f32 %v2155, %v2164
    %v2166 = vmax.f32 %v2165, 0.0
    %v2167 = vld [vmem:[#allocation6 + $0xe0] sm:$0xf]
    %v2168 = vpack.c.bf16 %v2166, %v2166
    %v2170 = vsel %vm77, %v2167, 0
    %v2173 = vsel %vm1522, %v2168, 0
    %2175 = vmatprep.subr.bf16.mxu0 0
    %2176 = vmatpush1.bf16.msra.mxu0 %v2173
    %2177 = vmatprep.subr.bf16.mxu0 0
    %2178 = vmatpush1.bf16.msra.mxu0 0
    %2179 = vmatprep.subr.bf16.mxu0 0
    %2180 = vmatpush1.bf16.msra.mxu0 0
    %2181 = vmatprep.subr.bf16.mxu0 0
    %2182 = vmatpush1.bf16.msra.mxu0 0
    %2183 = vmatprep.subr.bf16.mxu0 0
    %2184 = vmatpush1.bf16.msra.mxu0 0
    %2185 = vmatprep.subr.bf16.mxu0 0
    %2186 = vmatpush1.bf16.msra.mxu0 0
    %2187 = vmatprep.subr.bf16.mxu0 0
    %2188 = vmatpush1.bf16.msra.mxu0 0
    %2189 = vmatprep.subr.bf16.mxu0 0
    %2190 = vmatpush1.bf16.msra.mxu0 0
    %2191 = vmatprep.subr.bf16.mxu0 0
    %2192 = vmatpush1.bf16.msra.mxu0 0
    %2193 = vmatprep.subr.bf16.mxu0 0
    %2194 = vmatpush1.bf16.msra.mxu0 0
    %2195 = vmatprep.subr.bf16.mxu0 0
    %2196 = vmatpush1.bf16.msra.mxu0 0
    %2197 = vmatprep.subr.bf16.mxu0 0
    %2198 = vmatpush1.bf16.msra.mxu0 0
    %2199 = vmatprep.subr.bf16.mxu0 0
    %2200 = vmatpush1.bf16.msra.mxu0 0
    %2201 = vmatprep.subr.bf16.mxu0 0
    %2202 = vmatpush1.bf16.msra.mxu0 0
    %2203 = vmatprep.subr.bf16.mxu0 0
    %2204 = vmatpush1.bf16.msra.mxu0 0
    %2205 = vmatprep.subr.bf16.mxu0 0
    %2206 = vmatpush1.bf16.msra.mxu0 0
    %2207 = vmatprep.mubr.bf16.mxu0 0
    %2208 = vmatmul.mubr.bf16.gmra.mrb[0].mxu0 %v2170
    %v2209 = vpop.f32.mrb[0].mxu0
    %v2210 = vadd.f32 0.0, %v2209
    %v2211 = vpop.f32.mrb[0].mxu0
    %v2212 = vpop.f32.mrb[0].mxu0
    %v2213 = vpop.f32.mrb[0].mxu0
    %2214 = vdwg.mxu0
    %v2215 = vmul.f32 %v2210, %v2210
    %v2216 = vrot.slane %v2210, 4
    %v2217 = vadd.f32 %v2210, %v2216
    %v2218 = vrot.slane %v2217, 2
    %v2219 = vadd.f32 %v2217, %v2218
    %v2220 = vrot.slane %v2219, 1
    %v2221 = vadd.f32 %v2219, %v2220
    %v2222 = vrot.slane %v2215, 4
    %v2223 = vadd.f32 %v2215, %v2222
    %v2224 = vrot.slane %v2223, 2
    %v2225 = vadd.f32 %v2223, %v2224
    %v2226 = vrot.slane %v2225, 1
    %v2227 = vadd.f32 %v2225, %v2226
    %v2228 = vmul.f32 %v2221, 0.125
    %v2229 = vmul.f32 %v2227, 0.125
    %v2230 = vmul.f32 %v2228, %v2228
    %v2231 = vsub.f32 %v2229, %v2230
    %v2232 = vmax.f32 %v2231, 0.0
    %v2233 = vsub.f32 %v2210, %v2228
    %v2234 = vadd.f32 %v2232, 1e-05
    %v2235 = vrsqrt.pop %v2234
    %v2236 = vmul.f32 %v2233, %v2235
    %v2237 = vld [vmem:[#allocation2 + $0x1e8] sm:$0xf]
    %v2238 = vld [vmem:[#allocation2 + $0x1ec] sm:$0xf]
    %v2239 = vld [vmem:[#allocation2 + $0x1f0] sm:$0xf]
    %v2240 = vld [vmem:[#allocation2 + $0x1f4] sm:$0xf]
    %v2241 = vld [vmem:[#allocation2 + $0x1f8] sm:$0xf]
    %v2242 = vld [vmem:[#allocation2 + $0x1fc] sm:$0xf]
    %v2243 = vld [vmem:[#allocation2 + $0x200] sm:$0xf]
    %v2244 = vld [vmem:[#allocation2 + $0x204] sm:$0xf]
    %v2245 = vld [vmem:[#allocation2 + $0x208] sm:$0xf]
    %v2246 = vld [vmem:[#allocation2 + $0x20c] sm:$0xf]
    %v2247 = vld [vmem:[#allocation2 + $0x210] sm:$0xf]
    %v2248 = vld [vmem:[#allocation2 + $0x214] sm:$0xf]
    %v2249 = vld [vmem:[#allocation2 + $0x218] sm:$0xf]
    %v2250 = vld [vmem:[#allocation2 + $0x21c] sm:$0xf]
    %v2251 = vld [vmem:[#allocation2 + $0x220] sm:$0xf]
    %v2252 = vld [vmem:[#allocation2 + $0x224] sm:$0xf]
    %v2253 = vld [vmem:[#allocation2 + $0x228] sm:$0xf]
    %v2254 = vld [vmem:[#allocation2 + $0x22c] sm:$0xf]
    %v2255 = vld [vmem:[#allocation2 + $0x230] sm:$0xf]
    %v2256 = vld [vmem:[#allocation2 + $0x234] sm:$0xf]
    %v2257 = vld [vmem:[#allocation2 + $0x238] sm:$0xf]
    %v2258 = vld [vmem:[#allocation2 + $0x23c] sm:$0xf]
    %v2259 = vld [vmem:[#allocation2 + $0x240] sm:$0xf]
    %v2260 = vld [vmem:[#allocation2 + $0x244] sm:$0xf]
    %v2261 = vld [vmem:[#allocation2 + $0x248] sm:$0xf]
    %v2262 = vld [vmem:[#allocation2 + $0x24c] sm:$0xf]
    %v2263 = vld [vmem:[#allocation2 + $0x250] sm:$0xf]
    %v2264 = vld [vmem:[#allocation2 + $0x254] sm:$0xf]
    %v2265 = vld [vmem:[#allocation2 + $0x258] sm:$0xf]
    %v2266 = vld [vmem:[#allocation2 + $0x25c] sm:$0xf]
    %v2267 = vld [vmem:[#allocation2 + $0x260] sm:$0xf]
    %v2268 = vld [vmem:[#allocation2 + $0x264] sm:$0xf]
    %v2269 = vpack.c.bf16 %v2236, %v2236
    %v2302 = vunpack.c.l.b16 %v2237
    %v2303 = vunpack.c.l.b16 %v2238
    %v2304 = vunpack.c.l.b16 %v2239
    %v2305 = vunpack.c.l.b16 %v2240
    %v2306 = vunpack.c.l.b16 %v2241
    %v2307 = vunpack.c.l.b16 %v2242
    %v2308 = vunpack.c.l.b16 %v2243
    %v2309 = vunpack.c.l.b16 %v2244
    %v2310 = vunpack.c.l.b16 %v2245
    %v2311 = vunpack.c.l.b16 %v2246
    %v2312 = vunpack.c.l.b16 %v2247
    %v2313 = vunpack.c.l.b16 %v2248
    %v2314 = vunpack.c.l.b16 %v2249
    %v2315 = vunpack.c.l.b16 %v2250
    %v2316 = vunpack.c.l.b16 %v2251
    %v2317 = vunpack.c.l.b16 %v2252
    %v2318 = vunpack.c.l.b16 %v2253
    %v2319 = vunpack.c.l.b16 %v2254
    %v2320 = vunpack.c.l.b16 %v2255
    %v2321 = vunpack.c.l.b16 %v2256
    %v2322 = vunpack.c.l.b16 %v2257
    %v2323 = vunpack.c.l.b16 %v2258
    %v2324 = vunpack.c.l.b16 %v2259
    %v2325 = vunpack.c.l.b16 %v2260
    %v2326 = vunpack.c.l.b16 %v2261
    %v2327 = vunpack.c.l.b16 %v2262
    %v2328 = vunpack.c.l.b16 %v2263
    %v2329 = vunpack.c.l.b16 %v2264
    %v2330 = vunpack.c.l.b16 %v2265
    %v2331 = vunpack.c.l.b16 %v2266
    %v2332 = vunpack.c.l.b16 %v2267
    %v2333 = vunpack.c.l.b16 %v2268
    %v2334 = vpack.c.b16 %v2303, %v2302
    %v2335 = vpack.c.b16 %v2305, %v2304
    %v2336 = vpack.c.b16 %v2307, %v2306
    %v2337 = vpack.c.b16 %v2309, %v2308
    %v2338 = vpack.c.b16 %v2311, %v2310
    %v2339 = vpack.c.b16 %v2313, %v2312
    %v2340 = vpack.c.b16 %v2315, %v2314
    %v2341 = vpack.c.b16 %v2317, %v2316
    %v2342 = vpack.c.b16 %v2319, %v2318
    %v2343 = vpack.c.b16 %v2321, %v2320
    %v2344 = vpack.c.b16 %v2323, %v2322
    %v2345 = vpack.c.b16 %v2325, %v2324
    %v2346 = vpack.c.b16 %v2327, %v2326
    %v2347 = vpack.c.b16 %v2329, %v2328
    %v2348 = vpack.c.b16 %v2331, %v2330
    %v2349 = vpack.c.b16 %v2333, %v2332
    %2366 = vmatprep.subr.bf16.mxu0 0
    %2367 = vmatpush1.bf16.msra.mxu0 %v2334
    %2368 = vmatprep.subr.bf16.mxu0 0
    %2369 = vmatpush1.bf16.msra.mxu0 %v2335
    %2370 = vmatprep.subr.bf16.mxu0 0
    %2371 = vmatpush1.bf16.msra.mxu0 %v2336
    %2372 = vmatprep.subr.bf16.mxu0 0
    %2373 = vmatpush1.bf16.msra.mxu0 %v2337
    %2374 = vmatprep.subr.bf16.mxu0 0
    %2375 = vmatpush1.bf16.msra.mxu0 %v2338
    %2376 = vmatprep.subr.bf16.mxu0 0
    %2377 = vmatpush1.bf16.msra.mxu0 %v2339
    %2378 = vmatprep.subr.bf16.mxu0 0
    %2379 = vmatpush1.bf16.msra.mxu0 %v2340
    %2380 = vmatprep.subr.bf16.mxu0 0
    %2381 = vmatpush1.bf16.msra.mxu0 %v2341
    %2382 = vmatprep.subr.bf16.mxu0 0
    %2383 = vmatpush1.bf16.msra.mxu0 %v2342
    %2384 = vmatprep.subr.bf16.mxu0 0
    %2385 = vmatpush1.bf16.msra.mxu0 %v2343
    %2386 = vmatprep.subr.bf16.mxu0 0
    %2387 = vmatpush1.bf16.msra.mxu0 %v2344
    %2388 = vmatprep.subr.bf16.mxu0 0
    %2389 = vmatpush1.bf16.msra.mxu0 %v2345
    %2390 = vmatprep.subr.bf16.mxu0 0
    %2391 = vmatpush1.bf16.msra.mxu0 %v2346
    %2392 = vmatprep.subr.bf16.mxu0 0
    %2393 = vmatpush1.bf16.msra.mxu0 %v2347
    %2394 = vmatprep.subr.bf16.mxu0 0
    %2395 = vmatpush1.bf16.msra.mxu0 %v2348
    %2396 = vmatprep.subr.bf16.mxu0 0
    %2397 = vmatpush1.bf16.msra.mxu0 %v2349
    %2398 = vmatprep.mubr.bf16.mxu0 %v1596
    %2399 = vmatmul.mubr.bf16.gmra.mrb[0].mxu0 %v2269
    %v2400 = vpop.f32.mrb[0].mxu0
    %v2401 = vadd.f32 0.0, %v2400
    %v2402 = vpop.f32.mrb[0].mxu0
    %v2403 = vpop.f32.mrb[0].mxu0
    %v2404 = vpop.f32.mrb[0].mxu0
    %2405 = vdwg.mxu0
    %v2406 = vpack.c.bf16 %v2401, %v2401
    %v2407 = vld [vmem:[#allocation2 + $0x268] sm:$0xf]
    %v2408 = vld [vmem:[#allocation2 + $0x26c] sm:$0xf]
    %v2409 = vld [vmem:[#allocation2 + $0x270] sm:$0xf]
    %v2410 = vld [vmem:[#allocation2 + $0x274] sm:$0xf]
    %v2411 = vld [vmem:[#allocation2 + $0x278] sm:$0xf]
    %v2412 = vld [vmem:[#allocation2 + $0x27c] sm:$0xf]
    %v2413 = vld [vmem:[#allocation2 + $0x280] sm:$0xf]
    %v2414 = vld [vmem:[#allocation2 + $0x284] sm:$0xf]
    %v2415 = vld [vmem:[#allocation2 + $0x288] sm:$0xf]
    %v2416 = vld [vmem:[#allocation2 + $0x28c] sm:$0xf]
    %v2417 = vld [vmem:[#allocation2 + $0x290] sm:$0xf]
    %v2418 = vld [vmem:[#allocation2 + $0x294] sm:$0xf]
    %v2419 = vld [vmem:[#allocation2 + $0x298] sm:$0xf]
    %v2420 = vld [vmem:[#allocation2 + $0x29c] sm:$0xf]
    %v2421 = vld [vmem:[#allocation2 + $0x2a0] sm:$0xf]
    %v2422 = vld [vmem:[#allocation2 + $0x2a4] sm:$0xf]
    %v2423 = vld [vmem:[#allocation2 + $0x2a8] sm:$0xf]
    %v2424 = vld [vmem:[#allocation2 + $0x2ac] sm:$0xf]
    %v2425 = vld [vmem:[#allocation2 + $0x2b0] sm:$0xf]
    %v2426 = vld [vmem:[#allocation2 + $0x2b4] sm:$0xf]
    %v2427 = vld [vmem:[#allocation2 + $0x2b8] sm:$0xf]
    %v2428 = vld [vmem:[#allocation2 + $0x2bc] sm:$0xf]
    %v2429 = vld [vmem:[#allocation2 + $0x2c0] sm:$0xf]
    %v2430 = vld [vmem:[#allocation2 + $0x2c4] sm:$0xf]
    %v2431 = vld [vmem:[#allocation2 + $0x2c8] sm:$0xf]
    %v2432 = vld [vmem:[#allocation2 + $0x2cc] sm:$0xf]
    %v2433 = vld [vmem:[#allocation2 + $0x2d0] sm:$0xf]
    %v2434 = vld [vmem:[#allocation2 + $0x2d4] sm:$0xf]
    %v2435 = vld [vmem:[#allocation2 + $0x2d8] sm:$0xf]
    %v2436 = vld [vmem:[#allocation2 + $0x2dc] sm:$0xf]
    %v2437 = vld [vmem:[#allocation2 + $0x2e0] sm:$0xf]
    %v2438 = vld [vmem:[#allocation2 + $0x2e4] sm:$0xf]
    %v2471 = vunpack.c.l.b16 %v2407
    %v2472 = vunpack.c.l.b16 %v2408
    %v2473 = vunpack.c.l.b16 %v2409
    %v2474 = vunpack.c.l.b16 %v2410
    %v2475 = vunpack.c.l.b16 %v2411
    %v2476 = vunpack.c.l.b16 %v2412
    %v2477 = vunpack.c.l.b16 %v2413
    %v2478 = vunpack.c.l.b16 %v2414
    %v2479 = vunpack.c.l.b16 %v2415
    %v2480 = vunpack.c.l.b16 %v2416
    %v2481 = vunpack.c.l.b16 %v2417
    %v2482 = vunpack.c.l.b16 %v2418
    %v2483 = vunpack.c.l.b16 %v2419
    %v2484 = vunpack.c.l.b16 %v2420
    %v2485 = vunpack.c.l.b16 %v2421
    %v2486 = vunpack.c.l.b16 %v2422
    %v2487 = vunpack.c.l.b16 %v2423
    %v2488 = vunpack.c.l.b16 %v2424
    %v2489 = vunpack.c.l.b16 %v2425
    %v2490 = vunpack.c.l.b16 %v2426
    %v2491 = vunpack.c.l.b16 %v2427
    %v2492 = vunpack.c.l.b16 %v2428
    %v2493 = vunpack.c.l.b16 %v2429
    %v2494 = vunpack.c.l.b16 %v2430
    %v2495 = vunpack.c.l.b16 %v2431
    %v2496 = vunpack.c.l.b16 %v2432
    %v2497 = vunpack.c.l.b16 %v2433
    %v2498 = vunpack.c.l.b16 %v2434
    %v2499 = vunpack.c.l.b16 %v2435
    %v2500 = vunpack.c.l.b16 %v2436
    %v2501 = vunpack.c.l.b16 %v2437
    %v2502 = vunpack.c.l.b16 %v2438
    %v2503 = vpack.c.b16 %v2472, %v2471
    %v2504 = vpack.c.b16 %v2474, %v2473
    %v2505 = vpack.c.b16 %v2476, %v2475
    %v2506 = vpack.c.b16 %v2478, %v2477
    %v2507 = vpack.c.b16 %v2480, %v2479
    %v2508 = vpack.c.b16 %v2482, %v2481
    %v2509 = vpack.c.b16 %v2484, %v2483
    %v2510 = vpack.c.b16 %v2486, %v2485
    %v2511 = vpack.c.b16 %v2488, %v2487
    %v2512 = vpack.c.b16 %v2490, %v2489
    %v2513 = vpack.c.b16 %v2492, %v2491
    %v2514 = vpack.c.b16 %v2494, %v2493
    %v2515 = vpack.c.b16 %v2496, %v2495
    %v2516 = vpack.c.b16 %v2498, %v2497
    %v2517 = vpack.c.b16 %v2500, %v2499
    %v2518 = vpack.c.b16 %v2502, %v2501
    %2535 = vmatprep.subr.bf16.mxu0 0
    %2536 = vmatpush1.bf16.msra.mxu0 %v2503
    %2537 = vmatprep.subr.bf16.mxu0 0
    %2538 = vmatpush1.bf16.msra.mxu0 %v2504
    %2539 = vmatprep.subr.bf16.mxu0 0
    %2540 = vmatpush1.bf16.msra.mxu0 %v2505
    %2541 = vmatprep.subr.bf16.mxu0 0
    %2542 = vmatpush1.bf16.msra.mxu0 %v2506
    %2543 = vmatprep.subr.bf16.mxu0 0
    %2544 = vmatpush1.bf16.msra.mxu0 %v2507
    %2545 = vmatprep.subr.bf16.mxu0 0
    %2546 = vmatpush1.bf16.msra.mxu0 %v2508
    %2547 = vmatprep.subr.bf16.mxu0 0
    %2548 = vmatpush1.bf16.msra.mxu0 %v2509
    %2549 = vmatprep.subr.bf16.mxu0 0
    %2550 = vmatpush1.bf16.msra.mxu0 %v2510
    %2551 = vmatprep.subr.bf16.mxu0 0
    %2552 = vmatpush1.bf16.msra.mxu0 %v2511
    %2553 = vmatprep.subr.bf16.mxu0 0
    %2554 = vmatpush1.bf16.msra.mxu0 %v2512
    %2555 = vmatprep.subr.bf16.mxu0 0
    %2556 = vmatpush1.bf16.msra.mxu0 %v2513
    %2557 = vmatprep.subr.bf16.mxu0 0
    %2558 = vmatpush1.bf16.msra.mxu0 %v2514
    %2559 = vmatprep.subr.bf16.mxu0 0
    %2560 = vmatpush1.bf16.msra.mxu0 %v2515
    %2561 = vmatprep.subr.bf16.mxu0 0
    %2562 = vmatpush1.bf16.msra.mxu0 %v2516
    %2563 = vmatprep.subr.bf16.mxu0 0
    %2564 = vmatpush1.bf16.msra.mxu0 %v2517
    %2565 = vmatprep.subr.bf16.mxu0 0
    %2566 = vmatpush1.bf16.msra.mxu0 %v2518
    %2567 = vmatprep.mubr.bf16.mxu0 %v1596
    %2568 = vmatmul.mubr.bf16.gmra.mrb[0].mxu0 %v2269
    %v2569 = vpop.f32.mrb[0].mxu0
    %v2570 = vadd.f32 0.0, %v2569
    %v2571 = vpop.f32.mrb[0].mxu0
    %v2572 = vpop.f32.mrb[0].mxu0
    %v2573 = vpop.f32.mrb[0].mxu0
    %2574 = vdwg.mxu0
    %v2576 = vsel %vm1522, %v2406, 0
    %2578 = vmatprep.subr.bf16.mxu0 0
    %2579 = vmatpush1.bf16.msra.mxu0 %v2576
    %2580 = vmatprep.subr.bf16.mxu0 0
    %2581 = vmatpush1.bf16.msra.mxu0 0
    %2582 = vmatprep.subr.bf16.mxu0 0
    %2583 = vmatpush1.bf16.msra.mxu0 0
    %2584 = vmatprep.subr.bf16.mxu0 0
    %2585 = vmatpush1.bf16.msra.mxu0 0
    %2586 = vmatprep.subr.bf16.mxu0 0
    %2587 = vmatpush1.bf16.msra.mxu0 0
    %2588 = vmatprep.subr.bf16.mxu0 0
    %2589 = vmatpush1.bf16.msra.mxu0 0
    %2590 = vmatprep.subr.bf16.mxu0 0
    %2591 = vmatpush1.bf16.msra.mxu0 0
    %2592 = vmatprep.subr.bf16.mxu0 0
    %2593 = vmatpush1.bf16.msra.mxu0 0
    %2594 = vmatprep.subr.bf16.mxu0 0
    %2595 = vmatpush1.bf16.msra.mxu0 0
    %2596 = vmatprep.subr.bf16.mxu0 0
    %2597 = vmatpush1.bf16.msra.mxu0 0
    %2598 = vmatprep.subr.bf16.mxu0 0
    %2599 = vmatpush1.bf16.msra.mxu0 0
    %2600 = vmatprep.subr.bf16.mxu0 0
    %2601 = vmatpush1.bf16.msra.mxu0 0
    %2602 = vmatprep.subr.bf16.mxu0 0
    %2603 = vmatpush1.bf16.msra.mxu0 0
    %2604 = vmatprep.subr.bf16.mxu0 0
    %2605 = vmatpush1.bf16.msra.mxu0 0
    %2606 = vmatprep.subr.bf16.mxu0 0
    %2607 = vmatpush1.bf16.msra.mxu0 0
    %2608 = vmatprep.subr.bf16.mxu0 0
    %2609 = vmatpush1.bf16.msra.mxu0 0
    %2610 = vmatprep.mubr.bf16.mxu0 0
    %2611 = vmatmul.mubr.bf16.gmra.mrb[0].mxu0 %v1520
    %v2612 = vpop.f32.mrb[0].mxu0
    %v2613 = vadd.f32 %v2570, %v2612
    %v2614 = vpop.f32.mrb[0].mxu0
    %v2615 = vpop.f32.mrb[0].mxu0
    %v2616 = vpop.f32.mrb[0].mxu0
    %2617 = vdwg.mxu0
    %v2618 = vld [vmem:[#allocation4 + $0x38] sm:$0x1]
    %v2619 = vlaneseq
    %v2620 = vshrl.u32 %v2619, 7
    %v2621 = vsub.s32 0, %v2620
    %v2622 = vrot.slane %v2618, %v2621
    %v2623 = vadd.f32 %v2613, %v2622
    %v2624 = vmax.f32 %v2623, 0.0
    %v2625 = vld [vmem:[#allocation6 + $0xd8] sm:$0xf]
    %v2626 = vld [vmem:[#allocation6 + $0xdc] sm:$0xf]
    %v2627 = vpack.c.bf16 %v2624, %v2624
    %v2630 = vunpack.c.l.b16 %v2625
    %v2631 = vunpack.c.l.b16 %v2626
    %v2632 = vpack.c.b16 %v2631, %v2630
    %v2634 = vsel %vm77, %v2632, 0
    %v2637 = vsel %vm1522, %v2627, 0
    %2639 = vmatprep.subr.bf16.mxu0 0
    %2640 = vmatpush1.bf16.msra.mxu0 %v2637
    %2641 = vmatprep.subr.bf16.mxu0 0
    %2642 = vmatpush1.bf16.msra.mxu0 0
    %2643 = vmatprep.subr.bf16.mxu0 0
    %2644 = vmatpush1.bf16.msra.mxu0 0
    %2645 = vmatprep.subr.bf16.mxu0 0
    %2646 = vmatpush1.bf16.msra.mxu0 0
    %2647 = vmatprep.subr.bf16.mxu0 0
    %2648 = vmatpush1.bf16.msra.mxu0 0
    %2649 = vmatprep.subr.bf16.mxu0 0
    %2650 = vmatpush1.bf16.msra.mxu0 0
    %2651 = vmatprep.subr.bf16.mxu0 0
    %2652 = vmatpush1.bf16.msra.mxu0 0
    %2653 = vmatprep.subr.bf16.mxu0 0
    %2654 = vmatpush1.bf16.msra.mxu0 0
    %2655 = vmatprep.subr.bf16.mxu0 0
    %2656 = vmatpush1.bf16.msra.mxu0 0
    %2657 = vmatprep.subr.bf16.mxu0 0
    %2658 = vmatpush1.bf16.msra.mxu0 0
    %2659 = vmatprep.subr.bf16.mxu0 0
    %2660 = vmatpush1.bf16.msra.mxu0 0
    %2661 = vmatprep.subr.bf16.mxu0 0
    %2662 = vmatpush1.bf16.msra.mxu0 0
    %2663 = vmatprep.subr.bf16.mxu0 0
    %2664 = vmatpush1.bf16.msra.mxu0 0
    %2665 = vmatprep.subr.bf16.mxu0 0
    %2666 = vmatpush1.bf16.msra.mxu0 0
    %2667 = vmatprep.subr.bf16.mxu0 0
    %2668 = vmatpush1.bf16.msra.mxu0 0
    %2669 = vmatprep.subr.bf16.mxu0 0
    %2670 = vmatpush1.bf16.msra.mxu0 0
    %2671 = vmatprep.mubr.bf16.mxu0 0
    %2672 = vmatmul.mubr.bf16.gmra.mrb[0].mxu0 %v2634
    %v2673 = vpop.f32.mrb[0].mxu0
    %v2674 = vadd.f32 0.0, %v2673
    %v2675 = vpop.f32.mrb[0].mxu0
    %v2676 = vpop.f32.mrb[0].mxu0
    %v2677 = vadd.f32 0.0, %v2676
    %v2678 = vpop.f32.mrb[0].mxu0
    %2679 = vdwg.mxu0
    %v2680 = vmul.f32 %v2674, %v2674
    %v2681 = vmul.f32 %v2677, %v2677
    %v2682 = vadd.f32 %v2674, %v2677
    %v2683 = vrot.slane %v2682, 4
    %v2684 = vadd.f32 %v2682, %v2683
    %v2685 = vrot.slane %v2684, 2
    %v2686 = vadd.f32 %v2684, %v2685
    %v2687 = vrot.slane %v2686, 1
    %v2688 = vadd.f32 %v2686, %v2687
    %v2689 = vadd.f32 %v2680, %v2681
    %v2690 = vrot.slane %v2689, 4
    %v2691 = vadd.f32 %v2689, %v2690
    %v2692 = vrot.slane %v2691, 2
    %v2693 = vadd.f32 %v2691, %v2692
    %v2694 = vrot.slane %v2693, 1
    %v2695 = vadd.f32 %v2693, %v2694
    %v2696 = vmul.f32 %v2688, 0.0625
    %v2697 = vmul.f32 %v2695, 0.0625
    %v2698 = vmul.f32 %v2696, %v2696
    %v2699 = vsub.f32 %v2697, %v2698
    %v2700 = vmax.f32 %v2699, 0.0
    %v2701 = vsub.f32 %v2674, %v2696
    %v2702 = vsub.f32 %v2677, %v2696
    %v2703 = vadd.f32 %v2700, 1e-05
    %v2704 = vrsqrt.pop %v2703
    %v2705 = vmul.f32 %v2701, %v2704
    %v2706 = vmul.f32 %v2702, %v2704
    %v2707 = vld [vmem:[#allocation2 + $0x2e8] sm:$0xf]
    %v2708 = vld [vmem:[#allocation2 + $0x2ec] sm:$0xf]
    %v2709 = vld [vmem:[#allocation2 + $0x2f0] sm:$0xf]
    %v2710 = vld [vmem:[#allocation2 + $0x2f4] sm:$0xf]
    %v2711 = vld [vmem:[#allocation2 + $0x2f8] sm:$0xf]
    %v2712 = vld [vmem:[#allocation2 + $0x2fc] sm:$0xf]
    %v2713 = vld [vmem:[#allocation2 + $0x300] sm:$0xf]
    %v2714 = vld [vmem:[#allocation2 + $0x304] sm:$0xf]
    %v2715 = vld [vmem:[#allocation2 + $0x308] sm:$0xf]
    %v2716 = vld [vmem:[#allocation2 + $0x30c] sm:$0xf]
    %v2717 = vld [vmem:[#allocation2 + $0x310] sm:$0xf]
    %v2718 = vld [vmem:[#allocation2 + $0x314] sm:$0xf]
    %v2719 = vld [vmem:[#allocation2 + $0x318] sm:$0xf]
    %v2720 = vld [vmem:[#allocation2 + $0x31c] sm:$0xf]
    %v2721 = vld [vmem:[#allocation2 + $0x320] sm:$0xf]
    %v2722 = vld [vmem:[#allocation2 + $0x324] sm:$0xf]
    %v2723 = vld [vmem:[#allocation2 + $0x328] sm:$0xf]
    %v2724 = vld [vmem:[#allocation2 + $0x32c] sm:$0xf]
    %v2725 = vld [vmem:[#allocation2 + $0x330] sm:$0xf]
    %v2726 = vld [vmem:[#allocation2 + $0x334] sm:$0xf]
    %v2727 = vld [vmem:[#allocation2 + $0x338] sm:$0xf]
    %v2728 = vld [vmem:[#allocation2 + $0x33c] sm:$0xf]
    %v2729 = vld [vmem:[#allocation2 + $0x340] sm:$0xf]
    %v2730 = vld [vmem:[#allocation2 + $0x344] sm:$0xf]
    %v2731 = vpack.c.bf16 %v2706, %v2705
    %v2756 = vunpack.c.l.b16 %v2707
    %v2757 = vunpack.c.l.b16 %v2708
    %v2758 = vunpack.c.l.b16 %v2709
    %v2759 = vunpack.c.l.b16 %v2710
    %v2760 = vunpack.c.l.b16 %v2711
    %v2761 = vunpack.c.l.b16 %v2712
    %v2762 = vunpack.c.l.b16 %v2713
    %v2763 = vunpack.c.l.b16 %v2714
    %v2764 = vunpack.c.l.b16 %v2715
    %v2765 = vunpack.c.l.b16 %v2716
    %v2766 = vunpack.c.l.b16 %v2717
    %v2767 = vunpack.c.l.b16 %v2718
    %v2768 = vunpack.c.l.b16 %v2719
    %v2769 = vunpack.c.l.b16 %v2720
    %v2770 = vunpack.c.l.b16 %v2721
    %v2771 = vunpack.c.l.b16 %v2722
    %v2772 = vunpack.c.l.b16 %v2723
    %v2773 = vunpack.c.l.b16 %v2724
    %v2774 = vunpack.c.l.b16 %v2725
    %v2775 = vunpack.c.l.b16 %v2726
    %v2776 = vunpack.c.l.b16 %v2727
    %v2777 = vunpack.c.l.b16 %v2728
    %v2778 = vunpack.c.l.b16 %v2729
    %v2779 = vunpack.c.l.b16 %v2730
    %v2780 = vpack.c.b16 %v2757, %v2756
    %v2781 = vpack.c.b16 %v2759, %v2758
    %v2782 = vpack.c.b16 %v2761, %v2760
    %v2783 = vpack.c.b16 %v2763, %v2762
    %v2784 = vpack.c.b16 %v2765, %v2764
    %v2785 = vpack.c.b16 %v2767, %v2766
    %v2786 = vpack.c.b16 %v2769, %v2768
    %v2787 = vpack.c.b16 %v2771, %v2770
    %v2788 = vpack.c.b16 %v2773, %v2772
    %v2789 = vpack.c.b16 %v2775, %v2774
    %v2790 = vpack.c.b16 %v2777, %v2776
    %v2791 = vpack.c.b16 %v2779, %v2778
    %v2805 = vsel %vm369, %v1325, 0
    %2807 = vmatprep.subr.bf16.mxu0 0
    %2808 = vmatpush1.bf16.msra.mxu0 %v2780
    %2809 = vmatprep.subr.bf16.mxu0 0
    %2810 = vmatpush1.bf16.msra.mxu0 %v2781
    %2811 = vmatprep.subr.bf16.mxu0 0
    %2812 = vmatpush1.bf16.msra.mxu0 %v2782
    %2813 = vmatprep.subr.bf16.mxu0 0
    %2814 = vmatpush1.bf16.msra.mxu0 %v2783
    %2815 = vmatprep.subr.bf16.mxu0 0
    %2816 = vmatpush1.bf16.msra.mxu0 %v2784
    %2817 = vmatprep.subr.bf16.mxu0 0
    %2818 = vmatpush1.bf16.msra.mxu0 %v2785
    %2819 = vmatprep.subr.bf16.mxu0 0
    %2820 = vmatpush1.bf16.msra.mxu0 %v2786
    %2821 = vmatprep.subr.bf16.mxu0 0
    %2822 = vmatpush1.bf16.msra.mxu0 %v2787
    %2823 = vmatprep.subr.bf16.mxu0 0
    %2824 = vmatpush1.bf16.msra.mxu0 %v2788
    %2825 = vmatprep.subr.bf16.mxu0 0
    %2826 = vmatpush1.bf16.msra.mxu0 %v2789
    %2827 = vmatprep.subr.bf16.mxu0 0
    %2828 = vmatpush1.bf16.msra.mxu0 %v2790
    %2829 = vmatprep.subr.bf16.mxu0 0
    %2830 = vmatpush1.bf16.msra.mxu0 %v2791
    %2831 = vmatprep.subr.bf16.mxu0 0
    %2832 = vmatpush1.bf16.msra.mxu0 0
    %2833 = vmatprep.subr.bf16.mxu0 0
    %2834 = vmatpush1.bf16.msra.mxu0 0
    %2835 = vmatprep.subr.bf16.mxu0 0
    %2836 = vmatpush1.bf16.msra.mxu0 0
    %2837 = vmatprep.subr.bf16.mxu0 0
    %2838 = vmatpush1.bf16.msra.mxu0 0
    %2839 = vmatprep.mubr.bf16.mxu0 %v2805
    %2840 = vmatmul.mubr.bf16.gmra.mrb[0].mxu0 %v2731
    %v2841 = vpop.f32.mrb[0].mxu0
    %v2842 = vadd.f32 0.0, %v2841
    %v2843 = vpop.f32.mrb[0].mxu0
    %v2844 = vpop.f32.mrb[0].mxu0
    %v2845 = vadd.f32 0.0, %v2844
    %v2846 = vpop.f32.mrb[0].mxu0
    %2847 = vdwg.mxu0
    %v2848 = vpack.c.bf16 %v2845, %v2842
    %v2849 = vld [vmem:[#allocation2 + $0x348] sm:$0xf]
    %v2850 = vld [vmem:[#allocation2 + $0x34c] sm:$0xf]
    %v2851 = vld [vmem:[#allocation2 + $0x350] sm:$0xf]
    %v2852 = vld [vmem:[#allocation2 + $0x354] sm:$0xf]
    %v2853 = vld [vmem:[#allocation2 + $0x358] sm:$0xf]
    %v2854 = vld [vmem:[#allocation2 + $0x35c] sm:$0xf]
    %v2855 = vld [vmem:[#allocation2 + $0x360] sm:$0xf]
    %v2856 = vld [vmem:[#allocation2 + $0x364] sm:$0xf]
    %v2857 = vld [vmem:[#allocation2 + $0x368] sm:$0xf]
    %v2858 = vld [vmem:[#allocation2 + $0x36c] sm:$0xf]
    %v2859 = vld [vmem:[#allocation2 + $0x370] sm:$0xf]
    %v2860 = vld [vmem:[#allocation2 + $0x374] sm:$0xf]
    %v2861 = vld [vmem:[#allocation2 + $0x378] sm:$0xf]
    %v2862 = vld [vmem:[#allocation2 + $0x37c] sm:$0xf]
    %v2863 = vld [vmem:[#allocation2 + $0x380] sm:$0xf]
    %v2864 = vld [vmem:[#allocation2 + $0x384] sm:$0xf]
    %v2865 = vld [vmem:[#allocation2 + $0x388] sm:$0xf]
    %v2866 = vld [vmem:[#allocation2 + $0x38c] sm:$0xf]
    %v2867 = vld [vmem:[#allocation2 + $0x390] sm:$0xf]
    %v2868 = vld [vmem:[#allocation2 + $0x394] sm:$0xf]
    %v2869 = vld [vmem:[#allocation2 + $0x398] sm:$0xf]
    %v2870 = vld [vmem:[#allocation2 + $0x39c] sm:$0xf]
    %v2871 = vld [vmem:[#allocation2 + $0x3a0] sm:$0xf]
    %v2872 = vld [vmem:[#allocation2 + $0x3a4] sm:$0xf]
    %v2897 = vunpack.c.l.b16 %v2849
    %v2898 = vunpack.c.l.b16 %v2850
    %v2899 = vunpack.c.l.b16 %v2851
    %v2900 = vunpack.c.l.b16 %v2852
    %v2901 = vunpack.c.l.b16 %v2853
    %v2902 = vunpack.c.l.b16 %v2854
    %v2903 = vunpack.c.l.b16 %v2855
    %v2904 = vunpack.c.l.b16 %v2856
    %v2905 = vunpack.c.l.b16 %v2857
    %v2906 = vunpack.c.l.b16 %v2858
    %v2907 = vunpack.c.l.b16 %v2859
    %v2908 = vunpack.c.l.b16 %v2860
    %v2909 = vunpack.c.l.b16 %v2861
    %v2910 = vunpack.c.l.b16 %v2862
    %v2911 = vunpack.c.l.b16 %v2863
    %v2912 = vunpack.c.l.b16 %v2864
    %v2913 = vunpack.c.l.b16 %v2865
    %v2914 = vunpack.c.l.b16 %v2866
    %v2915 = vunpack.c.l.b16 %v2867
    %v2916 = vunpack.c.l.b16 %v2868
    %v2917 = vunpack.c.l.b16 %v2869
    %v2918 = vunpack.c.l.b16 %v2870
    %v2919 = vunpack.c.l.b16 %v2871
    %v2920 = vunpack.c.l.b16 %v2872
    %v2921 = vpack.c.b16 %v2898, %v2897
    %v2922 = vpack.c.b16 %v2900, %v2899
    %v2923 = vpack.c.b16 %v2902, %v2901
    %v2924 = vpack.c.b16 %v2904, %v2903
    %v2925 = vpack.c.b16 %v2906, %v2905
    %v2926 = vpack.c.b16 %v2908, %v2907
    %v2927 = vpack.c.b16 %v2910, %v2909
    %v2928 = vpack.c.b16 %v2912, %v2911
    %v2929 = vpack.c.b16 %v2914, %v2913
    %v2930 = vpack.c.b16 %v2916, %v2915
    %v2931 = vpack.c.b16 %v2918, %v2917
    %v2932 = vpack.c.b16 %v2920, %v2919
    %2945 = vmatprep.subr.bf16.mxu0 0
    %2946 = vmatpush1.bf16.msra.mxu0 %v2921
    %2947 = vmatprep.subr.bf16.mxu0 0
    %2948 = vmatpush1.bf16.msra.mxu0 %v2922
    %2949 = vmatprep.subr.bf16.mxu0 0
    %2950 = vmatpush1.bf16.msra.mxu0 %v2923
    %2951 = vmatprep.subr.bf16.mxu0 0
    %2952 = vmatpush1.bf16.msra.mxu0 %v2924
    %2953 = vmatprep.subr.bf16.mxu0 0
    %2954 = vmatpush1.bf16.msra.mxu0 %v2925
    %2955 = vmatprep.subr.bf16.mxu0 0
    %2956 = vmatpush1.bf16.msra.mxu0 %v2926
    %2957 = vmatprep.subr.bf16.mxu0 0
    %2958 = vmatpush1.bf16.msra.mxu0 %v2927
    %2959 = vmatprep.subr.bf16.mxu0 0
    %2960 = vmatpush1.bf16.msra.mxu0 %v2928
    %2961 = vmatprep.subr.bf16.mxu0 0
    %2962 = vmatpush1.bf16.msra.mxu0 %v2929
    %2963 = vmatprep.subr.bf16.mxu0 0
    %2964 = vmatpush1.bf16.msra.mxu0 %v2930
    %2965 = vmatprep.subr.bf16.mxu0 0
    %2966 = vmatpush1.bf16.msra.mxu0 %v2931
    %2967 = vmatprep.subr.bf16.mxu0 0
    %2968 = vmatpush1.bf16.msra.mxu0 %v2932
    %2969 = vmatprep.subr.bf16.mxu0 0
    %2970 = vmatpush1.bf16.msra.mxu0 0
    %2971 = vmatprep.subr.bf16.mxu0 0
    %2972 = vmatpush1.bf16.msra.mxu0 0
    %2973 = vmatprep.subr.bf16.mxu0 0
    %2974 = vmatpush1.bf16.msra.mxu0 0
    %2975 = vmatprep.subr.bf16.mxu0 0
    %2976 = vmatpush1.bf16.msra.mxu0 0
    %2977 = vmatprep.mubr.bf16.mxu0 %v2805
    %2978 = vmatmul.mubr.bf16.gmra.mrb[0].mxu0 %v2731
    %v2979 = vpop.f32.mrb[0].mxu0
    %v2980 = vadd.f32 0.0, %v2979
    %v2981 = vpop.f32.mrb[0].mxu0
    %v2982 = vpop.f32.mrb[0].mxu0
    %v2983 = vadd.f32 0.0, %v2982
    %v2984 = vpop.f32.mrb[0].mxu0
    %2985 = vdwg.mxu0
    %2986 = vmatprep.subr.bf16.mxu0 0
    %2987 = vmatpush1.bf16.msra.mxu0 %v2848
    %2988 = vmatprep.subr.bf16.mxu0 0
    %2989 = vmatpush1.bf16.msra.mxu0 0
    %2990 = vmatprep.subr.bf16.mxu0 0
    %2991 = vmatpush1.bf16.msra.mxu0 0
    %2992 = vmatprep.subr.bf16.mxu0 0
    %2993 = vmatpush1.bf16.msra.mxu0 0
    %2994 = vmatprep.subr.bf16.mxu0 0
    %2995 = vmatpush1.bf16.msra.mxu0 0
    %2996 = vmatprep.subr.bf16.mxu0 0
    %2997 = vmatpush1.bf16.msra.mxu0 0
    %2998 = vmatprep.subr.bf16.mxu0 0
    %2999 = vmatpush1.bf16.msra.mxu0 0
    %3000 = vmatprep.subr.bf16.mxu0 0
    %3001 = vmatpush1.bf16.msra.mxu0 0
    %3002 = vmatprep.subr.bf16.mxu0 0
    %3003 = vmatpush1.bf16.msra.mxu0 0
    %3004 = vmatprep.subr.bf16.mxu0 0
    %3005 = vmatpush1.bf16.msra.mxu0 0
    %3006 = vmatprep.subr.bf16.mxu0 0
    %3007 = vmatpush1.bf16.msra.mxu0 0
    %3008 = vmatprep.subr.bf16.mxu0 0
    %3009 = vmatpush1.bf16.msra.mxu0 0
    %3010 = vmatprep.subr.bf16.mxu0 0
    %3011 = vmatpush1.bf16.msra.mxu0 0
    %3012 = vmatprep.subr.bf16.mxu0 0
    %3013 = vmatpush1.bf16.msra.mxu0 0
    %3014 = vmatprep.subr.bf16.mxu0 0
    %3015 = vmatpush1.bf16.msra.mxu0 0
    %3016 = vmatprep.subr.bf16.mxu0 0
    %3017 = vmatpush1.bf16.msra.mxu0 0
    %3018 = vmatprep.mubr.bf16.mxu0 0
    %3019 = vmatmul.mubr.bf16.gmra.mrb[0].mxu0 %v1231
    %v3020 = vpop.f32.mrb[0].mxu0
    %v3021 = vadd.f32 %v2980, %v3020
    %v3022 = vpop.f32.mrb[0].mxu0
    %v3023 = vpop.f32.mrb[0].mxu0
    %v3024 = vadd.f32 %v2983, %v3023
    %v3025 = vpop.f32.mrb[0].mxu0
    %3026 = vdwg.mxu0
    %v3027 = vld [vmem:[#allocation4 + $0x40] sm:$0x1]
    %v3028 = vlaneseq
    %v3029 = vshrl.u32 %v3028, 7
    %v3030 = vsub.s32 0, %v3029
    %v3031 = vrot.slane %v3027, %v3030
    %v3032 = vadd.f32 %v3021, %v3031
    %v3033 = vadd.f32 %v3024, %v3031
    %v3034 = vmax.f32 %v3032, 0.0
    %v3035 = vmax.f32 %v3033, 0.0
    %v3036 = vld [vmem:[#allocation6 + $0xc8] sm:$0xf]
    %v3037 = vld [vmem:[#allocation6 + $0xcc] sm:$0xf]
    %v3038 = vld [vmem:[#allocation6 + $0xd0] sm:$0xf]
    %v3039 = vld [vmem:[#allocation6 + $0xd4] sm:$0xf]
    %v3040 = vpack.c.bf16 %v3035, %v3034
    %v3045 = vunpack.c.l.b16 %v3036
    %v3046 = vunpack.c.l.b16 %v3037
    %v3047 = vunpack.c.l.b16 %v3038
    %v3048 = vunpack.c.l.b16 %v3039
    %v3049 = vpack.c.b16 %v3046, %v3045
    %v3050 = vpack.c.b16 %v3048, %v3047
    %v3052 = vsel %vm137, %v3049, 0
    %v3055 = vsel %vm137, %v3050, 0
    %3057 = vmatprep.subr.bf16.mxu0 0
    %3058 = vmatpush1.bf16.msra.mxu0 %v3040
    %3059 = vmatprep.subr.bf16.mxu0 0
    %3060 = vmatpush1.bf16.msra.mxu0 0
    %3061 = vmatprep.subr.bf16.mxu0 0
    %3062 = vmatpush1.bf16.msra.mxu0 0
    %3063 = vmatprep.subr.bf16.mxu0 0
    %3064 = vmatpush1.bf16.msra.mxu0 0
    %3065 = vmatprep.subr.bf16.mxu0 0
    %3066 = vmatpush1.bf16.msra.mxu0 0
    %3067 = vmatprep.subr.bf16.mxu0 0
    %3068 = vmatpush1.bf16.msra.mxu0 0
    %3069 = vmatprep.subr.bf16.mxu0 0
    %3070 = vmatpush1.bf16.msra.mxu0 0
    %3071 = vmatprep.subr.bf16.mxu0 0
    %3072 = vmatpush1.bf16.msra.mxu0 0
    %3073 = vmatprep.subr.bf16.mxu0 0
    %3074 = vmatpush1.bf16.msra.mxu0 0
    %3075 = vmatprep.subr.bf16.mxu0 0
    %3076 = vmatpush1.bf16.msra.mxu0 0
    %3077 = vmatprep.subr.bf16.mxu0 0
    %3078 = vmatpush1.bf16.msra.mxu0 0
    %3079 = vmatprep.subr.bf16.mxu0 0
    %3080 = vmatpush1.bf16.msra.mxu0 0
    %3081 = vmatprep.subr.bf16.mxu0 0
    %3082 = vmatpush1.bf16.msra.mxu0 0
    %3083 = vmatprep.subr.bf16.mxu0 0
    %3084 = vmatpush1.bf16.msra.mxu0 0
    %3085 = vmatprep.subr.bf16.mxu0 0
    %3086 = vmatpush1.bf16.msra.mxu0 0
    %3087 = vmatprep.subr.bf16.mxu0 0
    %3088 = vmatpush1.bf16.msra.mxu0 0
    %3089 = vmatprep.mubr.bf16.mxu0 0
    %3090 = vmatmul.mubr.bf16.gmra.mrb[0].mxu0 %v3052
    %v3091 = vpop.f32.mrb[0].mxu0
    %v3092 = vadd.f32 0.0, %v3091
    %v3093 = vpop.f32.mrb[0].mxu0
    %v3094 = vpop.f32.mrb[0].mxu0
    %v3095 = vadd.f32 0.0, %v3094
    %v3096 = vpop.f32.mrb[0].mxu0
    %3097 = vmatprep.mubr.bf16.mxu0 0
    %3098 = vmatmul.mubr.bf16.gmra.mrb[0].mxu0 %v3055
    %v3099 = vpop.f32.mrb[0].mxu0
    %v3100 = vadd.f32 0.0, %v3099
    %v3101 = vpop.f32.mrb[0].mxu0
    %v3102 = vpop.f32.mrb[0].mxu0
    %v3103 = vadd.f32 0.0, %v3102
    %v3104 = vpop.f32.mrb[0].mxu0
    %3105 = vdwg.mxu0
    %v3106 = vmul.f32 %v3092, %v3092
    %v3107 = vmul.f32 %v3095, %v3095
    %v3108 = vmul.f32 %v3100, %v3100
    %v3109 = vmul.f32 %v3103, %v3103
    %v3110 = vadd.f32 %v3092, %v3095
    %v3111 = vadd.f32 %v3110, %v3100
    %v3112 = vadd.f32 %v3111, %v3103
    %v3113 = vrot.slane %v3112, 4
    %v3114 = vadd.f32 %v3112, %v3113
    %v3115 = vrot.slane %v3114, 2
    %v3116 = vadd.f32 %v3114, %v3115
    %v3117 = vrot.slane %v3116, 1
    %v3118 = vadd.f32 %v3116, %v3117
    %v3119 = vadd.f32 %v3106, %v3107
    %v3120 = vadd.f32 %v3119, %v3108
    %v3121 = vadd.f32 %v3120, %v3109
    %v3122 = vrot.slane %v3121, 4
    %v3123 = vadd.f32 %v3121, %v3122
    %v3124 = vrot.slane %v3123, 2
    %v3125 = vadd.f32 %v3123, %v3124
    %v3126 = vrot.slane %v3125, 1
    %v3127 = vadd.f32 %v3125, %v3126
    %v3128 = vmul.f32 %v3118, 0.03125
    %v3129 = vmul.f32 %v3127, 0.03125
    %v3130 = vmul.f32 %v3128, %v3128
    %v3131 = vsub.f32 %v3129, %v3130
    %v3132 = vmax.f32 %v3131, 0.0
    %v3133 = vsub.f32 %v3092, %v3128
    %v3134 = vsub.f32 %v3095, %v3128
    %v3135 = vsub.f32 %v3100, %v3128
    %v3136 = vsub.f32 %v3103, %v3128
    %v3137 = vadd.f32 %v3132, 1e-05
    %v3138 = vrsqrt.pop %v3137
    %v3139 = vmul.f32 %v3133, %v3138
    %v3140 = vmul.f32 %v3134, %v3138
    %v3141 = vmul.f32 %v3135, %v3138
    %v3142 = vmul.f32 %v3136, %v3138
    %v3143 = vld [vmem:[#allocation2 + $0x3a8] sm:$0xf]
    %v3144 = vld [vmem:[#allocation2 + $0x3ac] sm:$0xf]
    %v3145 = vld [vmem:[#allocation2 + $0x3b0] sm:$0xf]
    %v3146 = vld [vmem:[#allocation2 + $0x3b4] sm:$0xf]
    %v3147 = vld [vmem:[#allocation2 + $0x3b8] sm:$0xf]
    %v3148 = vld [vmem:[#allocation2 + $0x3bc] sm:$0xf]
    %v3149 = vld [vmem:[#allocation2 + $0x3c0] sm:$0xf]
    %v3150 = vld [vmem:[#allocation2 + $0x3c4] sm:$0xf]
    %v3151 = vld [vmem:[#allocation2 + $0x3c8] sm:$0xf]
    %v3152 = vld [vmem:[#allocation2 + $0x3cc] sm:$0xf]
    %v3153 = vld [vmem:[#allocation2 + $0x3d0] sm:$0xf]
    %v3154 = vld [vmem:[#allocation2 + $0x3d4] sm:$0xf]
    %v3155 = vld [vmem:[#allocation2 + $0x3d8] sm:$0xf]
    %v3156 = vld [vmem:[#allocation2 + $0x3dc] sm:$0xf]
    %v3157 = vld [vmem:[#allocation2 + $0x3e0] sm:$0xf]
    %v3158 = vld [vmem:[#allocation2 + $0x3e4] sm:$0xf]
    %v3159 = vld [vmem:[#allocation2 + $0x3e8] sm:$0xf]
    %v3160 = vld [vmem:[#allocation2 + $0x3ec] sm:$0xf]
    %v3161 = vld [vmem:[#allocation2 + $0x3f0] sm:$0xf]
    %v3162 = vld [vmem:[#allocation2 + $0x3f4] sm:$0xf]
    %v3163 = vld [vmem:[#allocation2 + $0x3f8] sm:$0xf]
    %v3164 = vld [vmem:[#allocation2 + $0x3fc] sm:$0xf]
    %v3165 = vld [vmem:[#allocation2 + $0x400] sm:$0xf]
    %v3166 = vld [vmem:[#allocation2 + $0x404] sm:$0xf]
    %v3167 = vpack.c.bf16 %v3140, %v3139
    %v3168 = vpack.c.bf16 %v3142, %v3141
    %v3193 = vunpack.c.l.b16 %v3143
    %v3194 = vunpack.c.l.b16 %v3144
    %v3195 = vunpack.c.l.b16 %v3145
    %v3196 = vunpack.c.l.b16 %v3146
    %v3197 = vunpack.c.l.b16 %v3147
    %v3198 = vunpack.c.l.b16 %v3148
    %v3199 = vunpack.c.l.b16 %v3149
    %v3200 = vunpack.c.l.b16 %v3150
    %v3201 = vunpack.c.l.b16 %v3151
    %v3202 = vunpack.c.l.b16 %v3152
    %v3203 = vunpack.c.l.b16 %v3153
    %v3204 = vunpack.c.l.b16 %v3154
    %v3205 = vunpack.c.l.b16 %v3155
    %v3206 = vunpack.c.l.b16 %v3156
    %v3207 = vunpack.c.l.b16 %v3157
    %v3208 = vunpack.c.l.b16 %v3158
    %v3209 = vunpack.c.l.b16 %v3159
    %v3210 = vunpack.c.l.b16 %v3160
    %v3211 = vunpack.c.l.b16 %v3161
    %v3212 = vunpack.c.l.b16 %v3162
    %v3213 = vunpack.c.l.b16 %v3163
    %v3214 = vunpack.c.l.b16 %v3164
    %v3215 = vunpack.c.l.b16 %v3165
    %v3216 = vunpack.c.l.b16 %v3166
    %v3217 = vpack.c.b16 %v3194, %v3193
    %v3218 = vpack.c.b16 %v3196, %v3195
    %v3219 = vpack.c.b16 %v3198, %v3197
    %v3220 = vpack.c.b16 %v3200, %v3199
    %v3221 = vpack.c.b16 %v3202, %v3201
    %v3222 = vpack.c.b16 %v3204, %v3203
    %v3223 = vpack.c.b16 %v3206, %v3205
    %v3224 = vpack.c.b16 %v3208, %v3207
    %v3225 = vpack.c.b16 %v3210, %v3209
    %v3226 = vpack.c.b16 %v3212, %v3211
    %v3227 = vpack.c.b16 %v3214, %v3213
    %v3228 = vpack.c.b16 %v3216, %v3215
    %v3242 = vsel %vm369, %v1021, 0
    %v3245 = vsel %vm369, %v1022, 0
    %3247 = vmatprep.subr.bf16.mxu0 0
    %3248 = vmatpush1.bf16.msra.mxu0 %v3217
    %3249 = vmatprep.subr.bf16.mxu0 0
    %3250 = vmatpush1.bf16.msra.mxu0 %v3218
    %3251 = vmatprep.subr.bf16.mxu0 0
    %3252 = vmatpush1.bf16.msra.mxu0 %v3219
    %3253 = vmatprep.subr.bf16.mxu0 0
    %3254 = vmatpush1.bf16.msra.mxu0 %v3220
    %3255 = vmatprep.subr.bf16.mxu0 0
    %3256 = vmatpush1.bf16.msra.mxu0 %v3221
    %3257 = vmatprep.subr.bf16.mxu0 0
    %3258 = vmatpush1.bf16.msra.mxu0 %v3222
    %3259 = vmatprep.subr.bf16.mxu0 0
    %3260 = vmatpush1.bf16.msra.mxu0 %v3223
    %3261 = vmatprep.subr.bf16.mxu0 0
    %3262 = vmatpush1.bf16.msra.mxu0 %v3224
    %3263 = vmatprep.subr.bf16.mxu0 0
    %3264 = vmatpush1.bf16.msra.mxu0 %v3225
    %3265 = vmatprep.subr.bf16.mxu0 0
    %3266 = vmatpush1.bf16.msra.mxu0 %v3226
    %3267 = vmatprep.subr.bf16.mxu0 0
    %3268 = vmatpush1.bf16.msra.mxu0 %v3227
    %3269 = vmatprep.subr.bf16.mxu0 0
    %3270 = vmatpush1.bf16.msra.mxu0 %v3228
    %3271 = vmatprep.subr.bf16.mxu0 0
    %3272 = vmatpush1.bf16.msra.mxu0 0
    %3273 = vmatprep.subr.bf16.mxu0 0
    %3274 = vmatpush1.bf16.msra.mxu0 0
    %3275 = vmatprep.subr.bf16.mxu0 0
    %3276 = vmatpush1.bf16.msra.mxu0 0
    %3277 = vmatprep.subr.bf16.mxu0 0
    %3278 = vmatpush1.bf16.msra.mxu0 0
    %3279 = vmatprep.mubr.bf16.mxu0 %v3242
    %3280 = vmatmul.mubr.bf16.gmra.mrb[0].mxu0 %v3167
    %v3281 = vpop.f32.mrb[0].mxu0
    %v3282 = vadd.f32 0.0, %v3281
    %v3283 = vpop.f32.mrb[0].mxu0
    %v3284 = vpop.f32.mrb[0].mxu0
    %v3285 = vadd.f32 0.0, %v3284
    %v3286 = vpop.f32.mrb[0].mxu0
    %3287 = vmatprep.mubr.bf16.mxu0 %v3245
    %3288 = vmatmul.mubr.bf16.gmra.mrb[0].mxu0 %v3168
    %v3289 = vpop.f32.mrb[0].mxu0
    %v3290 = vadd.f32 0.0, %v3289
    %v3291 = vpop.f32.mrb[0].mxu0
    %v3292 = vpop.f32.mrb[0].mxu0
    %v3293 = vadd.f32 0.0, %v3292
    %v3294 = vpop.f32.mrb[0].mxu0
    %3295 = vdwg.mxu0
    %v3296 = vpack.c.bf16 %v3285, %v3282
    %v3297 = vpack.c.bf16 %v3293, %v3290
    %v3298 = vld [vmem:[#allocation2 + $0x408] sm:$0xf]
    %v3299 = vld [vmem:[#allocation2 + $0x40c] sm:$0xf]
    %v3300 = vld [vmem:[#allocation2 + $0x410] sm:$0xf]
    %v3301 = vld [vmem:[#allocation2 + $0x414] sm:$0xf]
    %v3302 = vld [vmem:[#allocation2 + $0x418] sm:$0xf]
    %v3303 = vld [vmem:[#allocation2 + $0x41c] sm:$0xf]
    %v3304 = vld [vmem:[#allocation2 + $0x420] sm:$0xf]
    %v3305 = vld [vmem:[#allocation2 + $0x424] sm:$0xf]
    %v3306 = vld [vmem:[#allocation2 + $0x428] sm:$0xf]
    %v3307 = vld [vmem:[#allocation2 + $0x42c] sm:$0xf]
    %v3308 = vld [vmem:[#allocation2 + $0x430] sm:$0xf]
    %v3309 = vld [vmem:[#allocation2 + $0x434] sm:$0xf]
    %v3310 = vld [vmem:[#allocation2 + $0x438] sm:$0xf]
    %v3311 = vld [vmem:[#allocation2 + $0x43c] sm:$0xf]
    %v3312 = vld [vmem:[#allocation2 + $0x440] sm:$0xf]
    %v3313 = vld [vmem:[#allocation2 + $0x444] sm:$0xf]
    %v3314 = vld [vmem:[#allocation2 + $0x448] sm:$0xf]
    %v3315 = vld [vmem:[#allocation2 + $0x44c] sm:$0xf]
    %v3316 = vld [vmem:[#allocation2 + $0x450] sm:$0xf]
    %v3317 = vld [vmem:[#allocation2 + $0x454] sm:$0xf]
    %v3318 = vld [vmem:[#allocation2 + $0x458] sm:$0xf]
    %v3319 = vld [vmem:[#allocation2 + $0x45c] sm:$0xf]
    %v3320 = vld [vmem:[#allocation2 + $0x460] sm:$0xf]
    %v3321 = vld [vmem:[#allocation2 + $0x464] sm:$0xf]
    %v3346 = vunpack.c.l.b16 %v3298
    %v3347 = vunpack.c.l.b16 %v3299
    %v3348 = vunpack.c.l.b16 %v3300
    %v3349 = vunpack.c.l.b16 %v3301
    %v3350 = vunpack.c.l.b16 %v3302
    %v3351 = vunpack.c.l.b16 %v3303
    %v3352 = vunpack.c.l.b16 %v3304
    %v3353 = vunpack.c.l.b16 %v3305
    %v3354 = vunpack.c.l.b16 %v3306
    %v3355 = vunpack.c.l.b16 %v3307
    %v3356 = vunpack.c.l.b16 %v3308
    %v3357 = vunpack.c.l.b16 %v3309
    %v3358 = vunpack.c.l.b16 %v3310
    %v3359 = vunpack.c.l.b16 %v3311
    %v3360 = vunpack.c.l.b16 %v3312
    %v3361 = vunpack.c.l.b16 %v3313
    %v3362 = vunpack.c.l.b16 %v3314
    %v3363 = vunpack.c.l.b16 %v3315
    %v3364 = vunpack.c.l.b16 %v3316
    %v3365 = vunpack.c.l.b16 %v3317
    %v3366 = vunpack.c.l.b16 %v3318
    %v3367 = vunpack.c.l.b16 %v3319
    %v3368 = vunpack.c.l.b16 %v3320
    %v3369 = vunpack.c.l.b16 %v3321
    %v3370 = vpack.c.b16 %v3347, %v3346
    %v3371 = vpack.c.b16 %v3349, %v3348
    %v3372 = vpack.c.b16 %v3351, %v3350
    %v3373 = vpack.c.b16 %v3353, %v3352
    %v3374 = vpack.c.b16 %v3355, %v3354
    %v3375 = vpack.c.b16 %v3357, %v3356
    %v3376 = vpack.c.b16 %v3359, %v3358
    %v3377 = vpack.c.b16 %v3361, %v3360
    %v3378 = vpack.c.b16 %v3363, %v3362
    %v3379 = vpack.c.b16 %v3365, %v3364
    %v3380 = vpack.c.b16 %v3367, %v3366
    %v3381 = vpack.c.b16 %v3369, %v3368
    %3394 = vmatprep.subr.bf16.mxu0 0
    %3395 = vmatpush1.bf16.msra.mxu0 %v3370
    %3396 = vmatprep.subr.bf16.mxu0 0
    %3397 = vmatpush1.bf16.msra.mxu0 %v3371
    %3398 = vmatprep.subr.bf16.mxu0 0
    %3399 = vmatpush1.bf16.msra.mxu0 %v3372
    %3400 = vmatprep.subr.bf16.mxu0 0
    %3401 = vmatpush1.bf16.msra.mxu0 %v3373
    %3402 = vmatprep.subr.bf16.mxu0 0
    %3403 = vmatpush1.bf16.msra.mxu0 %v3374
    %3404 = vmatprep.subr.bf16.mxu0 0
    %3405 = vmatpush1.bf16.msra.mxu0 %v3375
    %3406 = vmatprep.subr.bf16.mxu0 0
    %3407 = vmatpush1.bf16.msra.mxu0 %v3376
    %3408 = vmatprep.subr.bf16.mxu0 0
    %3409 = vmatpush1.bf16.msra.mxu0 %v3377
    %3410 = vmatprep.subr.bf16.mxu0 0
    %3411 = vmatpush1.bf16.msra.mxu0 %v3378
    %3412 = vmatprep.subr.bf16.mxu0 0
    %3413 = vmatpush1.bf16.msra.mxu0 %v3379
    %3414 = vmatprep.subr.bf16.mxu0 0
    %3415 = vmatpush1.bf16.msra.mxu0 %v3380
    %3416 = vmatprep.subr.bf16.mxu0 0
    %3417 = vmatpush1.bf16.msra.mxu0 %v3381
    %3418 = vmatprep.subr.bf16.mxu0 0
    %3419 = vmatpush1.bf16.msra.mxu0 0
    %3420 = vmatprep.subr.bf16.mxu0 0
    %3421 = vmatpush1.bf16.msra.mxu0 0
    %3422 = vmatprep.subr.bf16.mxu0 0
    %3423 = vmatpush1.bf16.msra.mxu0 0
    %3424 = vmatprep.subr.bf16.mxu0 0
    %3425 = vmatpush1.bf16.msra.mxu0 0
    %3426 = vmatprep.mubr.bf16.mxu0 %v3242
    %3427 = vmatmul.mubr.bf16.gmra.mrb[0].mxu0 %v3167
    %v3428 = vpop.f32.mrb[0].mxu0
    %v3429 = vadd.f32 0.0, %v3428
    %v3430 = vpop.f32.mrb[0].mxu0
    %v3431 = vpop.f32.mrb[0].mxu0
    %v3432 = vadd.f32 0.0, %v3431
    %v3433 = vpop.f32.mrb[0].mxu0
    %3434 = vmatprep.mubr.bf16.mxu0 %v3245
    %3435 = vmatmul.mubr.bf16.gmra.mrb[0].mxu0 %v3168
    %v3436 = vpop.f32.mrb[0].mxu0
    %v3437 = vadd.f32 0.0, %v3436
    %v3438 = vpop.f32.mrb[0].mxu0
    %v3439 = vpop.f32.mrb[0].mxu0
    %v3440 = vadd.f32 0.0, %v3439
    %v3441 = vpop.f32.mrb[0].mxu0
    %3442 = vdwg.mxu0
    %3443 = vmatprep.subr.bf16.mxu0 0
    %3444 = vmatpush1.bf16.msra.mxu0 %v3296
    %3445 = vmatprep.subr.bf16.mxu0 0
    %3446 = vmatpush1.bf16.msra.mxu0 %v3297
    %3447 = vmatprep.subr.bf16.mxu0 0
    %3448 = vmatpush1.bf16.msra.mxu0 0
    %3449 = vmatprep.subr.bf16.mxu0 0
    %3450 = vmatpush1.bf16.msra.mxu0 0
    %3451 = vmatprep.subr.bf16.mxu0 0
    %3452 = vmatpush1.bf16.msra.mxu0 0
    %3453 = vmatprep.subr.bf16.mxu0 0
    %3454 = vmatpush1.bf16.msra.mxu0 0
    %3455 = vmatprep.subr.bf16.mxu0 0
    %3456 = vmatpush1.bf16.msra.mxu0 0
    %3457 = vmatprep.subr.bf16.mxu0 0
    %3458 = vmatpush1.bf16.msra.mxu0 0
    %3459 = vmatprep.subr.bf16.mxu0 0
    %3460 = vmatpush1.bf16.msra.mxu0 0
    %3461 = vmatprep.subr.bf16.mxu0 0
    %3462 = vmatpush1.bf16.msra.mxu0 0
    %3463 = vmatprep.subr.bf16.mxu0 0
    %3464 = vmatpush1.bf16.msra.mxu0 0
    %3465 = vmatprep.subr.bf16.mxu0 0
    %3466 = vmatpush1.bf16.msra.mxu0 0
    %3467 = vmatprep.subr.bf16.mxu0 0
    %3468 = vmatpush1.bf16.msra.mxu0 0
    %3469 = vmatprep.subr.bf16.mxu0 0
    %3470 = vmatpush1.bf16.msra.mxu0 0
    %3471 = vmatprep.subr.bf16.mxu0 0
    %3472 = vmatpush1.bf16.msra.mxu0 0
    %3473 = vmatprep.subr.bf16.mxu0 0
    %3474 = vmatpush1.bf16.msra.mxu0 0
    %3475 = vmatprep.mubr.bf16.mxu0 0
    %3476 = vmatmul.mubr.bf16.gmra.mrb[0].mxu0 %v893
    %v3477 = vpop.f32.mrb[0].mxu0
    %v3478 = vadd.f32 %v3429, %v3477
    %v3479 = vpop.f32.mrb[0].mxu0
    %v3480 = vpop.f32.mrb[0].mxu0
    %v3481 = vadd.f32 %v3432, %v3480
    %v3482 = vpop.f32.mrb[0].mxu0
    %3483 = vmatprep.mubr.bf16.mxu0 0
    %3484 = vmatmul.mubr.bf16.gmra.mrb[0].mxu0 %v896
    %v3485 = vpop.f32.mrb[0].mxu0
    %v3486 = vadd.f32 %v3437, %v3485
    %v3487 = vpop.f32.mrb[0].mxu0
    %v3488 = vpop.f32.mrb[0].mxu0
    %v3489 = vadd.f32 %v3440, %v3488
    %v3490 = vpop.f32.mrb[0].mxu0
    %3491 = vdwg.mxu0
    %v3492 = vld [vmem:[#allocation4 + $0x48] sm:$0x1]
    %v3493 = vlaneseq
    %v3494 = vshrl.u32 %v3493, 7
    %v3495 = vsub.s32 0, %v3494
    %v3496 = vrot.slane %v3492, %v3495
    %v3497 = vadd.f32 %v3478, %v3496
    %v3498 = vadd.f32 %v3481, %v3496
    %v3499 = vadd.f32 %v3486, %v3496
    %v3500 = vadd.f32 %v3489, %v3496
    %v3501 = vmax.f32 %v3497, 0.0
    %v3502 = vmax.f32 %v3498, 0.0
    %v3503 = vmax.f32 %v3499, 0.0
    %v3504 = vmax.f32 %v3500, 0.0
    %v3505 = vld [vmem:[#allocation6 + $0xa8] sm:$0xf]
    %v3506 = vld [vmem:[#allocation6 + $0xac] sm:$0xf]
    %v3507 = vld [vmem:[#allocation6 + $0xb0] sm:$0xf]
    %v3508 = vld [vmem:[#allocation6 + $0xb4] sm:$0xf]
    %v3509 = vld [vmem:[#allocation6 + $0xb8] sm:$0xf]
    %v3510 = vld [vmem:[#allocation6 + $0xbc] sm:$0xf]
    %v3511 = vld [vmem:[#allocation6 + $0xc0] sm:$0xf]
    %v3512 = vld [vmem:[#allocation6 + $0xc4] sm:$0xf]
    %v3513 = vpack.c.bf16 %v3502, %v3501
    %v3514 = vpack.c.bf16 %v3504, %v3503
    %v3523 = vunpack.c.l.b16 %v3505
    %v3524 = vunpack.c.l.b16 %v3506
    %v3525 = vunpack.c.l.b16 %v3507
    %v3526 = vunpack.c.l.b16 %v3508
    %v3527 = vunpack.c.l.b16 %v3509
    %v3528 = vunpack.c.l.b16 %v3510
    %v3529 = vunpack.c.l.b16 %v3511
    %v3530 = vunpack.c.l.b16 %v3512
    %v3531 = vpack.c.b16 %v3524, %v3523
    %v3532 = vpack.c.b16 %v3526, %v3525
    %v3533 = vpack.c.b16 %v3528, %v3527
    %v3534 = vpack.c.b16 %v3530, %v3529
    %v3536 = vsel %vm452, %v3531, 0
    %v3539 = vsel %vm452, %v3532, 0
    %v3542 = vsel %vm452, %v3533, 0
    %v3545 = vsel %vm452, %v3534, 0
    %3547 = vmatprep.subr.bf16.mxu0 0
    %3548 = vmatpush1.bf16.msra.mxu0 %v3513
    %3549 = vmatprep.subr.bf16.mxu0 0
    %3550 = vmatpush1.bf16.msra.mxu0 %v3514
    %3551 = vmatprep.subr.bf16.mxu0 0
    %3552 = vmatpush1.bf16.msra.mxu0 0
    %3553 = vmatprep.subr.bf16.mxu0 0
    %3554 = vmatpush1.bf16.msra.mxu0 0
    %3555 = vmatprep.subr.bf16.mxu0 0
    %3556 = vmatpush1.bf16.msra.mxu0 0
    %3557 = vmatprep.subr.bf16.mxu0 0
    %3558 = vmatpush1.bf16.msra.mxu0 0
    %3559 = vmatprep.subr.bf16.mxu0 0
    %3560 = vmatpush1.bf16.msra.mxu0 0
    %3561 = vmatprep.subr.bf16.mxu0 0
    %3562 = vmatpush1.bf16.msra.mxu0 0
    %3563 = vmatprep.subr.bf16.mxu0 0
    %3564 = vmatpush1.bf16.msra.mxu0 0
    %3565 = vmatprep.subr.bf16.mxu0 0
    %3566 = vmatpush1.bf16.msra.mxu0 0
    %3567 = vmatprep.subr.bf16.mxu0 0
    %3568 = vmatpush1.bf16.msra.mxu0 0
    %3569 = vmatprep.subr.bf16.mxu0 0
    %3570 = vmatpush1.bf16.msra.mxu0 0
    %3571 = vmatprep.subr.bf16.mxu0 0
    %3572 = vmatpush1.bf16.msra.mxu0 0
    %3573 = vmatprep.subr.bf16.mxu0 0
    %3574 = vmatpush1.bf16.msra.mxu0 0
    %3575 = vmatprep.subr.bf16.mxu0 0
    %3576 = vmatpush1.bf16.msra.mxu0 0
    %3577 = vmatprep.subr.bf16.mxu0 0
    %3578 = vmatpush1.bf16.msra.mxu0 0
    %3579 = vmatprep.mubr.bf16.mxu0 0
    %3580 = vmatmul.mubr.bf16.gmra.mrb[0].mxu0 %v3536
    %v3581 = vpop.f32.mrb[0].mxu0
    %v3582 = vadd.f32 0.0, %v3581
    %v3583 = vpop.f32.mrb[0].mxu0
    %v3584 = vpop.f32.mrb[0].mxu0
    %v3585 = vadd.f32 0.0, %v3584
    %v3586 = vpop.f32.mrb[0].mxu0
    %3587 = vmatprep.mubr.bf16.mxu0 0
    %3588 = vmatmul.mubr.bf16.gmra.mrb[0].mxu0 %v3539
    %v3589 = vpop.f32.mrb[0].mxu0
    %v3590 = vadd.f32 0.0, %v3589
    %v3591 = vpop.f32.mrb[0].mxu0
    %v3592 = vpop.f32.mrb[0].mxu0
    %v3593 = vadd.f32 0.0, %v3592
    %v3594 = vpop.f32.mrb[0].mxu0
    %3595 = vmatprep.mubr.bf16.mxu0 0
    %3596 = vmatmul.mubr.bf16.gmra.mrb[0].mxu0 %v3542
    %v3597 = vpop.f32.mrb[0].mxu0
    %v3598 = vadd.f32 0.0, %v3597
    %v3599 = vpop.f32.mrb[0].mxu0
    %v3600 = vpop.f32.mrb[0].mxu0
    %v3601 = vadd.f32 0.0, %v3600
    %v3602 = vpop.f32.mrb[0].mxu0
    %3603 = vmatprep.mubr.bf16.mxu0 0
    %3604 = vmatmul.mubr.bf16.gmra.mrb[0].mxu0 %v3545
    %v3605 = vpop.f32.mrb[0].mxu0
    %v3606 = vadd.f32 0.0, %v3605
    %v3607 = vpop.f32.mrb[0].mxu0
    %v3608 = vpop.f32.mrb[0].mxu0
    %v3609 = vadd.f32 0.0, %v3608
    %v3610 = vpop.f32.mrb[0].mxu0
    %3611 = vdwg.mxu0
    %v3612 = vmul.f32 %v3582, %v3582
    %v3613 = vmul.f32 %v3585, %v3585
    %v3614 = vmul.f32 %v3590, %v3590
    %v3615 = vmul.f32 %v3593, %v3593
    %v3616 = vmul.f32 %v3598, %v3598
    %v3617 = vmul.f32 %v3601, %v3601
    %v3618 = vmul.f32 %v3606, %v3606
    %v3619 = vmul.f32 %v3609, %v3609
    %3628 = vrot.lane.b32.xlu0 %v3612, 64
    %v3629 = vpop.permute.xlu0 %3628
    %3630 = vrot.lane.b32.xlu0 %v3613, 64
    %v3631 = vpop.permute.xlu0 %3630
    %3632 = vrot.lane.b32.xlu0 %v3614, 64
    %v3633 = vpop.permute.xlu0 %3632
    %3634 = vrot.lane.b32.xlu0 %v3615, 64
    %v3635 = vpop.permute.xlu0 %3634
    %3636 = vrot.lane.b32.xlu0 %v3616, 64
    %v3637 = vpop.permute.xlu0 %3636
    %3638 = vrot.lane.b32.xlu0 %v3617, 64
    %v3639 = vpop.permute.xlu0 %3638
    %3640 = vrot.lane.b32.xlu0 %v3618, 64
    %v3641 = vpop.permute.xlu0 %3640
    %3642 = vrot.lane.b32.xlu0 %v3619, 64
    %v3643 = vpop.permute.xlu0 %3642
    %v3652 = vsel %vm369, %v3582, %v3629
    %v3653 = vsel %vm369, %v3585, %v3631
    %v3654 = vsel %vm369, %v3590, %v3633
    %v3655 = vsel %vm369, %v3593, %v3635
    %v3656 = vsel %vm369, %v3598, %v3637
    %v3657 = vsel %vm369, %v3601, %v3639
    %v3658 = vsel %vm369, %v3606, %v3641
    %v3659 = vsel %vm369, %v3609, %v3643
    %v3660 = vadd.f32 %v3652, %v3653
    %v3661 = vadd.f32 %v3660, %v3654
    %v3662 = vadd.f32 %v3661, %v3655
    %v3663 = vadd.f32 %v3662, %v3656
    %v3664 = vadd.f32 %v3663, %v3657
    %v3665 = vadd.f32 %v3664, %v3658
    %v3666 = vadd.f32 %v3665, %v3659
    %v3667 = vrot.slane %v3666, 4
    %v3668 = vadd.f32 %v3666, %v3667
    %v3669 = vrot.slane %v3668, 2
    %v3670 = vadd.f32 %v3668, %v3669
    %v3671 = vrot.slane %v3670, 1
    %v3672 = vadd.f32 %v3670, %v3671
    %v3673 = vmul.f32 %v3672, 0.015625
    %v3674 = vmul.f32 %v3673, %v3673
    %3676 = vrot.lane.b32.xlu0 %v3674, 64
    %v3677 = vpop.permute.xlu0 %3676
    %v3679 = vsub.f32 %v3673, %v3677
    %v3680 = vmax.f32 %v3679, 0.0
    %v3681 = vsub.f32 %v3582, %v3673
    %v3682 = vsub.f32 %v3585, %v3673
    %v3683 = vsub.f32 %v3590, %v3673
    %v3684 = vsub.f32 %v3593, %v3673
    %v3685 = vsub.f32 %v3598, %v3673
    %v3686 = vsub.f32 %v3601, %v3673
    %v3687 = vsub.f32 %v3606, %v3673
    %v3688 = vsub.f32 %v3609, %v3673
    %v3689 = vadd.f32 %v3680, 1e-05
    %v3690 = vrsqrt.pop %v3689
    %v3691 = vlaneseq
    %v3692 = vshrl.u32 %v3691, 7
    %v3693 = vsub.s32 0, %v3692
    %v3694 = vrot.slane %v3690, %v3693
    %3696 = vrot.lane.b32.xlu0 %v3694, 64
    %v3697 = vpop.permute.xlu0 %3696
    %v3699 = vmul.f32 %v3681, %v3697
    %v3700 = vmul.f32 %v3682, %v3697
    %v3701 = vmul.f32 %v3683, %v3697
    %v3702 = vmul.f32 %v3684, %v3697
    %v3703 = vmul.f32 %v3685, %v3697
    %v3704 = vmul.f32 %v3686, %v3697
    %v3705 = vmul.f32 %v3687, %v3697
    %v3706 = vmul.f32 %v3688, %v3697
    %3715 = vrot.lane.b32.xlu0 %v625, 64
    %v3716 = vpop.permute.xlu0 %3715
    %3717 = vrot.lane.b32.xlu0 %v626, 64
    %v3718 = vpop.permute.xlu0 %3717
    %3719 = vrot.lane.b32.xlu0 %v627, 64
    %v3720 = vpop.permute.xlu0 %3719
    %3721 = vrot.lane.b32.xlu0 %v628, 64
    %v3722 = vpop.permute.xlu0 %3721
    %3723 = vrot.lane.b32.xlu0 %v629, 64
    %v3724 = vpop.permute.xlu0 %3723
    %3725 = vrot.lane.b32.xlu0 %v630, 64
    %v3726 = vpop.permute.xlu0 %3725
    %3727 = vrot.lane.b32.xlu0 %v631, 64
    %v3728 = vpop.permute.xlu0 %3727
    %3729 = vrot.lane.b32.xlu0 %v632, 64
    %v3730 = vpop.permute.xlu0 %3729
    %v3739 = vsel %vm369, %v3699, %v3716
    %v3740 = vsel %vm369, %v3700, %v3718
    %v3741 = vsel %vm369, %v3701, %v3720
    %v3742 = vsel %vm369, %v3702, %v3722
    %v3743 = vsel %vm369, %v3703, %v3724
    %v3744 = vsel %vm369, %v3704, %v3726
    %v3745 = vsel %vm369, %v3705, %v3728
    %v3746 = vsel %vm369, %v3706, %v3730
    %v3747 = vld [vmem:[#allocation6 + $0x38] sm:$0xf]
    %v3748 = vld [vmem:[#allocation6 + $0x3c] sm:$0xf]
    %v3749 = vld [vmem:[#allocation6 + $0x40] sm:$0xf]
    %v3750 = vld [vmem:[#allocation6 + $0x44] sm:$0xf]
    %v3751 = vld [vmem:[#allocation6 + $0x48] sm:$0xf]
    %v3752 = vld [vmem:[#allocation6 + $0x4c] sm:$0xf]
    %v3753 = vld [vmem:[#allocation6 + $0x50] sm:$0xf]
    %v3754 = vld [vmem:[#allocation6 + $0x54] sm:$0xf]
    %v3755 = vld [vmem:[#allocation2 + $0x468] sm:$0xf]
    %v3756 = vld [vmem:[#allocation2 + $0x46c] sm:$0xf]
    %v3757 = vld [vmem:[#allocation2 + $0x470] sm:$0xf]
    %v3758 = vld [vmem:[#allocation2 + $0x474] sm:$0xf]
    %v3759 = vld [vmem:[#allocation2 + $0x478] sm:$0xf]
    %v3760 = vld [vmem:[#allocation2 + $0x47c] sm:$0xf]
    %v3761 = vld [vmem:[#allocation2 + $0x480] sm:$0xf]
    %v3762 = vld [vmem:[#allocation2 + $0x484] sm:$0xf]
    %v3763 = vld [vmem:[#allocation2 + $0x488] sm:$0xf]
    %v3764 = vld [vmem:[#allocation2 + $0x48c] sm:$0xf]
    %v3765 = vld [vmem:[#allocation2 + $0x490] sm:$0xf]
    %v3766 = vld [vmem:[#allocation2 + $0x494] sm:$0xf]
    %v3767 = vld [vmem:[#allocation2 + $0x498] sm:$0xf]
    %v3768 = vld [vmem:[#allocation2 + $0x49c] sm:$0xf]
    %v3769 = vld [vmem:[#allocation2 + $0x4a0] sm:$0xf]
    %v3770 = vld [vmem:[#allocation2 + $0x4a4] sm:$0xf]
    %v3771 = vpack.c.bf16 %v3740, %v3739
    %v3772 = vpack.c.bf16 %v3742, %v3741
    %v3773 = vpack.c.bf16 %v3744, %v3743
    %v3774 = vpack.c.bf16 %v3746, %v3745
    %v3791 = vunpack.c.l.b16 %v3755
    %v3792 = vunpack.c.l.b16 %v3756
    %v3793 = vunpack.c.l.b16 %v3757
    %v3794 = vunpack.c.l.b16 %v3758
    %v3795 = vunpack.c.l.b16 %v3759
    %v3796 = vunpack.c.l.b16 %v3760
    %v3797 = vunpack.c.l.b16 %v3761
    %v3798 = vunpack.c.l.b16 %v3762
    %v3799 = vunpack.c.l.b16 %v3763
    %v3800 = vunpack.c.l.b16 %v3764
    %v3801 = vunpack.c.l.b16 %v3765
    %v3802 = vunpack.c.l.b16 %v3766
    %v3803 = vunpack.c.l.b16 %v3767
    %v3804 = vunpack.c.l.b16 %v3768
    %v3805 = vunpack.c.l.b16 %v3769
    %v3806 = vunpack.c.l.b16 %v3770
    %v3807 = vpack.c.b16 %v3792, %v3791
    %v3808 = vpack.c.b16 %v3794, %v3793
    %v3809 = vpack.c.b16 %v3796, %v3795
    %v3810 = vpack.c.b16 %v3798, %v3797
    %v3811 = vpack.c.b16 %v3800, %v3799
    %v3812 = vpack.c.b16 %v3802, %v3801
    %v3813 = vpack.c.b16 %v3804, %v3803
    %v3814 = vpack.c.b16 %v3806, %v3805
    %3823 = vmatprep.subr.bf16.mxu0 0
    %3824 = vmatpush1.bf16.msra.mxu0 %v3807
    %3825 = vmatprep.subr.bf16.mxu0 0
    %3826 = vmatpush1.bf16.msra.mxu0 %v3808
    %3827 = vmatprep.subr.bf16.mxu0 0
    %3828 = vmatpush1.bf16.msra.mxu0 %v3809
    %3829 = vmatprep.subr.bf16.mxu0 0
    %3830 = vmatpush1.bf16.msra.mxu0 %v3810
    %3831 = vmatprep.subr.bf16.mxu0 0
    %3832 = vmatpush1.bf16.msra.mxu0 %v3811
    %3833 = vmatprep.subr.bf16.mxu0 0
    %3834 = vmatpush1.bf16.msra.mxu0 %v3812
    %3835 = vmatprep.subr.bf16.mxu0 0
    %3836 = vmatpush1.bf16.msra.mxu0 %v3813
    %3837 = vmatprep.subr.bf16.mxu0 0
    %3838 = vmatpush1.bf16.msra.mxu0 %v3814
    %3839 = vmatprep.subr.bf16.mxu0 0
    %3840 = vmatpush1.bf16.msra.mxu0 0
    %3841 = vmatprep.subr.bf16.mxu0 0
    %3842 = vmatpush1.bf16.msra.mxu0 0
    %3843 = vmatprep.subr.bf16.mxu0 0
    %3844 = vmatpush1.bf16.msra.mxu0 0
    %3845 = vmatprep.subr.bf16.mxu0 0
    %3846 = vmatpush1.bf16.msra.mxu0 0
    %3847 = vmatprep.subr.bf16.mxu0 0
    %3848 = vmatpush1.bf16.msra.mxu0 0
    %3849 = vmatprep.subr.bf16.mxu0 0
    %3850 = vmatpush1.bf16.msra.mxu0 0
    %3851 = vmatprep.subr.bf16.mxu0 0
    %3852 = vmatpush1.bf16.msra.mxu0 0
    %3853 = vmatprep.subr.bf16.mxu0 0
    %3854 = vmatpush1.bf16.msra.mxu0 0
    %3855 = vmatprep.mubr.bf16.mxu0 0
    %3856 = vmatmul.mubr.bf16.gmra.mrb[0].mxu0 %v3771
    %v3857 = vpop.f32.mrb[0].mxu0
    %v3858 = vadd.f32 0.0, %v3857
    %v3859 = vpop.f32.mrb[0].mxu0
    %v3860 = vpop.f32.mrb[0].mxu0
    %v3861 = vadd.f32 0.0, %v3860
    %v3862 = vpop.f32.mrb[0].mxu0
    %3863 = vmatprep.mubr.bf16.mxu0 0
    %3864 = vmatmul.mubr.bf16.gmra.mrb[0].mxu0 %v3772
    %v3865 = vpop.f32.mrb[0].mxu0
    %v3866 = vadd.f32 0.0, %v3865
    %v3867 = vpop.f32.mrb[0].mxu0
    %v3868 = vpop.f32.mrb[0].mxu0
    %v3869 = vadd.f32 0.0, %v3868
    %v3870 = vpop.f32.mrb[0].mxu0
    %3871 = vmatprep.mubr.bf16.mxu0 0
    %3872 = vmatmul.mubr.bf16.gmra.mrb[0].mxu0 %v3773
    %v3873 = vpop.f32.mrb[0].mxu0
    %v3874 = vadd.f32 0.0, %v3873
    %v3875 = vpop.f32.mrb[0].mxu0
    %v3876 = vpop.f32.mrb[0].mxu0
    %v3877 = vadd.f32 0.0, %v3876
    %v3878 = vpop.f32.mrb[0].mxu0
    %3879 = vmatprep.mubr.bf16.mxu0 0
    %3880 = vmatmul.mubr.bf16.gmra.mrb[0].mxu0 %v3774
    %v3881 = vpop.f32.mrb[0].mxu0
    %v3882 = vadd.f32 0.0, %v3881
    %v3883 = vpop.f32.mrb[0].mxu0
    %v3884 = vpop.f32.mrb[0].mxu0
    %v3885 = vadd.f32 0.0, %v3884
    %v3886 = vpop.f32.mrb[0].mxu0
    %3887 = vdwg.mxu0
    %v3888 = vpack.c.bf16 %v3861, %v3858
    %v3889 = vpack.c.bf16 %v3869, %v3866
    %v3890 = vpack.c.bf16 %v3877, %v3874
    %v3891 = vpack.c.bf16 %v3885, %v3882
    %v3892 = vld [vmem:[#allocation2 + $0x4a8] sm:$0xf]
    %v3893 = vld [vmem:[#allocation2 + $0x4ac] sm:$0xf]
    %v3894 = vld [vmem:[#allocation2 + $0x4b0] sm:$0xf]
    %v3895 = vld [vmem:[#allocation2 + $0x4b4] sm:$0xf]
    %v3896 = vld [vmem:[#allocation2 + $0x4b8] sm:$0xf]
    %v3897 = vld [vmem:[#allocation2 + $0x4bc] sm:$0xf]
    %v3898 = vld [vmem:[#allocation2 + $0x4c0] sm:$0xf]
    %v3899 = vld [vmem:[#allocation2 + $0x4c4] sm:$0xf]
    %v3900 = vld [vmem:[#allocation2 + $0x4c8] sm:$0xf]
    %v3901 = vld [vmem:[#allocation2 + $0x4cc] sm:$0xf]
    %v3902 = vld [vmem:[#allocation2 + $0x4d0] sm:$0xf]
    %v3903 = vld [vmem:[#allocation2 + $0x4d4] sm:$0xf]
    %v3904 = vld [vmem:[#allocation2 + $0x4d8] sm:$0xf]
    %v3905 = vld [vmem:[#allocation2 + $0x4dc] sm:$0xf]
    %v3906 = vld [vmem:[#allocation2 + $0x4e0] sm:$0xf]
    %v3907 = vld [vmem:[#allocation2 + $0x4e4] sm:$0xf]
    %v3924 = vunpack.c.l.b16 %v3892
    %v3925 = vunpack.c.l.b16 %v3893
    %v3926 = vunpack.c.l.b16 %v3894
    %v3927 = vunpack.c.l.b16 %v3895
    %v3928 = vunpack.c.l.b16 %v3896
    %v3929 = vunpack.c.l.b16 %v3897
    %v3930 = vunpack.c.l.b16 %v3898
    %v3931 = vunpack.c.l.b16 %v3899
    %v3932 = vunpack.c.l.b16 %v3900
    %v3933 = vunpack.c.l.b16 %v3901
    %v3934 = vunpack.c.l.b16 %v3902
    %v3935 = vunpack.c.l.b16 %v3903
    %v3936 = vunpack.c.l.b16 %v3904
    %v3937 = vunpack.c.l.b16 %v3905
    %v3938 = vunpack.c.l.b16 %v3906
    %v3939 = vunpack.c.l.b16 %v3907
    %v3940 = vpack.c.b16 %v3925, %v3924
    %v3941 = vpack.c.b16 %v3927, %v3926
    %v3942 = vpack.c.b16 %v3929, %v3928
    %v3943 = vpack.c.b16 %v3931, %v3930
    %v3944 = vpack.c.b16 %v3933, %v3932
    %v3945 = vpack.c.b16 %v3935, %v3934
    %v3946 = vpack.c.b16 %v3937, %v3936
    %v3947 = vpack.c.b16 %v3939, %v3938
    %3956 = vmatprep.subr.bf16.mxu0 0
    %3957 = vmatpush1.bf16.msra.mxu0 %v3940
    %3958 = vmatprep.subr.bf16.mxu0 0
    %3959 = vmatpush1.bf16.msra.mxu0 %v3941
    %3960 = vmatprep.subr.bf16.mxu0 0
    %3961 = vmatpush1.bf16.msra.mxu0 %v3942
    %3962 = vmatprep.subr.bf16.mxu0 0
    %3963 = vmatpush1.bf16.msra.mxu0 %v3943
    %3964 = vmatprep.subr.bf16.mxu0 0
    %3965 = vmatpush1.bf16.msra.mxu0 %v3944
    %3966 = vmatprep.subr.bf16.mxu0 0
    %3967 = vmatpush1.bf16.msra.mxu0 %v3945
    %3968 = vmatprep.subr.bf16.mxu0 0
    %3969 = vmatpush1.bf16.msra.mxu0 %v3946
    %3970 = vmatprep.subr.bf16.mxu0 0
    %3971 = vmatpush1.bf16.msra.mxu0 %v3947
    %3972 = vmatprep.subr.bf16.mxu0 0
    %3973 = vmatpush1.bf16.msra.mxu0 0
    %3974 = vmatprep.subr.bf16.mxu0 0
    %3975 = vmatpush1.bf16.msra.mxu0 0
    %3976 = vmatprep.subr.bf16.mxu0 0
    %3977 = vmatpush1.bf16.msra.mxu0 0
    %3978 = vmatprep.subr.bf16.mxu0 0
    %3979 = vmatpush1.bf16.msra.mxu0 0
    %3980 = vmatprep.subr.bf16.mxu0 0
    %3981 = vmatpush1.bf16.msra.mxu0 0
    %3982 = vmatprep.subr.bf16.mxu0 0
    %3983 = vmatpush1.bf16.msra.mxu0 0
    %3984 = vmatprep.subr.bf16.mxu0 0
    %3985 = vmatpush1.bf16.msra.mxu0 0
    %3986 = vmatprep.subr.bf16.mxu0 0
    %3987 = vmatpush1.bf16.msra.mxu0 0
    %3988 = vmatprep.mubr.bf16.mxu0 0
    %3989 = vmatmul.mubr.bf16.gmra.mrb[0].mxu0 %v3771
    %v3990 = vpop.f32.mrb[0].mxu0
    %v3991 = vadd.f32 0.0, %v3990
    %v3992 = vpop.f32.mrb[0].mxu0
    %v3993 = vpop.f32.mrb[0].mxu0
    %v3994 = vadd.f32 0.0, %v3993
    %v3995 = vpop.f32.mrb[0].mxu0
    %3996 = vmatprep.mubr.bf16.mxu0 0
    %3997 = vmatmul.mubr.bf16.gmra.mrb[0].mxu0 %v3772
    %v3998 = vpop.f32.mrb[0].mxu0
    %v3999 = vadd.f32 0.0, %v3998
    %v4000 = vpop.f32.mrb[0].mxu0
    %v4001 = vpop.f32.mrb[0].mxu0
    %v4002 = vadd.f32 0.0, %v4001
    %v4003 = vpop.f32.mrb[0].mxu0
    %4004 = vmatprep.mubr.bf16.mxu0 0
    %4005 = vmatmul.mubr.bf16.gmra.mrb[0].mxu0 %v3773
    %v4006 = vpop.f32.mrb[0].mxu0
    %v4007 = vadd.f32 0.0, %v4006
    %v4008 = vpop.f32.mrb[0].mxu0
    %v4009 = vpop.f32.mrb[0].mxu0
    %v4010 = vadd.f32 0.0, %v4009
    %v4011 = vpop.f32.mrb[0].mxu0
    %4012 = vmatprep.mubr.bf16.mxu0 0
    %4013 = vmatmul.mubr.bf16.gmra.mrb[0].mxu0 %v3774
    %v4014 = vpop.f32.mrb[0].mxu0
    %v4015 = vadd.f32 0.0, %v4014
    %v4016 = vpop.f32.mrb[0].mxu0
    %v4017 = vpop.f32.mrb[0].mxu0
    %v4018 = vadd.f32 0.0, %v4017
    %v4019 = vpop.f32.mrb[0].mxu0
    %4020 = vdwg.mxu0
    %v4029 = vunpack.c.l.b16 %v3747
    %v4030 = vunpack.c.l.b16 %v3748
    %v4031 = vunpack.c.l.b16 %v3749
    %v4032 = vunpack.c.l.b16 %v3750
    %v4033 = vunpack.c.l.b16 %v3751
    %v4034 = vunpack.c.l.b16 %v3752
    %v4035 = vunpack.c.l.b16 %v3753
    %v4036 = vunpack.c.l.b16 %v3754
    %v4037 = vpack.c.b16 %v4030, %v4029
    %v4038 = vpack.c.b16 %v4032, %v4031
    %v4039 = vpack.c.b16 %v4034, %v4033
    %v4040 = vpack.c.b16 %v4036, %v4035
    %v4042 = vsel %vm369, %v4037, 0
    %v4045 = vsel %vm369, %v4038, 0
    %v4048 = vsel %vm369, %v4039, 0
    %v4051 = vsel %vm369, %v4040, 0
    %4053 = vmatprep.subr.bf16.mxu0 0
    %4054 = vmatpush1.bf16.msra.mxu0 %v3888
    %4055 = vmatprep.subr.bf16.mxu0 0
    %4056 = vmatpush1.bf16.msra.mxu0 %v3889
    %4057 = vmatprep.subr.bf16.mxu0 0
    %4058 = vmatpush1.bf16.msra.mxu0 %v3890
    %4059 = vmatprep.subr.bf16.mxu0 0
    %4060 = vmatpush1.bf16.msra.mxu0 %v3891
    %4061 = vmatprep.subr.bf16.mxu0 0
    %4062 = vmatpush1.bf16.msra.mxu0 0
    %4063 = vmatprep.subr.bf16.mxu0 0
    %4064 = vmatpush1.bf16.msra.mxu0 0
    %4065 = vmatprep.subr.bf16.mxu0 0
    %4066 = vmatpush1.bf16.msra.mxu0 0
    %4067 = vmatprep.subr.bf16.mxu0 0
    %4068 = vmatpush1.bf16.msra.mxu0 0
    %4069 = vmatprep.subr.bf16.mxu0 0
    %4070 = vmatpush1.bf16.msra.mxu0 0
    %4071 = vmatprep.subr.bf16.mxu0 0
    %4072 = vmatpush1.bf16.msra.mxu0 0
    %4073 = vmatprep.subr.bf16.mxu0 0
    %4074 = vmatpush1.bf16.msra.mxu0 0
    %4075 = vmatprep.subr.bf16.mxu0 0
    %4076 = vmatpush1.bf16.msra.mxu0 0
    %4077 = vmatprep.subr.bf16.mxu0 0
    %4078 = vmatpush1.bf16.msra.mxu0 0
    %4079 = vmatprep.subr.bf16.mxu0 0
    %4080 = vmatpush1.bf16.msra.mxu0 0
    %4081 = vmatprep.subr.bf16.mxu0 0
    %4082 = vmatpush1.bf16.msra.mxu0 0
    %4083 = vmatprep.subr.bf16.mxu0 0
    %4084 = vmatpush1.bf16.msra.mxu0 0
    %4085 = vmatprep.mubr.bf16.mxu0 0
    %4086 = vmatmul.mubr.bf16.gmra.mrb[0].mxu0 %v4042
    %v4087 = vpop.f32.mrb[0].mxu0
    %v4088 = vadd.f32 %v3991, %v4087
    %v4089 = vpop.f32.mrb[0].mxu0
    %v4090 = vpop.f32.mrb[0].mxu0
    %v4091 = vadd.f32 %v3994, %v4090
    %v4092 = vpop.f32.mrb[0].mxu0
    %4093 = vmatprep.mubr.bf16.mxu0 0
    %4094 = vmatmul.mubr.bf16.gmra.mrb[0].mxu0 %v4045
    %v4095 = vpop.f32.mrb[0].mxu0
    %v4096 = vadd.f32 %v3999, %v4095
    %v4097 = vpop.f32.mrb[0].mxu0
    %v4098 = vpop.f32.mrb[0].mxu0
    %v4099 = vadd.f32 %v4002, %v4098
    %v4100 = vpop.f32.mrb[0].mxu0
    %4101 = vmatprep.mubr.bf16.mxu0 0
    %4102 = vmatmul.mubr.bf16.gmra.mrb[0].mxu0 %v4048
    %v4103 = vpop.f32.mrb[0].mxu0
    %v4104 = vadd.f32 %v4007, %v4103
    %v4105 = vpop.f32.mrb[0].mxu0
    %v4106 = vpop.f32.mrb[0].mxu0
    %v4107 = vadd.f32 %v4010, %v4106
    %v4108 = vpop.f32.mrb[0].mxu0
    %4109 = vmatprep.mubr.bf16.mxu0 0
    %4110 = vmatmul.mubr.bf16.gmra.mrb[0].mxu0 %v4051
    %v4111 = vpop.f32.mrb[0].mxu0
    %v4112 = vadd.f32 %v4015, %v4111
    %v4113 = vpop.f32.mrb[0].mxu0
    %v4114 = vpop.f32.mrb[0].mxu0
    %v4115 = vadd.f32 %v4018, %v4114
    %v4116 = vpop.f32.mrb[0].mxu0
    %4117 = vdwg.mxu0
    %v4118 = vld [vmem:[#allocation4 + $0x50] sm:$0x1]
    %v4119 = vlaneseq
    %v4120 = vshrl.u32 %v4119, 7
    %v4121 = vsub.s32 0, %v4120
    %v4122 = vrot.slane %v4118, %v4121
    %v4123 = vadd.f32 %v4088, %v4122
    %v4124 = vadd.f32 %v4091, %v4122
    %v4125 = vadd.f32 %v4096, %v4122
    %v4126 = vadd.f32 %v4099, %v4122
    %v4127 = vadd.f32 %v4104, %v4122
    %v4128 = vadd.f32 %v4107, %v4122
    %v4129 = vadd.f32 %v4112, %v4122
    %v4130 = vadd.f32 %v4115, %v4122
    %v4131 = vmax.f32 %v4123, 0.0
    %v4132 = vmax.f32 %v4124, 0.0
    %v4133 = vmax.f32 %v4125, 0.0
    %v4134 = vmax.f32 %v4126, 0.0
    %v4135 = vmax.f32 %v4127, 0.0
    %v4136 = vmax.f32 %v4128, 0.0
    %v4137 = vmax.f32 %v4129, 0.0
    %v4138 = vmax.f32 %v4130, 0.0
    %v4139 = vld [vmem:[#allocation6 + $0x30] sm:$0xf]
    %v4140 = vld [vmem:[#allocation6 + $0x34] sm:$0xf]
    %v4141 = vld [vmem:[#allocation2 + $0x4e8] sm:$0xf]
    %v4142 = vld [vmem:[#allocation2 + $0x4ec] sm:$0xf]
    %v4143 = vld [vmem:[#allocation2 + $0x4f0] sm:$0xf]
    %v4144 = vld [vmem:[#allocation2 + $0x4f4] sm:$0xf]
    %v4145 = vld [vmem:[#allocation2 + $0x4f8] sm:$0xf]
    %v4146 = vld [vmem:[#allocation2 + $0x4fc] sm:$0xf]
    %v4147 = vld [vmem:[#allocation2 + $0x500] sm:$0xf]
    %v4148 = vld [vmem:[#allocation2 + $0x504] sm:$0xf]
    %v4149 = vpack.c.bf16 %v4132, %v4131
    %v4150 = vpack.c.bf16 %v4134, %v4133
    %v4151 = vpack.c.bf16 %v4136, %v4135
    %v4152 = vpack.c.bf16 %v4138, %v4137
    %v4161 = vunpack.c.l.b16 %v4141
    %v4162 = vunpack.c.l.b16 %v4142
    %v4163 = vunpack.c.l.b16 %v4143
    %v4164 = vunpack.c.l.b16 %v4144
    %v4165 = vunpack.c.l.b16 %v4145
    %v4166 = vunpack.c.l.b16 %v4146
    %v4167 = vunpack.c.l.b16 %v4147
    %v4168 = vunpack.c.l.b16 %v4148
    %v4169 = vpack.c.b16 %v4162, %v4161
    %v4170 = vpack.c.b16 %v4164, %v4163
    %v4171 = vpack.c.b16 %v4166, %v4165
    %v4172 = vpack.c.b16 %v4168, %v4167
    %v4178 = vsel %vm369, %v4149, 0
    %v4181 = vsel %vm369, %v4150, 0
    %v4184 = vsel %vm369, %v4151, 0
    %v4187 = vsel %vm369, %v4152, 0
    %4189 = vmatprep.subr.bf16.mxu0 0
    %4190 = vmatpush1.bf16.msra.mxu0 %v4169
    %4191 = vmatprep.subr.bf16.mxu0 0
    %4192 = vmatpush1.bf16.msra.mxu0 %v4170
    %4193 = vmatprep.subr.bf16.mxu0 0
    %4194 = vmatpush1.bf16.msra.mxu0 %v4171
    %4195 = vmatprep.subr.bf16.mxu0 0
    %4196 = vmatpush1.bf16.msra.mxu0 %v4172
    %4197 = vmatprep.subr.bf16.mxu0 0
    %4198 = vmatpush1.bf16.msra.mxu0 0
    %4199 = vmatprep.subr.bf16.mxu0 0
    %4200 = vmatpush1.bf16.msra.mxu0 0
    %4201 = vmatprep.subr.bf16.mxu0 0
    %4202 = vmatpush1.bf16.msra.mxu0 0
    %4203 = vmatprep.subr.bf16.mxu0 0
    %4204 = vmatpush1.bf16.msra.mxu0 0
    %4205 = vmatprep.subr.bf16.mxu0 0
    %4206 = vmatpush1.bf16.msra.mxu0 0
    %4207 = vmatprep.subr.bf16.mxu0 0
    %4208 = vmatpush1.bf16.msra.mxu0 0
    %4209 = vmatprep.subr.bf16.mxu0 0
    %4210 = vmatpush1.bf16.msra.mxu0 0
    %4211 = vmatprep.subr.bf16.mxu0 0
    %4212 = vmatpush1.bf16.msra.mxu0 0
    %4213 = vmatprep.subr.bf16.mxu0 0
    %4214 = vmatpush1.bf16.msra.mxu0 0
    %4215 = vmatprep.subr.bf16.mxu0 0
    %4216 = vmatpush1.bf16.msra.mxu0 0
    %4217 = vmatprep.subr.bf16.mxu0 0
    %4218 = vmatpush1.bf16.msra.mxu0 0
    %4219 = vmatprep.subr.bf16.mxu0 0
    %4220 = vmatpush1.bf16.msra.mxu0 0
    %4221 = vmatprep.mubr.bf16.mxu0 0
    %4222 = vmatmul.mubr.bf16.gmra.mrb[0].mxu0 %v4178
    %v4223 = vpop.f32.mrb[0].mxu0
    %v4224 = vadd.f32 0.0, %v4223
    %v4225 = vpop.f32.mrb[0].mxu0
    %v4226 = vpop.f32.mrb[0].mxu0
    %v4227 = vadd.f32 0.0, %v4226
    %v4228 = vpop.f32.mrb[0].mxu0
    %4229 = vmatprep.mubr.bf16.mxu0 0
    %4230 = vmatmul.mubr.bf16.gmra.mrb[0].mxu0 %v4181
    %v4231 = vpop.f32.mrb[0].mxu0
    %v4232 = vadd.f32 0.0, %v4231
    %v4233 = vpop.f32.mrb[0].mxu0
    %v4234 = vpop.f32.mrb[0].mxu0
    %v4235 = vadd.f32 0.0, %v4234
    %v4236 = vpop.f32.mrb[0].mxu0
    %4237 = vmatprep.mubr.bf16.mxu0 0
    %4238 = vmatmul.mubr.bf16.gmra.mrb[0].mxu0 %v4184
    %v4239 = vpop.f32.mrb[0].mxu0
    %v4240 = vadd.f32 0.0, %v4239
    %v4241 = vpop.f32.mrb[0].mxu0
    %v4242 = vpop.f32.mrb[0].mxu0
    %v4243 = vadd.f32 0.0, %v4242
    %v4244 = vpop.f32.mrb[0].mxu0
    %4245 = vmatprep.mubr.bf16.mxu0 0
    %4246 = vmatmul.mubr.bf16.gmra.mrb[0].mxu0 %v4187
    %v4247 = vpop.f32.mrb[0].mxu0
    %v4248 = vadd.f32 0.0, %v4247
    %v4249 = vpop.f32.mrb[0].mxu0
    %v4250 = vpop.f32.mrb[0].mxu0
    %v4251 = vadd.f32 0.0, %v4250
    %v4252 = vpop.f32.mrb[0].mxu0
    %4253 = vdwg.mxu0
    %v4254 = vpack.c.bf16 %v4227, %v4224
    %v4255 = vpack.c.bf16 %v4235, %v4232
    %v4256 = vpack.c.bf16 %v4243, %v4240
    %v4257 = vpack.c.bf16 %v4251, %v4248
    %v4258 = vld [vmem:[#allocation4 + $0x58] sm:$0x1]
    %v4259 = vlaneseq
    %v4260 = vshrl.u32 %v4259, 7
    %v4261 = vsub.s32 0, %v4260
    %v4262 = vrot.slane %v4258, %v4261
    %v4265 = vunpack.c.l.b16 %v4139
    %v4266 = vunpack.c.l.b16 %v4140
    %v4267 = vpack.c.b16 %v4266, %v4265
    %v4269 = vsel %vm369, %v4267, 0
    %4271 = vmatprep.subr.bf16.mxu0 0
    %4272 = vmatpush1.bf16.msra.mxu0 %v4254
    %4273 = vmatprep.subr.bf16.mxu0 0
    %4274 = vmatpush1.bf16.msra.mxu0 %v4255
    %4275 = vmatprep.subr.bf16.mxu0 0
    %4276 = vmatpush1.bf16.msra.mxu0 %v4256
    %4277 = vmatprep.subr.bf16.mxu0 0
    %4278 = vmatpush1.bf16.msra.mxu0 %v4257
    %4279 = vmatprep.subr.bf16.mxu0 0
    %4280 = vmatpush1.bf16.msra.mxu0 0
    %4281 = vmatprep.subr.bf16.mxu0 0
    %4282 = vmatpush1.bf16.msra.mxu0 0
    %4283 = vmatprep.subr.bf16.mxu0 0
    %4284 = vmatpush1.bf16.msra.mxu0 0
    %4285 = vmatprep.subr.bf16.mxu0 0
    %4286 = vmatpush1.bf16.msra.mxu0 0
    %4287 = vmatprep.subr.bf16.mxu0 0
    %4288 = vmatpush1.bf16.msra.mxu0 0
    %4289 = vmatprep.subr.bf16.mxu0 0
    %4290 = vmatpush1.bf16.msra.mxu0 0
    %4291 = vmatprep.subr.bf16.mxu0 0
    %4292 = vmatpush1.bf16.msra.mxu0 0
    %4293 = vmatprep.subr.bf16.mxu0 0
    %4294 = vmatpush1.bf16.msra.mxu0 0
    %4295 = vmatprep.subr.bf16.mxu0 0
    %4296 = vmatpush1.bf16.msra.mxu0 0
    %4297 = vmatprep.subr.bf16.mxu0 0
    %4298 = vmatpush1.bf16.msra.mxu0 0
    %4299 = vmatprep.subr.bf16.mxu0 0
    %4300 = vmatpush1.bf16.msra.mxu0 0
    %4301 = vmatprep.subr.bf16.mxu0 0
    %4302 = vmatpush1.bf16.msra.mxu0 0
    %4303 = vmatprep.mubr.bf16.mxu0 0
    %4304 = vmatmul.mubr.bf16.gmra.mrb[0].mxu0 %v4269
    %v4305 = vpop.f32.mrb[0].mxu0
    %v4306 = vadd.f32 %v4262, %v4305
    %v4307 = vpop.f32.mrb[0].mxu0
    %v4308 = vpop.f32.mrb[0].mxu0
    %v4309 = vadd.f32 %v4262, %v4308
    %v4310 = vpop.f32.mrb[0].mxu0
    %4311 = vdwg.mxu0
    %v4312 = vmax.f32 %v4306, 0.0
    %v4313 = vmax.f32 %v4309, 0.0
    %v4314 = vmul.f32 %v4312, %v4312
    %v4315 = vmul.f32 %v4313, %v4313
    %4318 = vrot.lane.b32.xlu0 %v4314, 64
    %v4319 = vpop.permute.xlu0 %4318
    %4320 = vrot.lane.b32.xlu0 %v4315, 64
    %v4321 = vpop.permute.xlu0 %4320
    %v4324 = vsel %vm369, %v4312, %v4319
    %v4325 = vsel %vm369, %v4313, %v4321
    %v4326 = vadd.f32 %v4324, %v4325
    %v4327 = vrot.slane %v4326, 4
    %v4328 = vadd.f32 %v4326, %v4327
    %v4329 = vrot.slane %v4328, 2
    %v4330 = vadd.f32 %v4328, %v4329
    %v4331 = vrot.slane %v4330, 1
    %v4332 = vadd.f32 %v4330, %v4331
    %v4333 = vmul.f32 %v4332, 0.0625
    %v4334 = vmul.f32 %v4333, %v4333
    %4336 = vrot.lane.b32.xlu0 %v4334, 64
    %v4337 = vpop.permute.xlu0 %4336
    %v4339 = vsub.f32 %v4333, %v4337
    %v4340 = vmax.f32 %v4339, 0.0
    %v4341 = vsub.f32 %v4312, %v4333
    %v4342 = vsub.f32 %v4313, %v4333
    %v4343 = vadd.f32 %v4340, 1e-05
    %v4344 = vrsqrt.pop %v4343
    %v4345 = vlaneseq
    %v4346 = vshrl.u32 %v4345, 7
    %v4347 = vsub.s32 0, %v4346
    %v4348 = vrot.slane %v4344, %v4347
    %4350 = vrot.lane.b32.xlu0 %v4348, 64
    %v4351 = vpop.permute.xlu0 %4350
    %v4353 = vmul.f32 %v4341, %v4351
    %v4354 = vmul.f32 %v4342, %v4351
    %v4355 = vld [vmem:[#allocation2 + $0x508] sm:$0xf]
    %v4356 = vld [vmem:[#allocation2 + $0x50c] sm:$0xf]
    %v4357 = vld [vmem:[#allocation2 + $0x510] sm:$0xf]
    %v4358 = vld [vmem:[#allocation2 + $0x514] sm:$0xf]
    %v4359 = vld [vmem:[#allocation2 + $0x518] sm:$0xf]
    %v4360 = vld [vmem:[#allocation2 + $0x51c] sm:$0xf]
    %v4361 = vld [vmem:[#allocation2 + $0x520] sm:$0xf]
    %v4362 = vld [vmem:[#allocation2 + $0x524] sm:$0xf]
    %v4363 = vpack.c.bf16 %v4354, %v4353
    %v4372 = vunpack.c.l.b16 %v4355
    %v4373 = vunpack.c.l.b16 %v4356
    %v4374 = vunpack.c.l.b16 %v4357
    %v4375 = vunpack.c.l.b16 %v4358
    %v4376 = vunpack.c.l.b16 %v4359
    %v4377 = vunpack.c.l.b16 %v4360
    %v4378 = vunpack.c.l.b16 %v4361
    %v4379 = vunpack.c.l.b16 %v4362
    %v4380 = vpack.c.b16 %v4373, %v4372
    %v4381 = vpack.c.b16 %v4375, %v4374
    %v4382 = vpack.c.b16 %v4377, %v4376
    %v4383 = vpack.c.b16 %v4379, %v4378
    %v4389 = vsel %vm369, %v4363, 0
    %4391 = vmatprep.subr.bf16.mxu0 0
    %4392 = vmatpush1.bf16.msra.mxu0 %v4380
    %4393 = vmatprep.subr.bf16.mxu0 0
    %4394 = vmatpush1.bf16.msra.mxu0 %v4381
    %4395 = vmatprep.subr.bf16.mxu0 0
    %4396 = vmatpush1.bf16.msra.mxu0 %v4382
    %4397 = vmatprep.subr.bf16.mxu0 0
    %4398 = vmatpush1.bf16.msra.mxu0 %v4383
    %4399 = vmatprep.subr.bf16.mxu0 0
    %4400 = vmatpush1.bf16.msra.mxu0 0
    %4401 = vmatprep.subr.bf16.mxu0 0
    %4402 = vmatpush1.bf16.msra.mxu0 0
    %4403 = vmatprep.subr.bf16.mxu0 0
    %4404 = vmatpush1.bf16.msra.mxu0 0
    %4405 = vmatprep.subr.bf16.mxu0 0
    %4406 = vmatpush1.bf16.msra.mxu0 0
    %4407 = vmatprep.subr.bf16.mxu0 0
    %4408 = vmatpush1.bf16.msra.mxu0 0
    %4409 = vmatprep.subr.bf16.mxu0 0
    %4410 = vmatpush1.bf16.msra.mxu0 0
    %4411 = vmatprep.subr.bf16.mxu0 0
    %4412 = vmatpush1.bf16.msra.mxu0 0
    %4413 = vmatprep.subr.bf16.mxu0 0
    %4414 = vmatpush1.bf16.msra.mxu0 0
    %4415 = vmatprep.subr.bf16.mxu0 0
    %4416 = vmatpush1.bf16.msra.mxu0 0
    %4417 = vmatprep.subr.bf16.mxu0 0
    %4418 = vmatpush1.bf16.msra.mxu0 0
    %4419 = vmatprep.subr.bf16.mxu0 0
    %4420 = vmatpush1.bf16.msra.mxu0 0
    %4421 = vmatprep.subr.bf16.mxu0 0
    %4422 = vmatpush1.bf16.msra.mxu0 0
    %4423 = vmatprep.mubr.bf16.mxu0 0
    %4424 = vmatmul.mubr.bf16.gmra.mrb[0].mxu0 %v4389
    %v4425 = vpop.f32.mrb[0].mxu0
    %v4426 = vadd.f32 0.0, %v4425
    %v4427 = vpop.f32.mrb[0].mxu0
    %v4428 = vpop.f32.mrb[0].mxu0
    %v4429 = vadd.f32 0.0, %v4428
    %v4430 = vpop.f32.mrb[0].mxu0
    %4431 = vdwg.mxu0
    %vm4432 = vcmask 15360
    %4433 = vst.msk [vmem:[%s5] sm:$0xff] %vm4432, %v4426
    %4434 = vst.msk [vmem:[%s5 + $0x8] sm:$0xff] %vm4432, %v4429
    // Predicated region
    $region34: #{tpu_custom_call.1} parent=1 // pred_check
      _
    $region35: #{tpu_custom_call.1} parent=1 // pred_check_branch
      %4436 = sbr.rel (0) target = $region37
    $region36: #{tpu_custom_call.1} parent=1 // pred_region
      _
    $region37: #{tpu_custom_call.1} parent=1 // pred_fallthru
      _
    // Predicated region
    $region38: #{tpu_custom_call.1} parent=1 // pred_check
      _
    $region39: #{tpu_custom_call.1} parent=1 // pred_check_branch
      %4438 = sbr.rel (0) target = $region41
    $region40: #{tpu_custom_call.1} parent=1 // pred_region
      _
    $region41: #{tpu_custom_call.1} parent=1 // pred_fallthru
      _
    %4439 = vsyncpa [#allocation3], 1
    %4440 = vsyncpa [#allocation5], 1

</llo_original>
